<compile_context>
chip_gen: v7x
topology: tpu7x:2x2x1
jax: 0.10.0
libtpu: 0.0.40
codegen_flags: <defaults>
</compile_context>

<pallas_src>
import numpy as np
import jax
import jax.numpy as jnp
from jax import lax
from jax.experimental import pallas as pl
from jax.experimental.pallas import tpu as pltpu

VMEM_LIMIT = 32 * 1024 * 1024   # explicit scoped-VMEM budget; safe on v5e/v6e (128 MiB) and v7x (64 MiB)
NEG_BIG = -1e9                  # additive mask bias; scores stay f32 so no overflow


# ----------------------------------------------------------------------------
# helpers
# ----------------------------------------------------------------------------
def _ru(x, m):
    return ((x + m - 1) // m) * m


def _pad_to(x, shape):
    pads = [(0, s - d) for d, s in zip(x.shape, shape)]
    if all(p == (0, 0) for p in pads):
        return x
    return jnp.pad(x, pads)


def _cparams(sem):
    return pltpu.CompilerParams(dimension_semantics=sem,
                                vmem_limit_bytes=VMEM_LIMIT)


def _pad_gates_w(w, H, Hp, n_gates):
    # (K, n_gates*H) -> (K, n_gates*Hp): each gate block zero-padded to Hp lanes
    parts = [jnp.pad(w[:, g * H:(g + 1) * H], ((0, 0), (0, Hp - H)))
             for g in range(n_gates)]
    return jnp.concatenate(parts, axis=1)


def _pad_gates_b(b, H, Hp, n_gates):
    parts = [jnp.pad(b[g * H:(g + 1) * H], (0, Hp - H)) for g in range(n_gates)]
    return jnp.concatenate(parts)


def positional_encoding(T, d):
    pos = np.arange(T)[:, None].astype(np.float32)
    div = np.exp(np.arange(0, d, 2).astype(np.float32) * (-np.log(10000.0) / d))
    pe = np.zeros((T, d), np.float32)
    pe[:, 0::2] = np.sin(pos * div)
    pe[:, 1::2] = np.cos(pos * div)
    return jnp.asarray(pe)


# ----------------------------------------------------------------------------
# Kernel 1: tiled linear  y = x @ w + b  (bf16 MXU inputs, f32 accumulation)
# ----------------------------------------------------------------------------
def _linear_kernel(x_ref, w_ref, b_ref, o_ref, acc_ref):
    k = pl.program_id(2)

    @pl.when(k == 0)
    def _():
        acc_ref[...] = jnp.zeros_like(acc_ref)

    acc_ref[...] += jnp.dot(x_ref[...], w_ref[...],
                            preferred_element_type=jnp.float32)

    @pl.when(k == pl.num_programs(2) - 1)
    def _():
        o_ref[...] = (acc_ref[...] + b_ref[...]).astype(o_ref.dtype)


def pallas_linear(x, w, b, *, tm_max=256, tn_max=512, tk_max=512):
    """y = x @ w + b for x (..., K), w (K, N), b (N,).  Tiles sized so that
    double-buffered operands stay well under the v7x 64 MiB VMEM budget."""
    lead = x.shape[:-1]
    K = x.shape[-1]
    N = w.shape[-1]
    x2 = x.reshape(-1, K)
    M = x2.shape[0]
    tm = min(tm_max, _ru(M, 16))
    tn = min(tn_max, _ru(N, 128))
    tk = min(tk_max, _ru(K, 128))
    Mp, Kp, Np = _ru(M, tm), _ru(K, tk), _ru(N, tn)
    xp = _pad_to(x2, (Mp, Kp)).astype(jnp.bfloat16)
    wp = _pad_to(w, (Kp, Np)).astype(jnp.bfloat16)
    bp = _pad_to(b.reshape(1, N).astype(jnp.float32), (1, Np))
    out = pl.pallas_call(
        _linear_kernel,
        out_shape=jax.ShapeDtypeStruct((Mp, Np), jnp.float32),
        grid=(Mp // tm, Np // tn, Kp // tk),
        in_specs=[
            pl.BlockSpec((tm, tk), lambda i, j, k: (i, k)),
            pl.BlockSpec((tk, tn), lambda i, j, k: (k, j)),
            pl.BlockSpec((1, tn), lambda i, j, k: (0, j)),
        ],
        out_specs=pl.BlockSpec((tm, tn), lambda i, j, k: (i, j)),
        scratch_shapes=[pltpu.VMEM((tm, tn), jnp.float32)],
        compiler_params=_cparams(("parallel", "parallel", "arbitrary")),
    )(xp, wp, bp)
    return out[:M, :N].reshape(*lead, N)


# ----------------------------------------------------------------------------
# Kernel 2: flash-style masked dot-product attention (streaming softmax)
# ----------------------------------------------------------------------------
def _attn_kernel(bias_ref, q_ref, k_ref, o_ref, m_scr, l_scr, acc_scr):
    kv = pl.program_id(2)

    @pl.when(kv == 0)
    def _():
        m_scr[...] = jnp.full_like(m_scr, NEG_BIG)
        l_scr[...] = jnp.zeros_like(l_scr)
        acc_scr[...] = jnp.zeros_like(acc_scr)

    q = q_ref[0]                      # (TQ, Hp) bf16
    kk = k_ref[0]                     # (TK, Hp) bf16
    # 2-D matmul per batch grid cell (B collapsed onto the grid, not a batch dim)
    s = lax.dot_general(q, kk, (((1,), (1,)), ((), ())),
                        preferred_element_type=jnp.float32)     # (TQ, TK)
    s = s + bias_ref[0]               # additive mask bias (1, TK); f32 math (v5e-safe)
    m_prev = m_scr[...]
    m_new = jnp.maximum(m_prev, jnp.max(s, axis=-1, keepdims=True))
    alpha = jnp.exp(m_prev - m_new)
    p = jnp.exp(s - m_new)
    l_scr[...] = alpha * l_scr[...] + jnp.sum(p, axis=-1, keepdims=True)
    acc_scr[...] = alpha * acc_scr[...] + jnp.dot(
        p.astype(kk.dtype), kk, preferred_element_type=jnp.float32)
    m_scr[...] = m_new

    @pl.when(kv == pl.num_programs(2) - 1)
    def _():
        o_ref[0] = (acc_scr[...] *
                    pl.reciprocal(l_scr[...], approx=True)).astype(o_ref.dtype)


def pallas_attention(dec, enc, enc_mask):
    """Attention of dec (B,Td,H) over enc (B,Te,H) with mask (B,Te)."""
    B, Td, H = dec.shape
    Te = enc.shape[1]
    Hp = _ru(H, 128)
    tq = min(256, _ru(Td, 16))
    tk = min(512, _ru(Te, 128))
    Tdp, Tep = _ru(Td, tq), _ru(Te, tk)
    q = _pad_to(dec, (B, Tdp, Hp)).astype(jnp.bfloat16)
    k = _pad_to(enc, (B, Tep, Hp)).astype(jnp.bfloat16)
    # additive bias: 0 where valid, NEG_BIG where masked (padding counts as masked)
    bias = (_pad_to(enc_mask.astype(jnp.float32), (B, Tep)) - 1.0) * (-NEG_BIG)
    bias = bias.reshape(B, 1, Tep)
    out = pl.pallas_call(
        _attn_kernel,
        out_shape=jax.ShapeDtypeStruct((B, Tdp, Hp), jnp.float32),
        grid=(B, Tdp // tq, Tep // tk),
        in_specs=[
            pl.BlockSpec((1, 1, tk), lambda b, qi, ki: (b, 0, ki)),
            pl.BlockSpec((1, tq, Hp), lambda b, qi, ki: (b, qi, 0)),
            pl.BlockSpec((1, tk, Hp), lambda b, qi, ki: (b, ki, 0)),
        ],
        out_specs=pl.BlockSpec((1, tq, Hp), lambda b, qi, ki: (b, qi, 0)),
        scratch_shapes=[pltpu.VMEM((tq, 1), jnp.float32),
                        pltpu.VMEM((tq, 1), jnp.float32),
                        pltpu.VMEM((tq, Hp), jnp.float32)],
        compiler_params=_cparams(("parallel", "parallel", "arbitrary")),
    )(bias, q, k)
    return out[:, :Td, :H]


# ----------------------------------------------------------------------------
# Kernel 3: fused decoder epilogue  out = tanh([dec;ctx] @ W + b) * mask
# ----------------------------------------------------------------------------
def _dec_out_kernel(dec_ref, ctx_ref, w1_ref, w2_ref, b_ref, mask_ref, o_ref):
    y = (jnp.dot(dec_ref[...], w1_ref[...], preferred_element_type=jnp.float32)
         + jnp.dot(ctx_ref[...], w2_ref[...], preferred_element_type=jnp.float32)
         + b_ref[...])
    o_ref[...] = (jnp.tanh(y) * mask_ref[...]).astype(o_ref.dtype)


def pallas_decoder_out(dec, ctx, mask, w, b):
    B, T, H = dec.shape
    N = w.shape[-1]
    Hp = _ru(H, 128)
    M = B * T
    tm = min(256, _ru(M, 16))
    tn = min(512, _ru(N, 128))
    Mp, Np = _ru(M, tm), _ru(N, tn)
    d2 = _pad_to(dec.reshape(M, H), (Mp, Hp)).astype(jnp.bfloat16)
    c2 = _pad_to(ctx.reshape(M, H), (Mp, Hp)).astype(jnp.bfloat16)
    w1 = _pad_to(w[:H], (Hp, Np)).astype(jnp.bfloat16)     # dec half of the concat weight
    w2 = _pad_to(w[H:], (Hp, Np)).astype(jnp.bfloat16)     # ctx half
    bp = _pad_to(b.reshape(1, N).astype(jnp.float32), (1, Np))
    mp = _pad_to(mask.reshape(M, 1).astype(jnp.float32), (Mp, 1))
    out = pl.pallas_call(
        _dec_out_kernel,
        out_shape=jax.ShapeDtypeStruct((Mp, Np), jnp.float32),
        grid=(Mp // tm, Np // tn),
        in_specs=[
            pl.BlockSpec((tm, Hp), lambda i, j: (i, 0)),
            pl.BlockSpec((tm, Hp), lambda i, j: (i, 0)),
            pl.BlockSpec((Hp, tn), lambda i, j: (0, j)),
            pl.BlockSpec((Hp, tn), lambda i, j: (0, j)),
            pl.BlockSpec((1, tn), lambda i, j: (0, j)),
            pl.BlockSpec((tm, 1), lambda i, j: (i, 0)),
        ],
        out_specs=pl.BlockSpec((tm, tn), lambda i, j: (i, j)),
        compiler_params=_cparams(("parallel", "parallel")),
    )(d2, c2, w1, w2, bp, mp)
    return out[:M, :N].reshape(B, T, N)


# ----------------------------------------------------------------------------
# Kernels 4/5: whole RNN recurrence inside one Pallas kernel (grid over time,
# recurrent weights pinned in VMEM, hidden state carried in VMEM scratch)
# ----------------------------------------------------------------------------
def _gru_seq_kernel(xp_ref, whh_ref, bhh_ref, h0_ref, ys_ref, hT_ref, h_scr):
    t = pl.program_id(0)

    @pl.when(t == 0)
    def _():
        h_scr[...] = h0_ref[...]

    h = h_scr[...]                              # (Bp, Hp) f32
    Hp = h.shape[-1]
    gh = jnp.dot(h.astype(jnp.bfloat16), whh_ref[...],
                 preferred_element_type=jnp.float32) + bhh_ref[...]
    xg = xp_ref[0]                              # (Bp, 3Hp) f32 streamed per step
    r = jax.nn.sigmoid(xg[:, :Hp] + gh[:, :Hp])
    z = jax.nn.sigmoid(xg[:, Hp:2 * Hp] + gh[:, Hp:2 * Hp])
    n = jnp.tanh(xg[:, 2 * Hp:] + r * gh[:, 2 * Hp:])
    h_new = (1.0 - z) * n + z * h
    h_scr[...] = h_new
    ys_ref[0] = h_new

    @pl.when(t == pl.num_programs(0) - 1)
    def _():
        hT_ref[...] = h_new


def _lstm_seq_kernel(xp_ref, whh_ref, bhh_ref, h0_ref, c0_ref, pe_ref,
                     ys_ref, hT_ref, h_scr, c_scr):
    t = pl.program_id(0)

    @pl.when(t == 0)
    def _():
        h_scr[...] = h0_ref[...]
        c_scr[...] = c0_ref[...]

    h = h_scr[...]
    c = c_scr[...]
    Hp = h.shape[-1]
    g = (jnp.dot(h.astype(jnp.bfloat16), whh_ref[...],
                 preferred_element_type=jnp.float32)
         + bhh_ref[...] + xp_ref[0])
    i = jax.nn.sigmoid(g[:, :Hp])
    f = jax.nn.sigmoid(g[:, Hp:2 * Hp])
    gg = jnp.tanh(g[:, 2 * Hp:3 * Hp])
    o = jax.nn.sigmoid(g[:, 3 * Hp:])
    c_new = f * c + i * gg
    h_new = o * jnp.tanh(c_new)
    h_scr[...] = h_new
    c_scr[...] = c_new
    ys_ref[0] = h_new + pe_ref[0]               # fused positional-encoding add

    @pl.when(t == pl.num_programs(0) - 1)
    def _():
        hT_ref[...] = h_new                      # returned hidden has no PE


def gru_layer(x, h0, p):
    B, T, _ = x.shape
    H = p["whh"].shape[0]
    Hp = _ru(H, 128)
    Bp = _ru(B, 8)
    wih_g = _pad_gates_w(p["wih"], H, Hp, 3)
    bih_g = _pad_gates_b(p["bih"], H, Hp, 3)
    whh_g = jnp.pad(_pad_gates_w(p["whh"], H, Hp, 3),
                    ((0, Hp - H), (0, 0))).astype(jnp.bfloat16)
    bhh_g = _pad_gates_b(p["bhh"], H, Hp, 3).reshape(1, 3 * Hp).astype(jnp.float32)

    xp = pallas_linear(x, wih_g, bih_g)                     # (B, T, 3Hp) on the MXU
    xp = _pad_to(jnp.swapaxes(xp, 0, 1), (T, Bp, 3 * Hp))   # (T, Bp, 3Hp)
    h0p = _pad_to(h0.astype(jnp.float32), (Bp, Hp))

    ys, hT = pl.pallas_call(
        _gru_seq_kernel,
        out_shape=(jax.ShapeDtypeStruct((T, Bp, Hp), jnp.float32),
                   jax.ShapeDtypeStruct((Bp, Hp), jnp.float32)),
        grid=(T,),
        in_specs=[
            pl.BlockSpec((1, Bp, 3 * Hp), lambda t: (t, 0, 0)),
            pl.BlockSpec((Hp, 3 * Hp), lambda t: (0, 0)),
            pl.BlockSpec((1, 3 * Hp), lambda t: (0, 0)),
            pl.BlockSpec((Bp, Hp), lambda t: (0, 0)),
        ],
        out_specs=(pl.BlockSpec((1, Bp, Hp), lambda t: (t, 0, 0)),
                   pl.BlockSpec((Bp, Hp), lambda t: (0, 0))),
        scratch_shapes=[pltpu.VMEM((Bp, Hp), jnp.float32)],
        compiler_params=_cparams(("arbitrary",)),
    )(xp, whh_g, bhh_g, h0p)
    return jnp.transpose(ys[:, :B, :H], (1, 0, 2)), hT[:B, :H]


def lstm_layer(x, p, pe_scale=None):
    B, T, _ = x.shape
    H = p["whh"].shape[0]
    Hp = _ru(H, 128)
    Bp = _ru(B, 8)
    wih_g = _pad_gates_w(p["wih"], H, Hp, 4)
    bih_g = _pad_gates_b(p["bih"], H, Hp, 4)
    whh_g = jnp.pad(_pad_gates_w(p["whh"], H, Hp, 4),
                    ((0, Hp - H), (0, 0))).astype(jnp.bfloat16)
    bhh_g = _pad_gates_b(p["bhh"], H, Hp, 4).reshape(1, 4 * Hp).astype(jnp.float32)

    xp = pallas_linear(x, wih_g, bih_g)                     # (B, T, 4Hp)
    xp = _pad_to(jnp.swapaxes(xp, 0, 1), (T, Bp, 4 * Hp))
    h0 = jnp.zeros((Bp, Hp), jnp.float32)
    c0 = jnp.zeros((Bp, Hp), jnp.float32)
    if pe_scale is not None:
        pe = pe_scale * positional_encoding(T, H)
        pe = _pad_to(pe, (T, Hp)).reshape(T, 1, Hp)
    else:
        pe = jnp.zeros((T, 1, Hp), jnp.float32)

    ys, hT = pl.pallas_call(
        _lstm_seq_kernel,
        out_shape=(jax.ShapeDtypeStruct((T, Bp, Hp), jnp.float32),
                   jax.ShapeDtypeStruct((Bp, Hp), jnp.float32)),
        grid=(T,),
        in_specs=[
            pl.BlockSpec((1, Bp, 4 * Hp), lambda t: (t, 0, 0)),
            pl.BlockSpec((Hp, 4 * Hp), lambda t: (0, 0)),
            pl.BlockSpec((1, 4 * Hp), lambda t: (0, 0)),
            pl.BlockSpec((Bp, Hp), lambda t: (0, 0)),
            pl.BlockSpec((Bp, Hp), lambda t: (0, 0)),
            pl.BlockSpec((1, 1, Hp), lambda t: (t, 0, 0)),
        ],
        out_specs=(pl.BlockSpec((1, Bp, Hp), lambda t: (t, 0, 0)),
                   pl.BlockSpec((Bp, Hp), lambda t: (0, 0))),
        scratch_shapes=[pltpu.VMEM((Bp, Hp), jnp.float32),
                        pltpu.VMEM((Bp, Hp), jnp.float32)],
        compiler_params=_cparams(("arbitrary",)),
    )(xp, whh_g, bhh_g, h0, c0, pe)
    return jnp.transpose(ys[:, :B, :H], (1, 0, 2)), hT[:B, :H]


def gru_stack(x, h0_stack, layers):
    out = x
    hs = []
    for li, p in enumerate(layers):
        out, hT = gru_layer(out, h0_stack[li], p)
        hs.append(hT)
    return out, jnp.stack(hs)


# ----------------------------------------------------------------------------
# Submodules
# ----------------------------------------------------------------------------
def encoder(x, params, time_scale=None):
    if time_scale is not None:
        # TODO(synk): the PE add stays a single XLA elementwise op; it could be
        # folded into the GRU input projection as (pe @ wih) if needed.
        x = x + float(time_scale) * positional_encoding(x.shape[1], x.shape[2])[None]
    B = x.shape[0]
    H = params["layers"][0]["whh"].shape[0]
    h0 = jnp.zeros((len(params["layers"]), B, H), jnp.float32)
    return gru_stack(x, h0, params["layers"])


def decoder(inputs, input_mask, hidden, enc_outputs, enc_mask, params,
            time_scale=None):
    if time_scale is not None:
        inputs = inputs + float(time_scale) * positional_encoding(
            inputs.shape[1], inputs.shape[2])[None]
    dec_out, hT = gru_stack(inputs, hidden, params["layers"])       # (B,T,H)
    ctx = pallas_attention(dec_out, enc_outputs, enc_mask)          # (B,T,H)
    out = pallas_decoder_out(dec_out, ctx, input_mask,
                             params["w_out"], params["b_out"])      # fused tanh/mask
    return out, hT


# ----------------------------------------------------------------------------
# Parameters
# ----------------------------------------------------------------------------
def init_params(key, e_t, e_a, h, v):
    keys = iter(jax.random.split(key, 64))

    def lin(i, o):
        return (jax.random.normal(next(keys), (i, o), jnp.float32) * 0.1,
                jax.random.normal(next(keys), (o,), jnp.float32) * 0.01)

    def gru_p(i, hsz):
        wih, bih = lin(i, 3 * hsz)
        whh, bhh = lin(hsz, 3 * hsz)
        return dict(wih=wih, bih=bih, whh=whh, bhh=bhh)

    def lstm_p(i, hsz):
        wih, bih = lin(i, 4 * hsz)
        whh, bhh = lin(hsz, 4 * hsz)
        return dict(wih=wih, bih=bih, whh=whh, bhh=bhh)

    params = {}
    params["lightlstm"] = lstm_p(e_a, v)                     # hidden_size = vocab
    params["fix_hidden"] = lin(v, h)
    params["enc_trans"] = dict(layers=[gru_p(e_t, h), gru_p(h, h)])
    w, b = lin(2 * h, v)
    params["dec_t2a"] = dict(layers=[gru_p(v, h), gru_p(h, h)], w_out=w, b_out=b)
    params["enc_audio"] = dict(layers=[gru_p(e_a, h), gru_p(h, h)])
    w2, b2 = lin(2 * h, h)
    params["dec_a2a"] = dict(layers=[gru_p(v, h), gru_p(h, h)], w_out=w2, b_out=b2)
    params["out_chain"] = lin(h, v)
    return params


# ----------------------------------------------------------------------------
# Full forward pass (mode == 'chain')
# ----------------------------------------------------------------------------
def forward(params, features_transcription, mask_transcription,
            features_audio, mask_audio):
    # TODO(synk): the *32768 scale stays one XLA multiply (folding it into the
    # projection weights would interact incorrectly with the encoder's PE add).
    fa = features_audio * 32768.0

    # encoder_audio_initial (LightLSTM) with the pos_encode add fused in-kernel
    encoded_audio, hidden = lstm_layer(fa, params["lightlstm"], pe_scale=1.0)

    w, b = params["fix_hidden"]
    hidden = pallas_linear(hidden, w, b)                               # (B,H)

    # encoder_transcription (time_scale=None)
    enc_trans, h_trans = encoder(features_transcription,
                                 params["enc_trans"], time_scale=None)

    # decoder_transcription_to_audio (time_scale=None)
    out_combined, _ = decoder(encoded_audio, mask_audio,
                              h_trans + hidden[None], enc_trans,
                              mask_transcription, params["dec_t2a"],
                              time_scale=None)                         # (B,Ta,V)

    # encoder_audio (time_scale=1)
    enc_audio_extra, h_audio = encoder(fa, params["enc_audio"], time_scale=1)

    # decoder_audio_to_audio (time_scale=1), then out_chain
    out_audio, _ = decoder(out_combined, mask_audio, h_audio,
                           enc_audio_extra, mask_audio, params["dec_a2a"],
                           time_scale=1)                               # (B,Ta,H)
    w, b = params["out_chain"]
    return pallas_linear(out_audio, w, b)                              # (B,Ta,V)


# ----------------------------------------------------------------------------
# Main
# ----------------------------------------------------------------------------
if __name__ == "__main__":
    B, Tt, Ta = 2, 8, 16
    E_T, E_A, H, V = 16, 24, 32, 16   # transcription emb, audio emb, hidden, vocab

    key = jax.random.PRNGKey(0)
    kp, k1, k2 = jax.random.split(key, 3)
    params = init_params(kp, E_T, E_A, H, V)

    features_transcription = jax.random.normal(k1, (B, Tt, E_T), jnp.float32)
    # scale down so that the in-model *32768 brings it back to O(1)
    features_audio = jax.random.normal(k2, (B, Ta, E_A), jnp.float32) / 32768.0
    mask_transcription = (jnp.arange(Tt)[None, :]
                          < jnp.array([Tt, Tt - 2])[:, None]).astype(jnp.float32)
    mask_audio = (jnp.arange(Ta)[None, :]
                  < jnp.array([Ta, Ta - 3])[:, None]).astype(jnp.float32)

    out = jax.jit(forward)(params, features_transcription, mask_transcription,
                           features_audio, mask_audio)
    out = jax.block_until_ready(out)
    assert out.shape == (B, Ta, V) and out.dtype == jnp.float32
    assert bool(jnp.all(jnp.isfinite(out)))
    print("KERNEL_OK")
</pallas_src>

<mosaic_0001>
module attributes {stable_mosaic.version = 11 : i64} {
  func.func @_linear_kernel(%arg0: i32, %arg1: i32, %arg2: i32, %arg3: memref<16x128xbf16, #tpu.memory_space<vmem>>, %arg4: memref<128x384xbf16, #tpu.memory_space<vmem>>, %arg5: memref<1x384xf32, #tpu.memory_space<vmem>>, %arg6: memref<16x384xf32, #tpu.memory_space<vmem>>, %arg7: memref<16x384xf32, #tpu.memory_space<vmem>>) attributes {dimension_semantics = [#tpu.dimension_semantics<parallel>, #tpu.dimension_semantics<parallel>, #tpu.dimension_semantics<arbitrary>], iteration_bounds = array<i64: 1, 1, 1>, scalar_prefetch = 0 : i64, scratch_operands = 1 : i64, tpu.core_type = #tpu.core_type<tc>, window_params = [{transform_indices = @transform_0, window_bounds = array<i64: 16, 128>}, {transform_indices = @transform_1, window_bounds = array<i64: 128, 384>}, {transform_indices = @transform_2, window_bounds = array<i64: 1, 384>}, {transform_indices = @transform_3, window_bounds = array<i64: 16, 384>}]} {
    %c0_i32 = arith.constant 0 : i32
    %0 = arith.cmpi eq, %arg2, %c0_i32 : i32
    %1 = arith.extui %0 : i1 to i32
    %c0_i32_0 = arith.constant 0 : i32
    %2 = arith.cmpi ne, %1, %c0_i32_0 : i32
    scf.if %2 {
      %cst_10 = arith.constant 0.000000e+00 : f32
      %12 = vector.broadcast %cst_10 : f32 to vector<16x384xf32>
      %c0_11 = arith.constant 0 : index
      %c0_12 = arith.constant 0 : index
      %13 = vector.load %arg7[%c0_11, %c0_12] : memref<16x384xf32, #tpu.memory_space<vmem>>, vector<16x384xf32>
      tpu.vector_store %arg7[%c0_11, %c0_12], %12 {strides = array<i32>} : memref<16x384xf32, #tpu.memory_space<vmem>>, vector<16x384xf32>,
    } else {
    }
    %c0 = arith.constant 0 : index
    %c0_1 = arith.constant 0 : index
    %3 = vector.load %arg7[%c0, %c0_1] : memref<16x384xf32, #tpu.memory_space<vmem>>, vector<16x384xf32>
    %c0_2 = arith.constant 0 : index
    %c0_3 = arith.constant 0 : index
    %4 = vector.load %arg3[%c0_2, %c0_3] : memref<16x128xbf16, #tpu.memory_space<vmem>>, vector<16x128xbf16>
    %c0_4 = arith.constant 0 : index
    %c0_5 = arith.constant 0 : index
    %5 = vector.load %arg4[%c0_4, %c0_5] : memref<128x384xbf16, #tpu.memory_space<vmem>>, vector<128x384xbf16>
    %cst = arith.constant dense<0.000000e+00> : vector<16x384xf32>
    %6 = tpu.matmul %4, %5, %cst {dimension_numbers = #tpu.dot_dimension_numbers<[1], [0], [0], [1], [0, 0, 1, 1], [], []>} : vector<16x128xbf16>, vector<128x384xbf16>, vector<16x384xf32> -> vector<16x384xf32>
    %7 = arith.addf %3, %6 : vector<16x384xf32>
    %c0_6 = arith.constant 0 : index
    %c0_7 = arith.constant 0 : index
    %8 = vector.load %arg7[%c0_6, %c0_7] : memref<16x384xf32, #tpu.memory_space<vmem>>, vector<16x384xf32>
    tpu.vector_store %arg7[%c0_6, %c0_7], %7 {strides = array<i32>} : memref<16x384xf32, #tpu.memory_space<vmem>>, vector<16x384xf32>,
    %c0_i32_8 = arith.constant 0 : i32
    %9 = arith.cmpi eq, %arg2, %c0_i32_8 : i32
    %10 = arith.extui %9 : i1 to i32
    %c0_i32_9 = arith.constant 0 : i32
    %11 = arith.cmpi ne, %10, %c0_i32_9 : i32
    scf.if %11 {
      %c0_10 = arith.constant 0 : index
      %c0_11 = arith.constant 0 : index
      %12 = vector.load %arg7[%c0_10, %c0_11] : memref<16x384xf32, #tpu.memory_space<vmem>>, vector<16x384xf32>
      %c0_12 = arith.constant 0 : index
      %c0_13 = arith.constant 0 : index
      %13 = vector.load %arg5[%c0_12, %c0_13] : memref<1x384xf32, #tpu.memory_space<vmem>>, vector<1x384xf32>
      %14 = vector.broadcast %13 : vector<1x384xf32> to vector<16x384xf32>
      %15 = arith.addf %12, %14 : vector<16x384xf32>
      %c0_14 = arith.constant 0 : index
      %c0_15 = arith.constant 0 : index
      %16 = vector.load %arg6[%c0_14, %c0_15] : memref<16x384xf32, #tpu.memory_space<vmem>>, vector<16x384xf32>
      tpu.vector_store %arg6[%c0_14, %c0_15], %15 {strides = array<i32>} : memref<16x384xf32, #tpu.memory_space<vmem>>, vector<16x384xf32>,
    } else {
    }
    return
  }
  func.func @transform_0(%arg0: i32, %arg1: i32, %arg2: i32) -> (i32, i32) {
    %c0_i32 = arith.constant 0 : i32
    return %arg0, %arg2 : i32, i32
  }
  func.func @transform_1(%arg0: i32, %arg1: i32, %arg2: i32) -> (i32, i32) {
    %c0_i32 = arith.constant 0 : i32
    return %arg2, %arg1 : i32, i32
  }
  func.func @transform_2(%arg0: i32, %arg1: i32, %arg2: i32) -> (i32, i32) {
    %c0_i32 = arith.constant 0 : i32
    %c0_i32_0 = arith.constant 0 : i32
    return %c0_i32, %arg1 : i32, i32
  }
  func.func @transform_3(%arg0: i32, %arg1: i32, %arg2: i32) -> (i32, i32) {
    %c0_i32 = arith.constant 0 : i32
    return %arg0, %arg1 : i32, i32
  }
}

module attributes {stable_mosaic.version = 11 : i64} {
  func.func @_gru_seq_kernel(%arg0: i32, %arg1: memref<1x8x384xf32, #tpu.memory_space<vmem>>, %arg2: memref<128x384xbf16, #tpu.memory_space<vmem>>, %arg3: memref<1x384xf32, #tpu.memory_space<vmem>>, %arg4: memref<8x128xf32, #tpu.memory_space<vmem>>, %arg5: memref<1x8x128xf32, #tpu.memory_space<vmem>>, %arg6: memref<8x128xf32, #tpu.memory_space<vmem>>, %arg7: memref<8x128xf32, #tpu.memory_space<vmem>>) attributes {dimension_semantics = [#tpu.dimension_semantics<arbitrary>], iteration_bounds = array<i64: 8>, scalar_prefetch = 0 : i64, scratch_operands = 1 : i64, tpu.core_type = #tpu.core_type<tc>, window_params = [{transform_indices = @transform_0, window_bounds = array<i64: 1, 8, 384>}, {pipeline_mode = #tpu.pipeline_mode<synchronous>, transform_indices = @transform_1, window_bounds = array<i64: 128, 384>}, {pipeline_mode = #tpu.pipeline_mode<synchronous>, transform_indices = @transform_2, window_bounds = array<i64: 1, 384>}, {pipeline_mode = #tpu.pipeline_mode<synchronous>, transform_indices = @transform_3, window_bounds = array<i64: 8, 128>}, {transform_indices = @transform_4, window_bounds = array<i64: 1, 8, 128>}, {pipeline_mode = #tpu.pipeline_mode<synchronous>, transform_indices = @transform_5, window_bounds = array<i64: 8, 128>}]} {
    %c0_i32 = arith.constant 0 : i32
    %0 = arith.cmpi eq, %arg0, %c0_i32 : i32
    %1 = arith.extui %0 : i1 to i32
    %c0_i32_0 = arith.constant 0 : i32
    %2 = arith.cmpi ne, %1, %c0_i32_0 : i32
    scf.if %2 {
      %c0_18 = arith.constant 0 : index
      %c0_19 = arith.constant 0 : index
      %45 = vector.load %arg4[%c0_18, %c0_19] : memref<8x128xf32, #tpu.memory_space<vmem>>, vector<8x128xf32>
      %c0_20 = arith.constant 0 : index
      %c0_21 = arith.constant 0 : index
      %46 = vector.load %arg7[%c0_20, %c0_21] : memref<8x128xf32, #tpu.memory_space<vmem>>, vector<8x128xf32>
      tpu.vector_store %arg7[%c0_20, %c0_21], %45 {strides = array<i32>} : memref<8x128xf32, #tpu.memory_space<vmem>>, vector<8x128xf32>,
    } else {
    }
    %c0 = arith.constant 0 : index
    %c0_1 = arith.constant 0 : index
    %3 = vector.load %arg7[%c0, %c0_1] : memref<8x128xf32, #tpu.memory_space<vmem>>, vector<8x128xf32>
    %4 = arith.truncf %3 : vector<8x128xf32> to vector<8x128xbf16>
    %c0_2 = arith.constant 0 : index
    %c0_3 = arith.constant 0 : index
    %5 = vector.load %arg2[%c0_2, %c0_3] : memref<128x384xbf16, #tpu.memory_space<vmem>>, vector<128x384xbf16>
    %cst = arith.constant dense<0.000000e+00> : vector<8x384xf32>
    %6 = tpu.matmul %4, %5, %cst {dimension_numbers = #tpu.dot_dimension_numbers<[1], [0], [0], [1], [0, 0, 1, 1], [], []>} : vector<8x128xbf16>, vector<128x384xbf16>, vector<8x384xf32> -> vector<8x384xf32>
    %c0_4 = arith.constant 0 : index
    %c0_5 = arith.constant 0 : index
    %7 = vector.load %arg3[%c0_4, %c0_5] : memref<1x384xf32, #tpu.memory_space<vmem>>, vector<1x384xf32>
    %8 = vector.broadcast %7 : vector<1x384xf32> to vector<8x384xf32>
    %9 = arith.addf %6, %8 : vector<8x384xf32>
    %c0_6 = arith.constant 0 : index
    %c0_7 = arith.constant 0 : index
    %c0_8 = arith.constant 0 : index
    %10 = vector.load %arg1[%c0_6, %c0_7, %c0_8] : memref<1x8x384xf32, #tpu.memory_space<vmem>>, vector<1x8x384xf32>
    %11 = vector.shape_cast %10 : vector<1x8x384xf32> to vector<8x384xf32>
    %12 = vector.extract_strided_slice %11 {offsets = [0, 0], sizes = [8, 128], strides = [1, 1]} : vector<8x384xf32> to vector<8x128xf32>
    %13 = vector.extract_strided_slice %9 {offsets = [0, 0], sizes = [8, 128], strides = [1, 1]} : vector<8x384xf32> to vector<8x128xf32>
    %14 = arith.addf %12, %13 : vector<8x128xf32>
    %15 = arith.negf %14 : vector<8x128xf32>
    %16 = math.exp %15 : vector<8x128xf32>
    %cst_9 = arith.constant 1.000000e+00 : f32
    %17 = vector.broadcast %cst_9 : f32 to vector<8x128xf32>
    %18 = arith.addf %17, %16 : vector<8x128xf32>
    %19 = arith.divf %17, %18 : vector<8x128xf32>
    %20 = vector.extract_strided_slice %11 {offsets = [0, 128], sizes = [8, 128], strides = [1, 1]} : vector<8x384xf32> to vector<8x128xf32>
    %21 = vector.extract_strided_slice %9 {offsets = [0, 128], sizes = [8, 128], strides = [1, 1]} : vector<8x384xf32> to vector<8x128xf32>
    %22 = arith.addf %20, %21 : vector<8x128xf32>
    %23 = arith.negf %22 : vector<8x128xf32>
    %24 = math.exp %23 : vector<8x128xf32>
    %cst_10 = arith.constant 1.000000e+00 : f32
    %25 = vector.broadcast %cst_10 : f32 to vector<8x128xf32>
    %26 = arith.addf %25, %24 : vector<8x128xf32>
    %27 = arith.divf %25, %26 : vector<8x128xf32>
    %28 = vector.extract_strided_slice %11 {offsets = [0, 256], sizes = [8, 128], strides = [1, 1]} : vector<8x384xf32> to vector<8x128xf32>
    %29 = vector.extract_strided_slice %9 {offsets = [0, 256], sizes = [8, 128], strides = [1, 1]} : vector<8x384xf32> to vector<8x128xf32>
    %30 = arith.mulf %19, %29 : vector<8x128xf32>
    %31 = arith.addf %28, %30 : vector<8x128xf32>
    %32 = math.tanh %31 : vector<8x128xf32>
    %cst_11 = arith.constant 1.000000e+00 : f32
    %33 = vector.broadcast %cst_11 : f32 to vector<8x128xf32>
    %34 = arith.subf %33, %27 : vector<8x128xf32>
    %35 = arith.mulf %34, %32 : vector<8x128xf32>
    %36 = arith.mulf %27, %3 : vector<8x128xf32>
    %37 = arith.addf %35, %36 : vector<8x128xf32>
    %c0_12 = arith.constant 0 : index
    %c0_13 = arith.constant 0 : index
    %38 = vector.load %arg7[%c0_12, %c0_13] : memref<8x128xf32, #tpu.memory_space<vmem>>, vector<8x128xf32>
    tpu.vector_store %arg7[%c0_12, %c0_13], %37 {strides = array<i32>} : memref<8x128xf32, #tpu.memory_space<vmem>>, vector<8x128xf32>,
    %c0_14 = arith.constant 0 : index
    %c0_15 = arith.constant 0 : index
    %c0_16 = arith.constant 0 : index
    %39 = vector.load %arg5[%c0_14, %c0_15, %c0_16] : memref<1x8x128xf32, #tpu.memory_space<vmem>>, vector<1x8x128xf32>
    %40 = vector.shape_cast %39 : vector<1x8x128xf32> to vector<8x128xf32>
    %41 = vector.shape_cast %37 : vector<8x128xf32> to vector<1x8x128xf32>
    tpu.vector_store %arg5[%c0_14, %c0_15, %c0_16], %41 {strides = array<i32>} : memref<1x8x128xf32, #tpu.memory_space<vmem>>, vector<1x8x128xf32>,
    %c7_i32 = arith.constant 7 : i32
    %42 = arith.cmpi eq, %arg0, %c7_i32 : i32
    %43 = arith.extui %42 : i1 to i32
    %c0_i32_17 = arith.constant 0 : i32
    %44 = arith.cmpi ne, %43, %c0_i32_17 : i32
    scf.if %44 {
      %c0_18 = arith.constant 0 : index
      %c0_19 = arith.constant 0 : index
      %45 = vector.load %arg6[%c0_18, %c0_19] : memref<8x128xf32, #tpu.memory_space<vmem>>, vector<8x128xf32>
      tpu.vector_store %arg6[%c0_18, %c0_19], %37 {strides = array<i32>} : memref<8x128xf32, #tpu.memory_space<vmem>>, vector<8x128xf32>,
    } else {
    }
    return
  }
  func.func @transform_0(%arg0: i32) -> (i32, i32, i32) {
    %c0_i32 = arith.constant 0 : i32
    %c0_i32_0 = arith.constant 0 : i32
    %c0_i32_1 = arith.constant 0 : i32
    return %arg0, %c0_i32, %c0_i32_0 : i32, i32, i32
  }
  func.func @transform_1(%arg0: i32) -> (i32, i32) {
    %c0_i32 = arith.constant 0 : i32
    %c0_i32_0 = arith.constant 0 : i32
    %c0_i32_1 = arith.constant 0 : i32
    return %c0_i32, %c0_i32_0 : i32, i32
  }
  func.func @transform_2(%arg0: i32) -> (i32, i32) {
    %c0_i32 = arith.constant 0 : i32
    %c0_i32_0 = arith.constant 0 : i32
    %c0_i32_1 = arith.constant 0 : i32
    return %c0_i32, %c0_i32_0 : i32, i32
  }
  func.func @transform_3(%arg0: i32) -> (i32, i32) {
    %c0_i32 = arith.constant 0 : i32
    %c0_i32_0 = arith.constant 0 : i32
    %c0_i32_1 = arith.constant 0 : i32
    return %c0_i32, %c0_i32_0 : i32, i32
  }
  func.func @transform_4(%arg0: i32) -> (i32, i32, i32) {
    %c0_i32 = arith.constant 0 : i32
    %c0_i32_0 = arith.constant 0 : i32
    %c0_i32_1 = arith.constant 0 : i32
    return %arg0, %c0_i32, %c0_i32_0 : i32, i32, i32
  }
  func.func @transform_5(%arg0: i32) -> (i32, i32) {
    %c0_i32 = arith.constant 0 : i32
    %c0_i32_0 = arith.constant 0 : i32
    %c0_i32_1 = arith.constant 0 : i32
    return %c0_i32, %c0_i32_0 : i32, i32
  }
}

module attributes {stable_mosaic.version = 11 : i64} {
  func.func @_linear_kernel(%arg0: i32, %arg1: i32, %arg2: i32, %arg3: memref<32x128xbf16, #tpu.memory_space<vmem>>, %arg4: memref<128x512xbf16, #tpu.memory_space<vmem>>, %arg5: memref<1x512xf32, #tpu.memory_space<vmem>>, %arg6: memref<32x512xf32, #tpu.memory_space<vmem>>, %arg7: memref<32x512xf32, #tpu.memory_space<vmem>>) attributes {dimension_semantics = [#tpu.dimension_semantics<parallel>, #tpu.dimension_semantics<parallel>, #tpu.dimension_semantics<arbitrary>], iteration_bounds = array<i64: 1, 1, 1>, scalar_prefetch = 0 : i64, scratch_operands = 1 : i64, tpu.core_type = #tpu.core_type<tc>, window_params = [{transform_indices = @transform_0, window_bounds = array<i64: 32, 128>}, {transform_indices = @transform_1, window_bounds = array<i64: 128, 512>}, {transform_indices = @transform_2, window_bounds = array<i64: 1, 512>}, {transform_indices = @transform_3, window_bounds = array<i64: 32, 512>}]} {
    %c0_i32 = arith.constant 0 : i32
    %0 = arith.cmpi eq, %arg2, %c0_i32 : i32
    %1 = arith.extui %0 : i1 to i32
    %c0_i32_0 = arith.constant 0 : i32
    %2 = arith.cmpi ne, %1, %c0_i32_0 : i32
    scf.if %2 {
      %cst_10 = arith.constant 0.000000e+00 : f32
      %12 = vector.broadcast %cst_10 : f32 to vector<32x512xf32>
      %c0_11 = arith.constant 0 : index
      %c0_12 = arith.constant 0 : index
      %13 = vector.load %arg7[%c0_11, %c0_12] : memref<32x512xf32, #tpu.memory_space<vmem>>, vector<32x512xf32>
      tpu.vector_store %arg7[%c0_11, %c0_12], %12 {strides = array<i32>} : memref<32x512xf32, #tpu.memory_space<vmem>>, vector<32x512xf32>,
    } else {
    }
    %c0 = arith.constant 0 : index
    %c0_1 = arith.constant 0 : index
    %3 = vector.load %arg7[%c0, %c0_1] : memref<32x512xf32, #tpu.memory_space<vmem>>, vector<32x512xf32>
    %c0_2 = arith.constant 0 : index
    %c0_3 = arith.constant 0 : index
    %4 = vector.load %arg3[%c0_2, %c0_3] : memref<32x128xbf16, #tpu.memory_space<vmem>>, vector<32x128xbf16>
    %c0_4 = arith.constant 0 : index
    %c0_5 = arith.constant 0 : index
    %5 = vector.load %arg4[%c0_4, %c0_5] : memref<128x512xbf16, #tpu.memory_space<vmem>>, vector<128x512xbf16>
    %cst = arith.constant dense<0.000000e+00> : vector<32x512xf32>
    %6 = tpu.matmul %4, %5, %cst {dimension_numbers = #tpu.dot_dimension_numbers<[1], [0], [0], [1], [0, 0, 1, 1], [], []>} : vector<32x128xbf16>, vector<128x512xbf16>, vector<32x512xf32> -> vector<32x512xf32>
    %7 = arith.addf %3, %6 : vector<32x512xf32>
    %c0_6 = arith.constant 0 : index
    %c0_7 = arith.constant 0 : index
    %8 = vector.load %arg7[%c0_6, %c0_7] : memref<32x512xf32, #tpu.memory_space<vmem>>, vector<32x512xf32>
    tpu.vector_store %arg7[%c0_6, %c0_7], %7 {strides = array<i32>} : memref<32x512xf32, #tpu.memory_space<vmem>>, vector<32x512xf32>,
    %c0_i32_8 = arith.constant 0 : i32
    %9 = arith.cmpi eq, %arg2, %c0_i32_8 : i32
    %10 = arith.extui %9 : i1 to i32
    %c0_i32_9 = arith.constant 0 : i32
    %11 = arith.cmpi ne, %10, %c0_i32_9 : i32
    scf.if %11 {
      %c0_10 = arith.constant 0 : index
      %c0_11 = arith.constant 0 : index
      %12 = vector.load %arg7[%c0_10, %c0_11] : memref<32x512xf32, #tpu.memory_space<vmem>>, vector<32x512xf32>
      %c0_12 = arith.constant 0 : index
      %c0_13 = arith.constant 0 : index
      %13 = vector.load %arg5[%c0_12, %c0_13] : memref<1x512xf32, #tpu.memory_space<vmem>>, vector<1x512xf32>
      %14 = vector.broadcast %13 : vector<1x512xf32> to vector<32x512xf32>
      %15 = arith.addf %12, %14 : vector<32x512xf32>
      %c0_14 = arith.constant 0 : index
      %c0_15 = arith.constant 0 : index
      %16 = vector.load %arg6[%c0_14, %c0_15] : memref<32x512xf32, #tpu.memory_space<vmem>>, vector<32x512xf32>
      tpu.vector_store %arg6[%c0_14, %c0_15], %15 {strides = array<i32>} : memref<32x512xf32, #tpu.memory_space<vmem>>, vector<32x512xf32>,
    } else {
    }
    return
  }
  func.func @transform_0(%arg0: i32, %arg1: i32, %arg2: i32) -> (i32, i32) {
    %c0_i32 = arith.constant 0 : i32
    return %arg0, %arg2 : i32, i32
  }
  func.func @transform_1(%arg0: i32, %arg1: i32, %arg2: i32) -> (i32, i32) {
    %c0_i32 = arith.constant 0 : i32
    return %arg2, %arg1 : i32, i32
  }
  func.func @transform_2(%arg0: i32, %arg1: i32, %arg2: i32) -> (i32, i32) {
    %c0_i32 = arith.constant 0 : i32
    %c0_i32_0 = arith.constant 0 : i32
    return %c0_i32, %arg1 : i32, i32
  }
  func.func @transform_3(%arg0: i32, %arg1: i32, %arg2: i32) -> (i32, i32) {
    %c0_i32 = arith.constant 0 : i32
    return %arg0, %arg1 : i32, i32
  }
}

module attributes {stable_mosaic.version = 11 : i64} {
  func.func @_lstm_seq_kernel(%arg0: i32, %arg1: memref<1x8x512xf32, #tpu.memory_space<vmem>>, %arg2: memref<128x512xbf16, #tpu.memory_space<vmem>>, %arg3: memref<1x512xf32, #tpu.memory_space<vmem>>, %arg4: memref<8x128xf32, #tpu.memory_space<vmem>>, %arg5: memref<8x128xf32, #tpu.memory_space<vmem>>, %arg6: memref<1x1x128xf32, #tpu.memory_space<vmem>>, %arg7: memref<1x8x128xf32, #tpu.memory_space<vmem>>, %arg8: memref<8x128xf32, #tpu.memory_space<vmem>>, %arg9: memref<8x128xf32, #tpu.memory_space<vmem>>, %arg10: memref<8x128xf32, #tpu.memory_space<vmem>>) attributes {dimension_semantics = [#tpu.dimension_semantics<arbitrary>], iteration_bounds = array<i64: 16>, scalar_prefetch = 0 : i64, scratch_operands = 2 : i64, tpu.core_type = #tpu.core_type<tc>, window_params = [{transform_indices = @transform_0, window_bounds = array<i64: 1, 8, 512>}, {pipeline_mode = #tpu.pipeline_mode<synchronous>, transform_indices = @transform_1, window_bounds = array<i64: 128, 512>}, {pipeline_mode = #tpu.pipeline_mode<synchronous>, transform_indices = @transform_2, window_bounds = array<i64: 1, 512>}, {pipeline_mode = #tpu.pipeline_mode<synchronous>, transform_indices = @transform_3, window_bounds = array<i64: 8, 128>}, {pipeline_mode = #tpu.pipeline_mode<synchronous>, transform_indices = @transform_4, window_bounds = array<i64: 8, 128>}, {transform_indices = @transform_5, window_bounds = array<i64: 1, 1, 128>}, {transform_indices = @transform_6, window_bounds = array<i64: 1, 8, 128>}, {pipeline_mode = #tpu.pipeline_mode<synchronous>, transform_indices = @transform_7, window_bounds = array<i64: 8, 128>}]} {
    %c0_i32 = arith.constant 0 : i32
    %0 = arith.cmpi eq, %arg0, %c0_i32 : i32
    %1 = arith.extui %0 : i1 to i32
    %c0_i32_0 = arith.constant 0 : i32
    %2 = arith.cmpi ne, %1, %c0_i32_0 : i32
    scf.if %2 {
      %c0_25 = arith.constant 0 : index
      %c0_26 = arith.constant 0 : index
      %51 = vector.load %arg4[%c0_25, %c0_26] : memref<8x128xf32, #tpu.memory_space<vmem>>, vector<8x128xf32>
      %c0_27 = arith.constant 0 : index
      %c0_28 = arith.constant 0 : index
      %52 = vector.load %arg9[%c0_27, %c0_28] : memref<8x128xf32, #tpu.memory_space<vmem>>, vector<8x128xf32>
      tpu.vector_store %arg9[%c0_27, %c0_28], %51 {strides = array<i32>} : memref<8x128xf32, #tpu.memory_space<vmem>>, vector<8x128xf32>,
      %c0_29 = arith.constant 0 : index
      %c0_30 = arith.constant 0 : index
      %53 = vector.load %arg5[%c0_29, %c0_30] : memref<8x128xf32, #tpu.memory_space<vmem>>, vector<8x128xf32>
      %c0_31 = arith.constant 0 : index
      %c0_32 = arith.constant 0 : index
      %54 = vector.load %arg10[%c0_31, %c0_32] : memref<8x128xf32, #tpu.memory_space<vmem>>, vector<8x128xf32>
      tpu.vector_store %arg10[%c0_31, %c0_32], %53 {strides = array<i32>} : memref<8x128xf32, #tpu.memory_space<vmem>>, vector<8x128xf32>,
    } else {
    }
    %c0 = arith.constant 0 : index
    %c0_1 = arith.constant 0 : index
    %3 = vector.load %arg9[%c0, %c0_1] : memref<8x128xf32, #tpu.memory_space<vmem>>, vector<8x128xf32>
    %c0_2 = arith.constant 0 : index
    %c0_3 = arith.constant 0 : index
    %4 = vector.load %arg10[%c0_2, %c0_3] : memref<8x128xf32, #tpu.memory_space<vmem>>, vector<8x128xf32>
    %5 = arith.truncf %3 : vector<8x128xf32> to vector<8x128xbf16>
    %c0_4 = arith.constant 0 : index
    %c0_5 = arith.constant 0 : index
    %6 = vector.load %arg2[%c0_4, %c0_5] : memref<128x512xbf16, #tpu.memory_space<vmem>>, vector<128x512xbf16>
    %cst = arith.constant dense<0.000000e+00> : vector<8x512xf32>
    %7 = tpu.matmul %5, %6, %cst {dimension_numbers = #tpu.dot_dimension_numbers<[1], [0], [0], [1], [0, 0, 1, 1], [], []>} : vector<8x128xbf16>, vector<128x512xbf16>, vector<8x512xf32> -> vector<8x512xf32>
    %c0_6 = arith.constant 0 : index
    %c0_7 = arith.constant 0 : index
    %8 = vector.load %arg3[%c0_6, %c0_7] : memref<1x512xf32, #tpu.memory_space<vmem>>, vector<1x512xf32>
    %9 = vector.broadcast %8 : vector<1x512xf32> to vector<8x512xf32>
    %10 = arith.addf %7, %9 : vector<8x512xf32>
    %c0_8 = arith.constant 0 : index
    %c0_9 = arith.constant 0 : index
    %c0_10 = arith.constant 0 : index
    %11 = vector.load %arg1[%c0_8, %c0_9, %c0_10] : memref<1x8x512xf32, #tpu.memory_space<vmem>>, vector<1x8x512xf32>
    %12 = vector.shape_cast %11 : vector<1x8x512xf32> to vector<8x512xf32>
    %13 = arith.addf %10, %12 : vector<8x512xf32>
    %14 = vector.extract_strided_slice %13 {offsets = [0, 0], sizes = [8, 128], strides = [1, 1]} : vector<8x512xf32> to vector<8x128xf32>
    %15 = arith.negf %14 : vector<8x128xf32>
    %16 = math.exp %15 : vector<8x128xf32>
    %cst_11 = arith.constant 1.000000e+00 : f32
    %17 = vector.broadcast %cst_11 : f32 to vector<8x128xf32>
    %18 = arith.addf %17, %16 : vector<8x128xf32>
    %19 = arith.divf %17, %18 : vector<8x128xf32>
    %20 = vector.extract_strided_slice %13 {offsets = [0, 128], sizes = [8, 128], strides = [1, 1]} : vector<8x512xf32> to vector<8x128xf32>
    %21 = arith.negf %20 : vector<8x128xf32>
    %22 = math.exp %21 : vector<8x128xf32>
    %cst_12 = arith.constant 1.000000e+00 : f32
    %23 = vector.broadcast %cst_12 : f32 to vector<8x128xf32>
    %24 = arith.addf %23, %22 : vector<8x128xf32>
    %25 = arith.divf %23, %24 : vector<8x128xf32>
    %26 = vector.extract_strided_slice %13 {offsets = [0, 256], sizes = [8, 128], strides = [1, 1]} : vector<8x512xf32> to vector<8x128xf32>
    %27 = math.tanh %26 : vector<8x128xf32>
    %28 = vector.extract_strided_slice %13 {offsets = [0, 384], sizes = [8, 128], strides = [1, 1]} : vector<8x512xf32> to vector<8x128xf32>
    %29 = arith.negf %28 : vector<8x128xf32>
    %30 = math.exp %29 : vector<8x128xf32>
    %cst_13 = arith.constant 1.000000e+00 : f32
    %31 = vector.broadcast %cst_13 : f32 to vector<8x128xf32>
    %32 = arith.addf %31, %30 : vector<8x128xf32>
    %33 = arith.divf %31, %32 : vector<8x128xf32>
    %34 = arith.mulf %25, %4 : vector<8x128xf32>
    %35 = arith.mulf %19, %27 : vector<8x128xf32>
    %36 = arith.addf %34, %35 : vector<8x128xf32>
    %37 = math.tanh %36 : vector<8x128xf32>
    %38 = arith.mulf %33, %37 : vector<8x128xf32>
    %c0_14 = arith.constant 0 : index
    %c0_15 = arith.constant 0 : index
    %39 = vector.load %arg9[%c0_14, %c0_15] : memref<8x128xf32, #tpu.memory_space<vmem>>, vector<8x128xf32>
    tpu.vector_store %arg9[%c0_14, %c0_15], %38 {strides = array<i32>} : memref<8x128xf32, #tpu.memory_space<vmem>>, vector<8x128xf32>,
    %c0_16 = arith.constant 0 : index
    %c0_17 = arith.constant 0 : index
    %40 = vector.load %arg10[%c0_16, %c0_17] : memref<8x128xf32, #tpu.memory_space<vmem>>, vector<8x128xf32>
    tpu.vector_store %arg10[%c0_16, %c0_17], %36 {strides = array<i32>} : memref<8x128xf32, #tpu.memory_space<vmem>>, vector<8x128xf32>,
    %c0_18 = arith.constant 0 : index
    %c0_19 = arith.constant 0 : index
    %c0_20 = arith.constant 0 : index
    %41 = vector.load %arg6[%c0_18, %c0_19, %c0_20] : memref<1x1x128xf32, #tpu.memory_space<vmem>>, vector<1x1x128xf32>
    %42 = vector.shape_cast %41 : vector<1x1x128xf32> to vector<1x128xf32>
    %43 = vector.broadcast %42 : vector<1x128xf32> to vector<8x128xf32>
    %44 = arith.addf %38, %43 : vector<8x128xf32>
    %c0_21 = arith.constant 0 : index
    %c0_22 = arith.constant 0 : index
    %c0_23 = arith.constant 0 : index
    %45 = vector.load %arg7[%c0_21, %c0_22, %c0_23] : memref<1x8x128xf32, #tpu.memory_space<vmem>>, vector<1x8x128xf32>
    %46 = vector.shape_cast %45 : vector<1x8x128xf32> to vector<8x128xf32>
    %47 = vector.shape_cast %44 : vector<8x128xf32> to vector<1x8x128xf32>
    tpu.vector_store %arg7[%c0_21, %c0_22, %c0_23], %47 {strides = array<i32>} : memref<1x8x128xf32, #tpu.memory_space<vmem>>, vector<1x8x128xf32>,
    %c15_i32 = arith.constant 15 : i32
    %48 = arith.cmpi eq, %arg0, %c15_i32 : i32
    %49 = arith.extui %48 : i1 to i32
    %c0_i32_24 = arith.constant 0 : i32
    %50 = arith.cmpi ne, %49, %c0_i32_24 : i32
    scf.if %50 {
      %c0_25 = arith.constant 0 : index
      %c0_26 = arith.constant 0 : index
      %51 = vector.load %arg8[%c0_25, %c0_26] : memref<8x128xf32, #tpu.memory_space<vmem>>, vector<8x128xf32>
      tpu.vector_store %arg8[%c0_25, %c0_26], %38 {strides = array<i32>} : memref<8x128xf32, #tpu.memory_space<vmem>>, vector<8x128xf32>,
    } else {
    }
    return
  }
  func.func @transform_0(%arg0: i32) -> (i32, i32, i32) {
    %c0_i32 = arith.constant 0 : i32
    %c0_i32_0 = arith.constant 0 : i32
    %c0_i32_1 = arith.constant 0 : i32
    return %arg0, %c0_i32, %c0_i32_0 : i32, i32, i32
  }
  func.func @transform_1(%arg0: i32) -> (i32, i32) {
    %c0_i32 = arith.constant 0 : i32
    %c0_i32_0 = arith.constant 0 : i32
    %c0_i32_1 = arith.constant 0 : i32
    return %c0_i32, %c0_i32_0 : i32, i32
  }
  func.func @transform_2(%arg0: i32) -> (i32, i32) {
    %c0_i32 = arith.constant 0 : i32
    %c0_i32_0 = arith.constant 0 : i32
    %c0_i32_1 = arith.constant 0 : i32
    return %c0_i32, %c0_i32_0 : i32, i32
  }
  func.func @transform_3(%arg0: i32) -> (i32, i32) {
    %c0_i32 = arith.constant 0 : i32
    %c0_i32_0 = arith.constant 0 : i32
    %c0_i32_1 = arith.constant 0 : i32
    return %c0_i32, %c0_i32_0 : i32, i32
  }
  func.func @transform_4(%arg0: i32) -> (i32, i32) {
    %c0_i32 = arith.constant 0 : i32
    %c0_i32_0 = arith.constant 0 : i32
    %c0_i32_1 = arith.constant 0 : i32
    return %c0_i32, %c0_i32_0 : i32, i32
  }
  func.func @transform_5(%arg0: i32) -> (i32, i32, i32) {
    %c0_i32 = arith.constant 0 : i32
    %c0_i32_0 = arith.constant 0 : i32
    %c0_i32_1 = arith.constant 0 : i32
    return %arg0, %c0_i32, %c0_i32_0 : i32, i32, i32
  }
  func.func @transform_6(%arg0: i32) -> (i32, i32, i32) {
    %c0_i32 = arith.constant 0 : i32
    %c0_i32_0 = arith.constant 0 : i32
    %c0_i32_1 = arith.constant 0 : i32
    return %arg0, %c0_i32, %c0_i32_0 : i32, i32, i32
  }
  func.func @transform_7(%arg0: i32) -> (i32, i32) {
    %c0_i32 = arith.constant 0 : i32
    %c0_i32_0 = arith.constant 0 : i32
    %c0_i32_1 = arith.constant 0 : i32
    return %c0_i32, %c0_i32_0 : i32, i32
  }
}

module attributes {stable_mosaic.version = 11 : i64} {
  func.func @_linear_kernel(%arg0: i32, %arg1: i32, %arg2: i32, %arg3: memref<16x128xbf16, #tpu.memory_space<vmem>>, %arg4: memref<128x128xbf16, #tpu.memory_space<vmem>>, %arg5: memref<1x128xf32, #tpu.memory_space<vmem>>, %arg6: memref<16x128xf32, #tpu.memory_space<vmem>>, %arg7: memref<16x128xf32, #tpu.memory_space<vmem>>) attributes {dimension_semantics = [#tpu.dimension_semantics<parallel>, #tpu.dimension_semantics<parallel>, #tpu.dimension_semantics<arbitrary>], iteration_bounds = array<i64: 1, 1, 1>, scalar_prefetch = 0 : i64, scratch_operands = 1 : i64, tpu.core_type = #tpu.core_type<tc>, window_params = [{transform_indices = @transform_0, window_bounds = array<i64: 16, 128>}, {transform_indices = @transform_1, window_bounds = array<i64: 128, 128>}, {transform_indices = @transform_2, window_bounds = array<i64: 1, 128>}, {transform_indices = @transform_3, window_bounds = array<i64: 16, 128>}]} {
    %c0_i32 = arith.constant 0 : i32
    %0 = arith.cmpi eq, %arg2, %c0_i32 : i32
    %1 = arith.extui %0 : i1 to i32
    %c0_i32_0 = arith.constant 0 : i32
    %2 = arith.cmpi ne, %1, %c0_i32_0 : i32
    scf.if %2 {
      %cst_10 = arith.constant 0.000000e+00 : f32
      %12 = vector.broadcast %cst_10 : f32 to vector<16x128xf32>
      %c0_11 = arith.constant 0 : index
      %c0_12 = arith.constant 0 : index
      %13 = vector.load %arg7[%c0_11, %c0_12] : memref<16x128xf32, #tpu.memory_space<vmem>>, vector<16x128xf32>
      tpu.vector_store %arg7[%c0_11, %c0_12], %12 {strides = array<i32>} : memref<16x128xf32, #tpu.memory_space<vmem>>, vector<16x128xf32>,
    } else {
    }
    %c0 = arith.constant 0 : index
    %c0_1 = arith.constant 0 : index
    %3 = vector.load %arg7[%c0, %c0_1] : memref<16x128xf32, #tpu.memory_space<vmem>>, vector<16x128xf32>
    %c0_2 = arith.constant 0 : index
    %c0_3 = arith.constant 0 : index
    %4 = vector.load %arg3[%c0_2, %c0_3] : memref<16x128xbf16, #tpu.memory_space<vmem>>, vector<16x128xbf16>
    %c0_4 = arith.constant 0 : index
    %c0_5 = arith.constant 0 : index
    %5 = vector.load %arg4[%c0_4, %c0_5] : memref<128x128xbf16, #tpu.memory_space<vmem>>, vector<128x128xbf16>
    %cst = arith.constant dense<0.000000e+00> : vector<16x128xf32>
    %6 = tpu.matmul %4, %5, %cst {dimension_numbers = #tpu.dot_dimension_numbers<[1], [0], [0], [1], [0, 0, 1, 1], [], []>} : vector<16x128xbf16>, vector<128x128xbf16>, vector<16x128xf32> -> vector<16x128xf32>
    %7 = arith.addf %3, %6 : vector<16x128xf32>
    %c0_6 = arith.constant 0 : index
    %c0_7 = arith.constant 0 : index
    %8 = vector.load %arg7[%c0_6, %c0_7] : memref<16x128xf32, #tpu.memory_space<vmem>>, vector<16x128xf32>
    tpu.vector_store %arg7[%c0_6, %c0_7], %7 {strides = array<i32>} : memref<16x128xf32, #tpu.memory_space<vmem>>, vector<16x128xf32>,
    %c0_i32_8 = arith.constant 0 : i32
    %9 = arith.cmpi eq, %arg2, %c0_i32_8 : i32
    %10 = arith.extui %9 : i1 to i32
    %c0_i32_9 = arith.constant 0 : i32
    %11 = arith.cmpi ne, %10, %c0_i32_9 : i32
    scf.if %11 {
      %c0_10 = arith.constant 0 : index
      %c0_11 = arith.constant 0 : index
      %12 = vector.load %arg7[%c0_10, %c0_11] : memref<16x128xf32, #tpu.memory_space<vmem>>, vector<16x128xf32>
      %c0_12 = arith.constant 0 : index
      %c0_13 = arith.constant 0 : index
      %13 = vector.load %arg5[%c0_12, %c0_13] : memref<1x128xf32, #tpu.memory_space<vmem>>, vector<1x128xf32>
      %14 = vector.broadcast %13 : vector<1x128xf32> to vector<16x128xf32>
      %15 = arith.addf %12, %14 : vector<16x128xf32>
      %c0_14 = arith.constant 0 : index
      %c0_15 = arith.constant 0 : index
      %16 = vector.load %arg6[%c0_14, %c0_15] : memref<16x128xf32, #tpu.memory_space<vmem>>, vector<16x128xf32>
      tpu.vector_store %arg6[%c0_14, %c0_15], %15 {strides = array<i32>} : memref<16x128xf32, #tpu.memory_space<vmem>>, vector<16x128xf32>,
    } else {
    }
    return
  }
  func.func @transform_0(%arg0: i32, %arg1: i32, %arg2: i32) -> (i32, i32) {
    %c0_i32 = arith.constant 0 : i32
    return %arg0, %arg2 : i32, i32
  }
  func.func @transform_1(%arg0: i32, %arg1: i32, %arg2: i32) -> (i32, i32) {
    %c0_i32 = arith.constant 0 : i32
    return %arg2, %arg1 : i32, i32
  }
  func.func @transform_2(%arg0: i32, %arg1: i32, %arg2: i32) -> (i32, i32) {
    %c0_i32 = arith.constant 0 : i32
    %c0_i32_0 = arith.constant 0 : i32
    return %c0_i32, %arg1 : i32, i32
  }
  func.func @transform_3(%arg0: i32, %arg1: i32, %arg2: i32) -> (i32, i32) {
    %c0_i32 = arith.constant 0 : i32
    return %arg0, %arg1 : i32, i32
  }
}

module attributes {stable_mosaic.version = 11 : i64} {
  func.func @_gru_seq_kernel(%arg0: i32, %arg1: memref<1x8x384xf32, #tpu.memory_space<vmem>>, %arg2: memref<128x384xbf16, #tpu.memory_space<vmem>>, %arg3: memref<1x384xf32, #tpu.memory_space<vmem>>, %arg4: memref<8x128xf32, #tpu.memory_space<vmem>>, %arg5: memref<1x8x128xf32, #tpu.memory_space<vmem>>, %arg6: memref<8x128xf32, #tpu.memory_space<vmem>>, %arg7: memref<8x128xf32, #tpu.memory_space<vmem>>) attributes {dimension_semantics = [#tpu.dimension_semantics<arbitrary>], iteration_bounds = array<i64: 16>, scalar_prefetch = 0 : i64, scratch_operands = 1 : i64, tpu.core_type = #tpu.core_type<tc>, window_params = [{transform_indices = @transform_0, window_bounds = array<i64: 1, 8, 384>}, {pipeline_mode = #tpu.pipeline_mode<synchronous>, transform_indices = @transform_1, window_bounds = array<i64: 128, 384>}, {pipeline_mode = #tpu.pipeline_mode<synchronous>, transform_indices = @transform_2, window_bounds = array<i64: 1, 384>}, {pipeline_mode = #tpu.pipeline_mode<synchronous>, transform_indices = @transform_3, window_bounds = array<i64: 8, 128>}, {transform_indices = @transform_4, window_bounds = array<i64: 1, 8, 128>}, {pipeline_mode = #tpu.pipeline_mode<synchronous>, transform_indices = @transform_5, window_bounds = array<i64: 8, 128>}]} {
    %c0_i32 = arith.constant 0 : i32
    %0 = arith.cmpi eq, %arg0, %c0_i32 : i32
    %1 = arith.extui %0 : i1 to i32
    %c0_i32_0 = arith.constant 0 : i32
    %2 = arith.cmpi ne, %1, %c0_i32_0 : i32
    scf.if %2 {
      %c0_18 = arith.constant 0 : index
      %c0_19 = arith.constant 0 : index
      %45 = vector.load %arg4[%c0_18, %c0_19] : memref<8x128xf32, #tpu.memory_space<vmem>>, vector<8x128xf32>
      %c0_20 = arith.constant 0 : index
      %c0_21 = arith.constant 0 : index
      %46 = vector.load %arg7[%c0_20, %c0_21] : memref<8x128xf32, #tpu.memory_space<vmem>>, vector<8x128xf32>
      tpu.vector_store %arg7[%c0_20, %c0_21], %45 {strides = array<i32>} : memref<8x128xf32, #tpu.memory_space<vmem>>, vector<8x128xf32>,
    } else {
    }
    %c0 = arith.constant 0 : index
    %c0_1 = arith.constant 0 : index
    %3 = vector.load %arg7[%c0, %c0_1] : memref<8x128xf32, #tpu.memory_space<vmem>>, vector<8x128xf32>
    %4 = arith.truncf %3 : vector<8x128xf32> to vector<8x128xbf16>
    %c0_2 = arith.constant 0 : index
    %c0_3 = arith.constant 0 : index
    %5 = vector.load %arg2[%c0_2, %c0_3] : memref<128x384xbf16, #tpu.memory_space<vmem>>, vector<128x384xbf16>
    %cst = arith.constant dense<0.000000e+00> : vector<8x384xf32>
    %6 = tpu.matmul %4, %5, %cst {dimension_numbers = #tpu.dot_dimension_numbers<[1], [0], [0], [1], [0, 0, 1, 1], [], []>} : vector<8x128xbf16>, vector<128x384xbf16>, vector<8x384xf32> -> vector<8x384xf32>
    %c0_4 = arith.constant 0 : index
    %c0_5 = arith.constant 0 : index
    %7 = vector.load %arg3[%c0_4, %c0_5] : memref<1x384xf32, #tpu.memory_space<vmem>>, vector<1x384xf32>
    %8 = vector.broadcast %7 : vector<1x384xf32> to vector<8x384xf32>
    %9 = arith.addf %6, %8 : vector<8x384xf32>
    %c0_6 = arith.constant 0 : index
    %c0_7 = arith.constant 0 : index
    %c0_8 = arith.constant 0 : index
    %10 = vector.load %arg1[%c0_6, %c0_7, %c0_8] : memref<1x8x384xf32, #tpu.memory_space<vmem>>, vector<1x8x384xf32>
    %11 = vector.shape_cast %10 : vector<1x8x384xf32> to vector<8x384xf32>
    %12 = vector.extract_strided_slice %11 {offsets = [0, 0], sizes = [8, 128], strides = [1, 1]} : vector<8x384xf32> to vector<8x128xf32>
    %13 = vector.extract_strided_slice %9 {offsets = [0, 0], sizes = [8, 128], strides = [1, 1]} : vector<8x384xf32> to vector<8x128xf32>
    %14 = arith.addf %12, %13 : vector<8x128xf32>
    %15 = arith.negf %14 : vector<8x128xf32>
    %16 = math.exp %15 : vector<8x128xf32>
    %cst_9 = arith.constant 1.000000e+00 : f32
    %17 = vector.broadcast %cst_9 : f32 to vector<8x128xf32>
    %18 = arith.addf %17, %16 : vector<8x128xf32>
    %19 = arith.divf %17, %18 : vector<8x128xf32>
    %20 = vector.extract_strided_slice %11 {offsets = [0, 128], sizes = [8, 128], strides = [1, 1]} : vector<8x384xf32> to vector<8x128xf32>
    %21 = vector.extract_strided_slice %9 {offsets = [0, 128], sizes = [8, 128], strides = [1, 1]} : vector<8x384xf32> to vector<8x128xf32>
    %22 = arith.addf %20, %21 : vector<8x128xf32>
    %23 = arith.negf %22 : vector<8x128xf32>
    %24 = math.exp %23 : vector<8x128xf32>
    %cst_10 = arith.constant 1.000000e+00 : f32
    %25 = vector.broadcast %cst_10 : f32 to vector<8x128xf32>
    %26 = arith.addf %25, %24 : vector<8x128xf32>
    %27 = arith.divf %25, %26 : vector<8x128xf32>
    %28 = vector.extract_strided_slice %11 {offsets = [0, 256], sizes = [8, 128], strides = [1, 1]} : vector<8x384xf32> to vector<8x128xf32>
    %29 = vector.extract_strided_slice %9 {offsets = [0, 256], sizes = [8, 128], strides = [1, 1]} : vector<8x384xf32> to vector<8x128xf32>
    %30 = arith.mulf %19, %29 : vector<8x128xf32>
    %31 = arith.addf %28, %30 : vector<8x128xf32>
    %32 = math.tanh %31 : vector<8x128xf32>
    %cst_11 = arith.constant 1.000000e+00 : f32
    %33 = vector.broadcast %cst_11 : f32 to vector<8x128xf32>
    %34 = arith.subf %33, %27 : vector<8x128xf32>
    %35 = arith.mulf %34, %32 : vector<8x128xf32>
    %36 = arith.mulf %27, %3 : vector<8x128xf32>
    %37 = arith.addf %35, %36 : vector<8x128xf32>
    %c0_12 = arith.constant 0 : index
    %c0_13 = arith.constant 0 : index
    %38 = vector.load %arg7[%c0_12, %c0_13] : memref<8x128xf32, #tpu.memory_space<vmem>>, vector<8x128xf32>
    tpu.vector_store %arg7[%c0_12, %c0_13], %37 {strides = array<i32>} : memref<8x128xf32, #tpu.memory_space<vmem>>, vector<8x128xf32>,
    %c0_14 = arith.constant 0 : index
    %c0_15 = arith.constant 0 : index
    %c0_16 = arith.constant 0 : index
    %39 = vector.load %arg5[%c0_14, %c0_15, %c0_16] : memref<1x8x128xf32, #tpu.memory_space<vmem>>, vector<1x8x128xf32>
    %40 = vector.shape_cast %39 : vector<1x8x128xf32> to vector<8x128xf32>
    %41 = vector.shape_cast %37 : vector<8x128xf32> to vector<1x8x128xf32>
    tpu.vector_store %arg5[%c0_14, %c0_15, %c0_16], %41 {strides = array<i32>} : memref<1x8x128xf32, #tpu.memory_space<vmem>>, vector<1x8x128xf32>,
    %c15_i32 = arith.constant 15 : i32
    %42 = arith.cmpi eq, %arg0, %c15_i32 : i32
    %43 = arith.extui %42 : i1 to i32
    %c0_i32_17 = arith.constant 0 : i32
    %44 = arith.cmpi ne, %43, %c0_i32_17 : i32
    scf.if %44 {
      %c0_18 = arith.constant 0 : index
      %c0_19 = arith.constant 0 : index
      %45 = vector.load %arg6[%c0_18, %c0_19] : memref<8x128xf32, #tpu.memory_space<vmem>>, vector<8x128xf32>
      tpu.vector_store %arg6[%c0_18, %c0_19], %37 {strides = array<i32>} : memref<8x128xf32, #tpu.memory_space<vmem>>, vector<8x128xf32>,
    } else {
    }
    return
  }
  func.func @transform_0(%arg0: i32) -> (i32, i32, i32) {
    %c0_i32 = arith.constant 0 : i32
    %c0_i32_0 = arith.constant 0 : i32
    %c0_i32_1 = arith.constant 0 : i32
    return %arg0, %c0_i32, %c0_i32_0 : i32, i32, i32
  }
  func.func @transform_1(%arg0: i32) -> (i32, i32) {
    %c0_i32 = arith.constant 0 : i32
    %c0_i32_0 = arith.constant 0 : i32
    %c0_i32_1 = arith.constant 0 : i32
    return %c0_i32, %c0_i32_0 : i32, i32
  }
  func.func @transform_2(%arg0: i32) -> (i32, i32) {
    %c0_i32 = arith.constant 0 : i32
    %c0_i32_0 = arith.constant 0 : i32
    %c0_i32_1 = arith.constant 0 : i32
    return %c0_i32, %c0_i32_0 : i32, i32
  }
  func.func @transform_3(%arg0: i32) -> (i32, i32) {
    %c0_i32 = arith.constant 0 : i32
    %c0_i32_0 = arith.constant 0 : i32
    %c0_i32_1 = arith.constant 0 : i32
    return %c0_i32, %c0_i32_0 : i32, i32
  }
  func.func @transform_4(%arg0: i32) -> (i32, i32, i32) {
    %c0_i32 = arith.constant 0 : i32
    %c0_i32_0 = arith.constant 0 : i32
    %c0_i32_1 = arith.constant 0 : i32
    return %arg0, %c0_i32, %c0_i32_0 : i32, i32, i32
  }
  func.func @transform_5(%arg0: i32) -> (i32, i32) {
    %c0_i32 = arith.constant 0 : i32
    %c0_i32_0 = arith.constant 0 : i32
    %c0_i32_1 = arith.constant 0 : i32
    return %c0_i32, %c0_i32_0 : i32, i32
  }
}

module attributes {stable_mosaic.version = 11 : i64} {
  func.func @_linear_kernel(%arg0: i32, %arg1: i32, %arg2: i32, %arg3: memref<32x128xbf16, #tpu.memory_space<vmem>>, %arg4: memref<128x384xbf16, #tpu.memory_space<vmem>>, %arg5: memref<1x384xf32, #tpu.memory_space<vmem>>, %arg6: memref<32x384xf32, #tpu.memory_space<vmem>>, %arg7: memref<32x384xf32, #tpu.memory_space<vmem>>) attributes {dimension_semantics = [#tpu.dimension_semantics<parallel>, #tpu.dimension_semantics<parallel>, #tpu.dimension_semantics<arbitrary>], iteration_bounds = array<i64: 1, 1, 1>, scalar_prefetch = 0 : i64, scratch_operands = 1 : i64, tpu.core_type = #tpu.core_type<tc>, window_params = [{transform_indices = @transform_0, window_bounds = array<i64: 32, 128>}, {transform_indices = @transform_1, window_bounds = array<i64: 128, 384>}, {transform_indices = @transform_2, window_bounds = array<i64: 1, 384>}, {transform_indices = @transform_3, window_bounds = array<i64: 32, 384>}]} {
    %c0_i32 = arith.constant 0 : i32
    %0 = arith.cmpi eq, %arg2, %c0_i32 : i32
    %1 = arith.extui %0 : i1 to i32
    %c0_i32_0 = arith.constant 0 : i32
    %2 = arith.cmpi ne, %1, %c0_i32_0 : i32
    scf.if %2 {
      %cst_10 = arith.constant 0.000000e+00 : f32
      %12 = vector.broadcast %cst_10 : f32 to vector<32x384xf32>
      %c0_11 = arith.constant 0 : index
      %c0_12 = arith.constant 0 : index
      %13 = vector.load %arg7[%c0_11, %c0_12] : memref<32x384xf32, #tpu.memory_space<vmem>>, vector<32x384xf32>
      tpu.vector_store %arg7[%c0_11, %c0_12], %12 {strides = array<i32>} : memref<32x384xf32, #tpu.memory_space<vmem>>, vector<32x384xf32>,
    } else {
    }
    %c0 = arith.constant 0 : index
    %c0_1 = arith.constant 0 : index
    %3 = vector.load %arg7[%c0, %c0_1] : memref<32x384xf32, #tpu.memory_space<vmem>>, vector<32x384xf32>
    %c0_2 = arith.constant 0 : index
    %c0_3 = arith.constant 0 : index
    %4 = vector.load %arg3[%c0_2, %c0_3] : memref<32x128xbf16, #tpu.memory_space<vmem>>, vector<32x128xbf16>
    %c0_4 = arith.constant 0 : index
    %c0_5 = arith.constant 0 : index
    %5 = vector.load %arg4[%c0_4, %c0_5] : memref<128x384xbf16, #tpu.memory_space<vmem>>, vector<128x384xbf16>
    %cst = arith.constant dense<0.000000e+00> : vector<32x384xf32>
    %6 = tpu.matmul %4, %5, %cst {dimension_numbers = #tpu.dot_dimension_numbers<[1], [0], [0], [1], [0, 0, 1, 1], [], []>} : vector<32x128xbf16>, vector<128x384xbf16>, vector<32x384xf32> -> vector<32x384xf32>
    %7 = arith.addf %3, %6 : vector<32x384xf32>
    %c0_6 = arith.constant 0 : index
    %c0_7 = arith.constant 0 : index
    %8 = vector.load %arg7[%c0_6, %c0_7] : memref<32x384xf32, #tpu.memory_space<vmem>>, vector<32x384xf32>
    tpu.vector_store %arg7[%c0_6, %c0_7], %7 {strides = array<i32>} : memref<32x384xf32, #tpu.memory_space<vmem>>, vector<32x384xf32>,
    %c0_i32_8 = arith.constant 0 : i32
    %9 = arith.cmpi eq, %arg2, %c0_i32_8 : i32
    %10 = arith.extui %9 : i1 to i32
    %c0_i32_9 = arith.constant 0 : i32
    %11 = arith.cmpi ne, %10, %c0_i32_9 : i32
    scf.if %11 {
      %c0_10 = arith.constant 0 : index
      %c0_11 = arith.constant 0 : index
      %12 = vector.load %arg7[%c0_10, %c0_11] : memref<32x384xf32, #tpu.memory_space<vmem>>, vector<32x384xf32>
      %c0_12 = arith.constant 0 : index
      %c0_13 = arith.constant 0 : index
      %13 = vector.load %arg5[%c0_12, %c0_13] : memref<1x384xf32, #tpu.memory_space<vmem>>, vector<1x384xf32>
      %14 = vector.broadcast %13 : vector<1x384xf32> to vector<32x384xf32>
      %15 = arith.addf %12, %14 : vector<32x384xf32>
      %c0_14 = arith.constant 0 : index
      %c0_15 = arith.constant 0 : index
      %16 = vector.load %arg6[%c0_14, %c0_15] : memref<32x384xf32, #tpu.memory_space<vmem>>, vector<32x384xf32>
      tpu.vector_store %arg6[%c0_14, %c0_15], %15 {strides = array<i32>} : memref<32x384xf32, #tpu.memory_space<vmem>>, vector<32x384xf32>,
    } else {
    }
    return
  }
  func.func @transform_0(%arg0: i32, %arg1: i32, %arg2: i32) -> (i32, i32) {
    %c0_i32 = arith.constant 0 : i32
    return %arg0, %arg2 : i32, i32
  }
  func.func @transform_1(%arg0: i32, %arg1: i32, %arg2: i32) -> (i32, i32) {
    %c0_i32 = arith.constant 0 : i32
    return %arg2, %arg1 : i32, i32
  }
  func.func @transform_2(%arg0: i32, %arg1: i32, %arg2: i32) -> (i32, i32) {
    %c0_i32 = arith.constant 0 : i32
    %c0_i32_0 = arith.constant 0 : i32
    return %c0_i32, %arg1 : i32, i32
  }
  func.func @transform_3(%arg0: i32, %arg1: i32, %arg2: i32) -> (i32, i32) {
    %c0_i32 = arith.constant 0 : i32
    return %arg0, %arg1 : i32, i32
  }
}

module attributes {stable_mosaic.version = 11 : i64} {
  func.func @_attn_kernel(%arg0: i32, %arg1: i32, %arg2: i32, %arg3: memref<1x1x128xf32, #tpu.memory_space<vmem>>, %arg4: memref<1x16x128xbf16, #tpu.memory_space<vmem>>, %arg5: memref<1x128x128xbf16, #tpu.memory_space<vmem>>, %arg6: memref<1x16x128xf32, #tpu.memory_space<vmem>>, %arg7: memref<16x1xf32, #tpu.memory_space<vmem>>, %arg8: memref<16x1xf32, #tpu.memory_space<vmem>>, %arg9: memref<16x128xf32, #tpu.memory_space<vmem>>) attributes {dimension_semantics = [#tpu.dimension_semantics<parallel>, #tpu.dimension_semantics<parallel>, #tpu.dimension_semantics<arbitrary>], iteration_bounds = array<i64: 2, 1, 1>, scalar_prefetch = 0 : i64, scratch_operands = 3 : i64, tpu.core_type = #tpu.core_type<tc>, window_params = [{transform_indices = @transform_0, window_bounds = array<i64: 1, 1, 128>}, {transform_indices = @transform_1, window_bounds = array<i64: 1, 16, 128>}, {transform_indices = @transform_2, window_bounds = array<i64: 1, 128, 128>}, {transform_indices = @transform_3, window_bounds = array<i64: 1, 16, 128>}]} {
    %c0_i32 = arith.constant 0 : i32
    %0 = arith.cmpi eq, %arg2, %c0_i32 : i32
    %1 = arith.extui %0 : i1 to i32
    %c0_i32_0 = arith.constant 0 : i32
    %2 = arith.cmpi ne, %1, %c0_i32_0 : i32
    scf.if %2 {
      %cst_26 = arith.constant -1.000000e+09 : f32
      %38 = vector.broadcast %cst_26 : f32 to vector<16x1xf32>
      %c0_27 = arith.constant 0 : index
      %c0_28 = arith.constant 0 : index
      %39 = vector.load %arg7[%c0_27, %c0_28] : memref<16x1xf32, #tpu.memory_space<vmem>>, vector<16x1xf32>
      tpu.vector_store %arg7[%c0_27, %c0_28], %38 {strides = array<i32>} : memref<16x1xf32, #tpu.memory_space<vmem>>, vector<16x1xf32>,
      %cst_29 = arith.constant 0.000000e+00 : f32
      %40 = vector.broadcast %cst_29 : f32 to vector<16x1xf32>
      %c0_30 = arith.constant 0 : index
      %c0_31 = arith.constant 0 : index
      %41 = vector.load %arg8[%c0_30, %c0_31] : memref<16x1xf32, #tpu.memory_space<vmem>>, vector<16x1xf32>
      tpu.vector_store %arg8[%c0_30, %c0_31], %40 {strides = array<i32>} : memref<16x1xf32, #tpu.memory_space<vmem>>, vector<16x1xf32>,
      %cst_32 = arith.constant 0.000000e+00 : f32
      %42 = vector.broadcast %cst_32 : f32 to vector<16x128xf32>
      %c0_33 = arith.constant 0 : index
      %c0_34 = arith.constant 0 : index
      %43 = vector.load %arg9[%c0_33, %c0_34] : memref<16x128xf32, #tpu.memory_space<vmem>>, vector<16x128xf32>
      tpu.vector_store %arg9[%c0_33, %c0_34], %42 {strides = array<i32>} : memref<16x128xf32, #tpu.memory_space<vmem>>, vector<16x128xf32>,
    } else {
    }
    %c0 = arith.constant 0 : index
    %c0_1 = arith.constant 0 : index
    %c0_2 = arith.constant 0 : index
    %3 = vector.load %arg4[%c0, %c0_1, %c0_2] : memref<1x16x128xbf16, #tpu.memory_space<vmem>>, vector<1x16x128xbf16>
    %4 = vector.shape_cast %3 : vector<1x16x128xbf16> to vector<16x128xbf16>
    %c0_3 = arith.constant 0 : index
    %c0_4 = arith.constant 0 : index
    %c0_5 = arith.constant 0 : index
    %5 = vector.load %arg5[%c0_3, %c0_4, %c0_5] : memref<1x128x128xbf16, #tpu.memory_space<vmem>>, vector<1x128x128xbf16>
    %6 = vector.shape_cast %5 : vector<1x128x128xbf16> to vector<128x128xbf16>
    %cst = arith.constant dense<0.000000e+00> : vector<16x128xf32>
    %7 = tpu.matmul %4, %6, %cst {dimension_numbers = #tpu.dot_dimension_numbers<[1], [1], [0], [0], [0, 0, 1, 0], [], []>} : vector<16x128xbf16>, vector<128x128xbf16>, vector<16x128xf32> -> vector<16x128xf32>
    %c0_6 = arith.constant 0 : index
    %c0_7 = arith.constant 0 : index
    %c0_8 = arith.constant 0 : index
    %8 = vector.load %arg3[%c0_6, %c0_7, %c0_8] : memref<1x1x128xf32, #tpu.memory_space<vmem>>, vector<1x1x128xf32>
    %9 = vector.shape_cast %8 : vector<1x1x128xf32> to vector<1x128xf32>
    %10 = vector.broadcast %9 : vector<1x128xf32> to vector<16x128xf32>
    %11 = arith.addf %7, %10 : vector<16x128xf32>
    %c0_9 = arith.constant 0 : index
    %c0_10 = arith.constant 0 : index
    %12 = vector.load %arg7[%c0_9, %c0_10] : memref<16x1xf32, #tpu.memory_space<vmem>>, vector<16x1xf32>
    %cst_11 = arith.constant dense<0xFF800000> : vector<16xf32>
    %13 = vector.multi_reduction <maximumf>, %11, %cst_11 [1] : vector<16x128xf32> to vector<16xf32>
    %14 = vector.shape_cast %13 : vector<16xf32> to vector<16x1xf32>
    %15 = arith.maximumf %12, %14 : vector<16x1xf32>
    %16 = arith.subf %12, %15 : vector<16x1xf32>
    %17 = math.exp %16 : vector<16x1xf32>
    %18 = vector.broadcast %15 : vector<16x1xf32> to vector<16x128xf32>
    %19 = arith.subf %11, %18 : vector<16x128xf32>
    %20 = math.exp %19 : vector<16x128xf32>
    %c0_12 = arith.constant 0 : index
    %c0_13 = arith.constant 0 : index
    %21 = vector.load %arg8[%c0_12, %c0_13] : memref<16x1xf32, #tpu.memory_space<vmem>>, vector<16x1xf32>
    %22 = arith.mulf %17, %21 : vector<16x1xf32>
    %cst_14 = arith.constant dense<0.000000e+00> : vector<16xf32>
    %23 = vector.multi_reduction <add>, %20, %cst_14 [1] : vector<16x128xf32> to vector<16xf32>
    %24 = vector.shape_cast %23 : vector<16xf32> to vector<16x1xf32>
    %25 = arith.addf %22, %24 : vector<16x1xf32>
    %c0_15 = arith.constant 0 : index
    %c0_16 = arith.constant 0 : index
    %26 = vector.load %arg8[%c0_15, %c0_16] : memref<16x1xf32, #tpu.memory_space<vmem>>, vector<16x1xf32>
    tpu.vector_store %arg8[%c0_15, %c0_16], %25 {strides = array<i32>} : memref<16x1xf32, #tpu.memory_space<vmem>>, vector<16x1xf32>,
    %c0_17 = arith.constant 0 : index
    %c0_18 = arith.constant 0 : index
    %27 = vector.load %arg9[%c0_17, %c0_18] : memref<16x128xf32, #tpu.memory_space<vmem>>, vector<16x128xf32>
    %28 = vector.broadcast %17 : vector<16x1xf32> to vector<16x128xf32>
    %29 = arith.mulf %28, %27 : vector<16x128xf32>
    %30 = arith.truncf %20 : vector<16x128xf32> to vector<16x128xbf16>
    %cst_19 = arith.constant dense<0.000000e+00> : vector<16x128xf32>
    %31 = tpu.matmul %30, %6, %cst_19 {dimension_numbers = #tpu.dot_dimension_numbers<[1], [0], [0], [1], [0, 0, 1, 1], [], []>} : vector<16x128xbf16>, vector<128x128xbf16>, vector<16x128xf32> -> vector<16x128xf32>
    %32 = arith.addf %29, %31 : vector<16x128xf32>
    %c0_20 = arith.constant 0 : index
    %c0_21 = arith.constant 0 : index
    %33 = vector.load %arg9[%c0_20, %c0_21] : memref<16x128xf32, #tpu.memory_space<vmem>>, vector<16x128xf32>
    tpu.vector_store %arg9[%c0_20, %c0_21], %32 {strides = array<i32>} : memref<16x128xf32, #tpu.memory_space<vmem>>, vector<16x128xf32>,
    %c0_22 = arith.constant 0 : index
    %c0_23 = arith.constant 0 : index
    %34 = vector.load %arg7[%c0_22, %c0_23] : memref<16x1xf32, #tpu.memory_space<vmem>>, vector<16x1xf32>
    tpu.vector_store %arg7[%c0_22, %c0_23], %15 {strides = array<i32>} : memref<16x1xf32, #tpu.memory_space<vmem>>, vector<16x1xf32>,
    %c0_i32_24 = arith.constant 0 : i32
    %35 = arith.cmpi eq, %arg2, %c0_i32_24 : i32
    %36 = arith.extui %35 : i1 to i32
    %c0_i32_25 = arith.constant 0 : i32
    %37 = arith.cmpi ne, %36, %c0_i32_25 : i32
    scf.if %37 {
      %c0_26 = arith.constant 0 : index
      %c0_27 = arith.constant 0 : index
      %38 = vector.load %arg9[%c0_26, %c0_27] : memref<16x128xf32, #tpu.memory_space<vmem>>, vector<16x128xf32>
      %c0_28 = arith.constant 0 : index
      %c0_29 = arith.constant 0 : index
      %39 = vector.load %arg8[%c0_28, %c0_29] : memref<16x1xf32, #tpu.memory_space<vmem>>, vector<16x1xf32>
      %40 = tpu.reciprocal %39 {approx = true} : vector<16x1xf32> -> vector<16x1xf32>
      %41 = vector.broadcast %40 : vector<16x1xf32> to vector<16x128xf32>
      %42 = arith.mulf %38, %41 : vector<16x128xf32>
      %c0_30 = arith.constant 0 : index
      %c0_31 = arith.constant 0 : index
      %c0_32 = arith.constant 0 : index
      %43 = vector.load %arg6[%c0_30, %c0_31, %c0_32] : memref<1x16x128xf32, #tpu.memory_space<vmem>>, vector<1x16x128xf32>
      %44 = vector.shape_cast %43 : vector<1x16x128xf32> to vector<16x128xf32>
      %45 = vector.shape_cast %42 : vector<16x128xf32> to vector<1x16x128xf32>
      tpu.vector_store %arg6[%c0_30, %c0_31, %c0_32], %45 {strides = array<i32>} : memref<1x16x128xf32, #tpu.memory_space<vmem>>, vector<1x16x128xf32>,
    } else {
    }
    return
  }
  func.func @transform_0(%arg0: i32, %arg1: i32, %arg2: i32) -> (i32, i32, i32) {
    %c0_i32 = arith.constant 0 : i32
    %c0_i32_0 = arith.constant 0 : i32
    return %arg0, %c0_i32, %arg2 : i32, i32, i32
  }
  func.func @transform_1(%arg0: i32, %arg1: i32, %arg2: i32) -> (i32, i32, i32) {
    %c0_i32 = arith.constant 0 : i32
    %c0_i32_0 = arith.constant 0 : i32
    return %arg0, %arg1, %c0_i32 : i32, i32, i32
  }
  func.func @transform_2(%arg0: i32, %arg1: i32, %arg2: i32) -> (i32, i32, i32) {
    %c0_i32 = arith.constant 0 : i32
    %c0_i32_0 = arith.constant 0 : i32
    return %arg0, %arg2, %c0_i32 : i32, i32, i32
  }
  func.func @transform_3(%arg0: i32, %arg1: i32, %arg2: i32) -> (i32, i32, i32) {
    %c0_i32 = arith.constant 0 : i32
    %c0_i32_0 = arith.constant 0 : i32
    return %arg0, %arg1, %c0_i32 : i32, i32, i32
  }
}

module attributes {stable_mosaic.version = 11 : i64} {
  func.func @_dec_out_kernel(%arg0: i32, %arg1: i32, %arg2: memref<32x128xbf16, #tpu.memory_space<vmem>>, %arg3: memref<32x128xbf16, #tpu.memory_space<vmem>>, %arg4: memref<128x128xbf16, #tpu.memory_space<vmem>>, %arg5: memref<128x128xbf16, #tpu.memory_space<vmem>>, %arg6: memref<1x128xf32, #tpu.memory_space<vmem>>, %arg7: memref<32x1xf32, #tpu.memory_space<vmem>>, %arg8: memref<32x128xf32, #tpu.memory_space<vmem>>) attributes {dimension_semantics = [#tpu.dimension_semantics<parallel>, #tpu.dimension_semantics<parallel>], iteration_bounds = array<i64: 1, 1>, scalar_prefetch = 0 : i64, scratch_operands = 0 : i64, tpu.core_type = #tpu.core_type<tc>, window_params = [{transform_indices = @transform_0, window_bounds = array<i64: 32, 128>}, {transform_indices = @transform_1, window_bounds = array<i64: 32, 128>}, {transform_indices = @transform_2, window_bounds = array<i64: 128, 128>}, {transform_indices = @transform_3, window_bounds = array<i64: 128, 128>}, {transform_indices = @transform_4, window_bounds = array<i64: 1, 128>}, {transform_indices = @transform_5, window_bounds = array<i64: 32, 1>}, {transform_indices = @transform_6, window_bounds = array<i64: 32, 128>}]} {
    %c0 = arith.constant 0 : index
    %c0_0 = arith.constant 0 : index
    %0 = vector.load %arg2[%c0, %c0_0] : memref<32x128xbf16, #tpu.memory_space<vmem>>, vector<32x128xbf16>
    %c0_1 = arith.constant 0 : index
    %c0_2 = arith.constant 0 : index
    %1 = vector.load %arg4[%c0_1, %c0_2] : memref<128x128xbf16, #tpu.memory_space<vmem>>, vector<128x128xbf16>
    %cst = arith.constant dense<0.000000e+00> : vector<32x128xf32>
    %2 = tpu.matmul %0, %1, %cst {dimension_numbers = #tpu.dot_dimension_numbers<[1], [0], [0], [1], [0, 0, 1, 1], [], []>} : vector<32x128xbf16>, vector<128x128xbf16>, vector<32x128xf32> -> vector<32x128xf32>
    %c0_3 = arith.constant 0 : index
    %c0_4 = arith.constant 0 : index
    %3 = vector.load %arg3[%c0_3, %c0_4] : memref<32x128xbf16, #tpu.memory_space<vmem>>, vector<32x128xbf16>
    %c0_5 = arith.constant 0 : index
    %c0_6 = arith.constant 0 : index
    %4 = vector.load %arg5[%c0_5, %c0_6] : memref<128x128xbf16, #tpu.memory_space<vmem>>, vector<128x128xbf16>
    %cst_7 = arith.constant dense<0.000000e+00> : vector<32x128xf32>
    %5 = tpu.matmul %3, %4, %cst_7 {dimension_numbers = #tpu.dot_dimension_numbers<[1], [0], [0], [1], [0, 0, 1, 1], [], []>} : vector<32x128xbf16>, vector<128x128xbf16>, vector<32x128xf32> -> vector<32x128xf32>
    %6 = arith.addf %2, %5 : vector<32x128xf32>
    %c0_8 = arith.constant 0 : index
    %c0_9 = arith.constant 0 : index
    %7 = vector.load %arg6[%c0_8, %c0_9] : memref<1x128xf32, #tpu.memory_space<vmem>>, vector<1x128xf32>
    %8 = vector.broadcast %7 : vector<1x128xf32> to vector<32x128xf32>
    %9 = arith.addf %6, %8 : vector<32x128xf32>
    %10 = math.tanh %9 : vector<32x128xf32>
    %c0_10 = arith.constant 0 : index
    %c0_11 = arith.constant 0 : index
    %11 = vector.load %arg7[%c0_10, %c0_11] : memref<32x1xf32, #tpu.memory_space<vmem>>, vector<32x1xf32>
    %12 = vector.broadcast %11 : vector<32x1xf32> to vector<32x128xf32>
    %13 = arith.mulf %10, %12 : vector<32x128xf32>
    %c0_12 = arith.constant 0 : index
    %c0_13 = arith.constant 0 : index
    %14 = vector.load %arg8[%c0_12, %c0_13] : memref<32x128xf32, #tpu.memory_space<vmem>>, vector<32x128xf32>
    tpu.vector_store %arg8[%c0_12, %c0_13], %13 {strides = array<i32>} : memref<32x128xf32, #tpu.memory_space<vmem>>, vector<32x128xf32>,
    return
  }
  func.func @transform_0(%arg0: i32, %arg1: i32) -> (i32, i32) {
    %c0_i32 = arith.constant 0 : i32
    %c0_i32_0 = arith.constant 0 : i32
    return %arg0, %c0_i32 : i32, i32
  }
  func.func @transform_1(%arg0: i32, %arg1: i32) -> (i32, i32) {
    %c0_i32 = arith.constant 0 : i32
    %c0_i32_0 = arith.constant 0 : i32
    return %arg0, %c0_i32 : i32, i32
  }
  func.func @transform_2(%arg0: i32, %arg1: i32) -> (i32, i32) {
    %c0_i32 = arith.constant 0 : i32
    %c0_i32_0 = arith.constant 0 : i32
    return %c0_i32, %arg1 : i32, i32
  }
  func.func @transform_3(%arg0: i32, %arg1: i32) -> (i32, i32) {
    %c0_i32 = arith.constant 0 : i32
    %c0_i32_0 = arith.constant 0 : i32
    return %c0_i32, %arg1 : i32, i32
  }
  func.func @transform_4(%arg0: i32, %arg1: i32) -> (i32, i32) {
    %c0_i32 = arith.constant 0 : i32
    %c0_i32_0 = arith.constant 0 : i32
    return %c0_i32, %arg1 : i32, i32
  }
  func.func @transform_5(%arg0: i32, %arg1: i32) -> (i32, i32) {
    %c0_i32 = arith.constant 0 : i32
    %c0_i32_0 = arith.constant 0 : i32
    return %arg0, %c0_i32 : i32, i32
  }
  func.func @transform_6(%arg0: i32, %arg1: i32) -> (i32, i32) {
    %c0_i32 = arith.constant 0 : i32
    return %arg0, %arg1 : i32, i32
  }
}

module attributes {stable_mosaic.version = 11 : i64} {
  func.func @_gru_seq_kernel(%arg0: i32, %arg1: memref<1x8x384xf32, #tpu.memory_space<vmem>>, %arg2: memref<128x384xbf16, #tpu.memory_space<vmem>>, %arg3: memref<1x384xf32, #tpu.memory_space<vmem>>, %arg4: memref<8x128xf32, #tpu.memory_space<vmem>>, %arg5: memref<1x8x128xf32, #tpu.memory_space<vmem>>, %arg6: memref<8x128xf32, #tpu.memory_space<vmem>>, %arg7: memref<8x128xf32, #tpu.memory_space<vmem>>) attributes {dimension_semantics = [#tpu.dimension_semantics<arbitrary>], iteration_bounds = array<i64: 16>, scalar_prefetch = 0 : i64, scratch_operands = 1 : i64, tpu.core_type = #tpu.core_type<tc>, window_params = [{transform_indices = @transform_0, window_bounds = array<i64: 1, 8, 384>}, {pipeline_mode = #tpu.pipeline_mode<synchronous>, transform_indices = @transform_1, window_bounds = array<i64: 128, 384>}, {pipeline_mode = #tpu.pipeline_mode<synchronous>, transform_indices = @transform_2, window_bounds = array<i64: 1, 384>}, {pipeline_mode = #tpu.pipeline_mode<synchronous>, transform_indices = @transform_3, window_bounds = array<i64: 8, 128>}, {transform_indices = @transform_4, window_bounds = array<i64: 1, 8, 128>}, {pipeline_mode = #tpu.pipeline_mode<synchronous>, transform_indices = @transform_5, window_bounds = array<i64: 8, 128>}]} {
    %c0_i32 = arith.constant 0 : i32
    %0 = arith.cmpi eq, %arg0, %c0_i32 : i32
    %1 = arith.extui %0 : i1 to i32
    %c0_i32_0 = arith.constant 0 : i32
    %2 = arith.cmpi ne, %1, %c0_i32_0 : i32
    scf.if %2 {
      %c0_18 = arith.constant 0 : index
      %c0_19 = arith.constant 0 : index
      %45 = vector.load %arg4[%c0_18, %c0_19] : memref<8x128xf32, #tpu.memory_space<vmem>>, vector<8x128xf32>
      %c0_20 = arith.constant 0 : index
      %c0_21 = arith.constant 0 : index
      %46 = vector.load %arg7[%c0_20, %c0_21] : memref<8x128xf32, #tpu.memory_space<vmem>>, vector<8x128xf32>
      tpu.vector_store %arg7[%c0_20, %c0_21], %45 {strides = array<i32>} : memref<8x128xf32, #tpu.memory_space<vmem>>, vector<8x128xf32>,
    } else {
    }
    %c0 = arith.constant 0 : index
    %c0_1 = arith.constant 0 : index
    %3 = vector.load %arg7[%c0, %c0_1] : memref<8x128xf32, #tpu.memory_space<vmem>>, vector<8x128xf32>
    %4 = arith.truncf %3 : vector<8x128xf32> to vector<8x128xbf16>
    %c0_2 = arith.constant 0 : index
    %c0_3 = arith.constant 0 : index
    %5 = vector.load %arg2[%c0_2, %c0_3] : memref<128x384xbf16, #tpu.memory_space<vmem>>, vector<128x384xbf16>
    %cst = arith.constant dense<0.000000e+00> : vector<8x384xf32>
    %6 = tpu.matmul %4, %5, %cst {dimension_numbers = #tpu.dot_dimension_numbers<[1], [0], [0], [1], [0, 0, 1, 1], [], []>} : vector<8x128xbf16>, vector<128x384xbf16>, vector<8x384xf32> -> vector<8x384xf32>
    %c0_4 = arith.constant 0 : index
    %c0_5 = arith.constant 0 : index
    %7 = vector.load %arg3[%c0_4, %c0_5] : memref<1x384xf32, #tpu.memory_space<vmem>>, vector<1x384xf32>
    %8 = vector.broadcast %7 : vector<1x384xf32> to vector<8x384xf32>
    %9 = arith.addf %6, %8 : vector<8x384xf32>
    %c0_6 = arith.constant 0 : index
    %c0_7 = arith.constant 0 : index
    %c0_8 = arith.constant 0 : index
    %10 = vector.load %arg1[%c0_6, %c0_7, %c0_8] : memref<1x8x384xf32, #tpu.memory_space<vmem>>, vector<1x8x384xf32>
    %11 = vector.shape_cast %10 : vector<1x8x384xf32> to vector<8x384xf32>
    %12 = vector.extract_strided_slice %11 {offsets = [0, 0], sizes = [8, 128], strides = [1, 1]} : vector<8x384xf32> to vector<8x128xf32>
    %13 = vector.extract_strided_slice %9 {offsets = [0, 0], sizes = [8, 128], strides = [1, 1]} : vector<8x384xf32> to vector<8x128xf32>
    %14 = arith.addf %12, %13 : vector<8x128xf32>
    %15 = arith.negf %14 : vector<8x128xf32>
    %16 = math.exp %15 : vector<8x128xf32>
    %cst_9 = arith.constant 1.000000e+00 : f32
    %17 = vector.broadcast %cst_9 : f32 to vector<8x128xf32>
    %18 = arith.addf %17, %16 : vector<8x128xf32>
    %19 = arith.divf %17, %18 : vector<8x128xf32>
    %20 = vector.extract_strided_slice %11 {offsets = [0, 128], sizes = [8, 128], strides = [1, 1]} : vector<8x384xf32> to vector<8x128xf32>
    %21 = vector.extract_strided_slice %9 {offsets = [0, 128], sizes = [8, 128], strides = [1, 1]} : vector<8x384xf32> to vector<8x128xf32>
    %22 = arith.addf %20, %21 : vector<8x128xf32>
    %23 = arith.negf %22 : vector<8x128xf32>
    %24 = math.exp %23 : vector<8x128xf32>
    %cst_10 = arith.constant 1.000000e+00 : f32
    %25 = vector.broadcast %cst_10 : f32 to vector<8x128xf32>
    %26 = arith.addf %25, %24 : vector<8x128xf32>
    %27 = arith.divf %25, %26 : vector<8x128xf32>
    %28 = vector.extract_strided_slice %11 {offsets = [0, 256], sizes = [8, 128], strides = [1, 1]} : vector<8x384xf32> to vector<8x128xf32>
    %29 = vector.extract_strided_slice %9 {offsets = [0, 256], sizes = [8, 128], strides = [1, 1]} : vector<8x384xf32> to vector<8x128xf32>
    %30 = arith.mulf %19, %29 : vector<8x128xf32>
    %31 = arith.addf %28, %30 : vector<8x128xf32>
    %32 = math.tanh %31 : vector<8x128xf32>
    %cst_11 = arith.constant 1.000000e+00 : f32
    %33 = vector.broadcast %cst_11 : f32 to vector<8x128xf32>
    %34 = arith.subf %33, %27 : vector<8x128xf32>
    %35 = arith.mulf %34, %32 : vector<8x128xf32>
    %36 = arith.mulf %27, %3 : vector<8x128xf32>
    %37 = arith.addf %35, %36 : vector<8x128xf32>
    %c0_12 = arith.constant 0 : index
    %c0_13 = arith.constant 0 : index
    %38 = vector.load %arg7[%c0_12, %c0_13] : memref<8x128xf32, #tpu.memory_space<vmem>>, vector<8x128xf32>
    tpu.vector_store %arg7[%c0_12, %c0_13], %37 {strides = array<i32>} : memref<8x128xf32, #tpu.memory_space<vmem>>, vector<8x128xf32>,
    %c0_14 = arith.constant 0 : index
    %c0_15 = arith.constant 0 : index
    %c0_16 = arith.constant 0 : index
    %39 = vector.load %arg5[%c0_14, %c0_15, %c0_16] : memref<1x8x128xf32, #tpu.memory_space<vmem>>, vector<1x8x128xf32>
    %40 = vector.shape_cast %39 : vector<1x8x128xf32> to vector<8x128xf32>
    %41 = vector.shape_cast %37 : vector<8x128xf32> to vector<1x8x128xf32>
    tpu.vector_store %arg5[%c0_14, %c0_15, %c0_16], %41 {strides = array<i32>} : memref<1x8x128xf32, #tpu.memory_space<vmem>>, vector<1x8x128xf32>,
    %c15_i32 = arith.constant 15 : i32
    %42 = arith.cmpi eq, %arg0, %c15_i32 : i32
    %43 = arith.extui %42 : i1 to i32
    %c0_i32_17 = arith.constant 0 : i32
    %44 = arith.cmpi ne, %43, %c0_i32_17 : i32
    scf.if %44 {
      %c0_18 = arith.constant 0 : index
      %c0_19 = arith.constant 0 : index
      %45 = vector.load %arg6[%c0_18, %c0_19] : memref<8x128xf32, #tpu.memory_space<vmem>>, vector<8x128xf32>
      tpu.vector_store %arg6[%c0_18, %c0_19], %37 {strides = array<i32>} : memref<8x128xf32, #tpu.memory_space<vmem>>, vector<8x128xf32>,
    } else {
    }
    return
  }
  func.func @transform_0(%arg0: i32) -> (i32, i32, i32) {
    %c0_i32 = arith.constant 0 : i32
    %c0_i32_0 = arith.constant 0 : i32
    %c0_i32_1 = arith.constant 0 : i32
    return %arg0, %c0_i32, %c0_i32_0 : i32, i32, i32
  }
  func.func @transform_1(%arg0: i32) -> (i32, i32) {
    %c0_i32 = arith.constant 0 : i32
    %c0_i32_0 = arith.constant 0 : i32
    %c0_i32_1 = arith.constant 0 : i32
    return %c0_i32, %c0_i32_0 : i32, i32
  }
  func.func @transform_2(%arg0: i32) -> (i32, i32) {
    %c0_i32 = arith.constant 0 : i32
    %c0_i32_0 = arith.constant 0 : i32
    %c0_i32_1 = arith.constant 0 : i32
    return %c0_i32, %c0_i32_0 : i32, i32
  }
  func.func @transform_3(%arg0: i32) -> (i32, i32) {
    %c0_i32 = arith.constant 0 : i32
    %c0_i32_0 = arith.constant 0 : i32
    %c0_i32_1 = arith.constant 0 : i32
    return %c0_i32, %c0_i32_0 : i32, i32
  }
  func.func @transform_4(%arg0: i32) -> (i32, i32, i32) {
    %c0_i32 = arith.constant 0 : i32
    %c0_i32_0 = arith.constant 0 : i32
    %c0_i32_1 = arith.constant 0 : i32
    return %arg0, %c0_i32, %c0_i32_0 : i32, i32, i32
  }
  func.func @transform_5(%arg0: i32) -> (i32, i32) {
    %c0_i32 = arith.constant 0 : i32
    %c0_i32_0 = arith.constant 0 : i32
    %c0_i32_1 = arith.constant 0 : i32
    return %c0_i32, %c0_i32_0 : i32, i32
  }
}

module attributes {stable_mosaic.version = 11 : i64} {
  func.func @_linear_kernel(%arg0: i32, %arg1: i32, %arg2: i32, %arg3: memref<32x128xbf16, #tpu.memory_space<vmem>>, %arg4: memref<128x128xbf16, #tpu.memory_space<vmem>>, %arg5: memref<1x128xf32, #tpu.memory_space<vmem>>, %arg6: memref<32x128xf32, #tpu.memory_space<vmem>>, %arg7: memref<32x128xf32, #tpu.memory_space<vmem>>) attributes {dimension_semantics = [#tpu.dimension_semantics<parallel>, #tpu.dimension_semantics<parallel>, #tpu.dimension_semantics<arbitrary>], iteration_bounds = array<i64: 1, 1, 1>, scalar_prefetch = 0 : i64, scratch_operands = 1 : i64, tpu.core_type = #tpu.core_type<tc>, window_params = [{transform_indices = @transform_0, window_bounds = array<i64: 32, 128>}, {transform_indices = @transform_1, window_bounds = array<i64: 128, 128>}, {transform_indices = @transform_2, window_bounds = array<i64: 1, 128>}, {transform_indices = @transform_3, window_bounds = array<i64: 32, 128>}]} {
    %c0_i32 = arith.constant 0 : i32
    %0 = arith.cmpi eq, %arg2, %c0_i32 : i32
    %1 = arith.extui %0 : i1 to i32
    %c0_i32_0 = arith.constant 0 : i32
    %2 = arith.cmpi ne, %1, %c0_i32_0 : i32
    scf.if %2 {
      %cst_10 = arith.constant 0.000000e+00 : f32
      %12 = vector.broadcast %cst_10 : f32 to vector<32x128xf32>
      %c0_11 = arith.constant 0 : index
      %c0_12 = arith.constant 0 : index
      %13 = vector.load %arg7[%c0_11, %c0_12] : memref<32x128xf32, #tpu.memory_space<vmem>>, vector<32x128xf32>
      tpu.vector_store %arg7[%c0_11, %c0_12], %12 {strides = array<i32>} : memref<32x128xf32, #tpu.memory_space<vmem>>, vector<32x128xf32>,
    } else {
    }
    %c0 = arith.constant 0 : index
    %c0_1 = arith.constant 0 : index
    %3 = vector.load %arg7[%c0, %c0_1] : memref<32x128xf32, #tpu.memory_space<vmem>>, vector<32x128xf32>
    %c0_2 = arith.constant 0 : index
    %c0_3 = arith.constant 0 : index
    %4 = vector.load %arg3[%c0_2, %c0_3] : memref<32x128xbf16, #tpu.memory_space<vmem>>, vector<32x128xbf16>
    %c0_4 = arith.constant 0 : index
    %c0_5 = arith.constant 0 : index
    %5 = vector.load %arg4[%c0_4, %c0_5] : memref<128x128xbf16, #tpu.memory_space<vmem>>, vector<128x128xbf16>
    %cst = arith.constant dense<0.000000e+00> : vector<32x128xf32>
    %6 = tpu.matmul %4, %5, %cst {dimension_numbers = #tpu.dot_dimension_numbers<[1], [0], [0], [1], [0, 0, 1, 1], [], []>} : vector<32x128xbf16>, vector<128x128xbf16>, vector<32x128xf32> -> vector<32x128xf32>
    %7 = arith.addf %3, %6 : vector<32x128xf32>
    %c0_6 = arith.constant 0 : index
    %c0_7 = arith.constant 0 : index
    %8 = vector.load %arg7[%c0_6, %c0_7] : memref<32x128xf32, #tpu.memory_space<vmem>>, vector<32x128xf32>
    tpu.vector_store %arg7[%c0_6, %c0_7], %7 {strides = array<i32>} : memref<32x128xf32, #tpu.memory_space<vmem>>, vector<32x128xf32>,
    %c0_i32_8 = arith.constant 0 : i32
    %9 = arith.cmpi eq, %arg2, %c0_i32_8 : i32
    %10 = arith.extui %9 : i1 to i32
    %c0_i32_9 = arith.constant 0 : i32
    %11 = arith.cmpi ne, %10, %c0_i32_9 : i32
    scf.if %11 {
      %c0_10 = arith.constant 0 : index
      %c0_11 = arith.constant 0 : index
      %12 = vector.load %arg7[%c0_10, %c0_11] : memref<32x128xf32, #tpu.memory_space<vmem>>, vector<32x128xf32>
      %c0_12 = arith.constant 0 : index
      %c0_13 = arith.constant 0 : index
      %13 = vector.load %arg5[%c0_12, %c0_13] : memref<1x128xf32, #tpu.memory_space<vmem>>, vector<1x128xf32>
      %14 = vector.broadcast %13 : vector<1x128xf32> to vector<32x128xf32>
      %15 = arith.addf %12, %14 : vector<32x128xf32>
      %c0_14 = arith.constant 0 : index
      %c0_15 = arith.constant 0 : index
      %16 = vector.load %arg6[%c0_14, %c0_15] : memref<32x128xf32, #tpu.memory_space<vmem>>, vector<32x128xf32>
      tpu.vector_store %arg6[%c0_14, %c0_15], %15 {strides = array<i32>} : memref<32x128xf32, #tpu.memory_space<vmem>>, vector<32x128xf32>,
    } else {
    }
    return
  }
  func.func @transform_0(%arg0: i32, %arg1: i32, %arg2: i32) -> (i32, i32) {
    %c0_i32 = arith.constant 0 : i32
    return %arg0, %arg2 : i32, i32
  }
  func.func @transform_1(%arg0: i32, %arg1: i32, %arg2: i32) -> (i32, i32) {
    %c0_i32 = arith.constant 0 : i32
    return %arg2, %arg1 : i32, i32
  }
  func.func @transform_2(%arg0: i32, %arg1: i32, %arg2: i32) -> (i32, i32) {
    %c0_i32 = arith.constant 0 : i32
    %c0_i32_0 = arith.constant 0 : i32
    return %c0_i32, %arg1 : i32, i32
  }
  func.func @transform_3(%arg0: i32, %arg1: i32, %arg2: i32) -> (i32, i32) {
    %c0_i32 = arith.constant 0 : i32
    return %arg0, %arg1 : i32, i32
  }
}

</mosaic_0001>

<llo_original>
// kernel: forward.27
$region0: #{forward.27}
  #allocation0 [shape = 'u32[]', space=smem, size = 0x4, offset = 0x4, fixed_abs, tag = 'smem constant byte address 0x4 - core index']
  #allocation1 [shape = 'u32[144,128]{1,0:T(1,128)}', space=vmem, size = 0x12000, scoped, tag = 'internal scratch']
  #allocation2 [shape = 'f32[16,384]{1,0:T(8,128)}', space=vmem, size = 0x6000, scoped, tag = 'scratch operand']
  %s0 = inlined_call_operand.vmem [shape: bf16[16,128], index: 0, kind: input, shape index: {}]
  %s1 = inlined_call_operand.vmem [shape: bf16[128,384], index: 1, kind: input, shape index: {}]
  %s2 = inlined_call_operand.vmem [shape: f32[1,384], index: 2, kind: input, shape index: {}]
  %s3 = inlined_call_operand.vmem [shape: f32[16,384], index: 3, kind: output, shape index: {}]
  %s4 = sld [smem:[#allocation0]]
  $region30: #{forward.27} parent=0
    _
  %s6 = ssub.s32 1, %s4
  %s7 = scalar_select 0, %s6, %s4
  // Predicated region
  $region2: #{forward.27} parent=0 // pred_check
    _
  $region3: #{forward.27} parent=0 // pred_check_branch
    %9 = sbr.rel (0) target = $region5
  $region4: #{forward.27} parent=0 // pred_region
    _
  $region5: #{forward.27} parent=0 // pred_fallthru
    _
  // Predicated region
  $region6: #{forward.27} parent=0 // pred_check
    _
  $region7: #{forward.27} parent=0 // pred_check_branch
    %11 = sbr.rel (0) target = $region9
  $region8: #{forward.27} parent=0 // pred_region
    _
  $region9: #{forward.27} parent=0 // pred_fallthru
    _
  // Predicated region
  $region10: #{forward.27} parent=0 // pred_check
    _
  $region11: #{forward.27} parent=0 // pred_check_branch
    %13 = sbr.rel (0) target = $region13
  $region12: #{forward.27} parent=0 // pred_region
    _
  $region13: #{forward.27} parent=0 // pred_fallthru
    _
  %p15 = scmp.eq.s32.totalorder 0, 0
  // Predicated region
  $region14: #{forward.27} parent=0 // pred_check
    %p16 = pneg %p15
  $region15: #{forward.27} parent=0 // pred_check_branch
    %18 = sbr.rel (%p16) target = $region17
  $region16: #{forward.27} parent=0 // pred_region
    %19 = vst [vmem:[#allocation2] sm:$0xff] 0.0
    %20 = vst [vmem:[#allocation2 + $0x8] sm:$0xff] 0.0
    %21 = vst [vmem:[#allocation2 + $0x10] sm:$0xff] 0.0
    %22 = vst [vmem:[#allocation2 + $0x18] sm:$0xff] 0.0
    %23 = vst [vmem:[#allocation2 + $0x20] sm:$0xff] 0.0
    %24 = vst [vmem:[#allocation2 + $0x28] sm:$0xff] 0.0
  $region17: #{forward.27} parent=0 // pred_fallthru
    _
  %v25 = vld [vmem:[#allocation2] sm:$0xff]
  %v26 = vld [vmem:[#allocation2 + $0x8] sm:$0xff]
  %v27 = vld [vmem:[#allocation2 + $0x10] sm:$0xff]
  %v28 = vld [vmem:[#allocation2 + $0x18] sm:$0xff]
  %v29 = vld [vmem:[#allocation2 + $0x20] sm:$0xff]
  %v30 = vld [vmem:[#allocation2 + $0x28] sm:$0xff]
  %v31 = vld [vmem:[%s0] sm:$0xf]
  %v32 = vld [vmem:[%s0 + $0x4] sm:$0xf]
  %v33 = vld [vmem:[%s1] sm:$0xff]
  %v34 = vld [vmem:[%s1 + $0x8] sm:$0xf]
  %v35 = vld [vmem:[%s1 + $0xc] sm:$0xff]
  %v36 = vld [vmem:[%s1 + $0x14] sm:$0xf]
  %v37 = vld [vmem:[%s1 + $0x18] sm:$0xff]
  %v38 = vld [vmem:[%s1 + $0x20] sm:$0xf]
  %v39 = vld [vmem:[%s1 + $0x24] sm:$0xff]
  %v40 = vld [vmem:[%s1 + $0x2c] sm:$0xf]
  %v41 = vld [vmem:[%s1 + $0x30] sm:$0xff]
  %v42 = vld [vmem:[%s1 + $0x38] sm:$0xf]
  %v43 = vld [vmem:[%s1 + $0x3c] sm:$0xff]
  %v44 = vld [vmem:[%s1 + $0x44] sm:$0xf]
  %v45 = vld [vmem:[%s1 + $0x48] sm:$0xff]
  %v46 = vld [vmem:[%s1 + $0x50] sm:$0xf]
  %v47 = vld [vmem:[%s1 + $0x54] sm:$0xff]
  %v48 = vld [vmem:[%s1 + $0x5c] sm:$0xf]
  %v49 = vld [vmem:[%s1 + $0x60] sm:$0xff]
  %v50 = vld [vmem:[%s1 + $0x68] sm:$0xf]
  %v51 = vld [vmem:[%s1 + $0x6c] sm:$0xff]
  %v52 = vld [vmem:[%s1 + $0x74] sm:$0xf]
  %v53 = vld [vmem:[%s1 + $0x78] sm:$0xff]
  %v54 = vld [vmem:[%s1 + $0x80] sm:$0xf]
  %v55 = vld [vmem:[%s1 + $0x84] sm:$0xff]
  %v56 = vld [vmem:[%s1 + $0x8c] sm:$0xf]
  %v57 = vld [vmem:[%s1 + $0x90] sm:$0xff]
  %v58 = vld [vmem:[%s1 + $0x98] sm:$0xf]
  %v59 = vld [vmem:[%s1 + $0x9c] sm:$0xff]
  %v60 = vld [vmem:[%s1 + $0xa4] sm:$0xf]
  %v61 = vld [vmem:[%s1 + $0xa8] sm:$0xff]
  %v62 = vld [vmem:[%s1 + $0xb0] sm:$0xf]
  %v63 = vld [vmem:[%s1 + $0xb4] sm:$0xff]
  %v64 = vld [vmem:[%s1 + $0xbc] sm:$0xf]
  %v67 = vunpack.c.l.b16 %v31
  %v68 = vunpack.c.l.b16 %v32
  %v69 = vpack.c.b16 %v68, %v67
  %v103 = vunpack.c.l.b16 %v33
  %v104 = vunpack.c.h.b16 %v33
  %v105 = vunpack.c.l.b16 %v34
  %v106 = vunpack.c.l.b16 %v35
  %v107 = vunpack.c.h.b16 %v35
  %v108 = vunpack.c.l.b16 %v36
  %v109 = vunpack.c.l.b16 %v37
  %v110 = vunpack.c.h.b16 %v37
  %v111 = vunpack.c.l.b16 %v38
  %v112 = vunpack.c.l.b16 %v39
  %v113 = vunpack.c.h.b16 %v39
  %v114 = vunpack.c.l.b16 %v40
  %v115 = vunpack.c.l.b16 %v41
  %v116 = vunpack.c.h.b16 %v41
  %v117 = vunpack.c.l.b16 %v42
  %v118 = vunpack.c.l.b16 %v43
  %v119 = vunpack.c.h.b16 %v43
  %v120 = vunpack.c.l.b16 %v44
  %v121 = vunpack.c.l.b16 %v45
  %v122 = vunpack.c.h.b16 %v45
  %v123 = vunpack.c.l.b16 %v46
  %v124 = vunpack.c.l.b16 %v47
  %v125 = vunpack.c.h.b16 %v47
  %v126 = vunpack.c.l.b16 %v48
  %v127 = vunpack.c.l.b16 %v49
  %v128 = vunpack.c.h.b16 %v49
  %v129 = vunpack.c.l.b16 %v50
  %v130 = vunpack.c.l.b16 %v51
  %v131 = vunpack.c.h.b16 %v51
  %v132 = vunpack.c.l.b16 %v52
  %v133 = vunpack.c.l.b16 %v53
  %v134 = vunpack.c.h.b16 %v53
  %v135 = vunpack.c.l.b16 %v54
  %v136 = vunpack.c.l.b16 %v55
  %v137 = vunpack.c.h.b16 %v55
  %v138 = vunpack.c.l.b16 %v56
  %v139 = vunpack.c.l.b16 %v57
  %v140 = vunpack.c.h.b16 %v57
  %v141 = vunpack.c.l.b16 %v58
  %v142 = vunpack.c.l.b16 %v59
  %v143 = vunpack.c.h.b16 %v59
  %v144 = vunpack.c.l.b16 %v60
  %v145 = vunpack.c.l.b16 %v61
  %v146 = vunpack.c.h.b16 %v61
  %v147 = vunpack.c.l.b16 %v62
  %v148 = vunpack.c.l.b16 %v63
  %v149 = vunpack.c.h.b16 %v63
  %v150 = vunpack.c.l.b16 %v64
  %v151 = vpack.c.b16 %v106, %v103
  %v152 = vpack.c.b16 %v107, %v104
  %v153 = vpack.c.b16 %v108, %v105
  %v154 = vpack.c.b16 %v112, %v109
  %v155 = vpack.c.b16 %v113, %v110
  %v156 = vpack.c.b16 %v114, %v111
  %v157 = vpack.c.b16 %v118, %v115
  %v158 = vpack.c.b16 %v119, %v116
  %v159 = vpack.c.b16 %v120, %v117
  %v160 = vpack.c.b16 %v124, %v121
  %v161 = vpack.c.b16 %v125, %v122
  %v162 = vpack.c.b16 %v126, %v123
  %v163 = vpack.c.b16 %v130, %v127
  %v164 = vpack.c.b16 %v131, %v128
  %v165 = vpack.c.b16 %v132, %v129
  %v166 = vpack.c.b16 %v136, %v133
  %v167 = vpack.c.b16 %v137, %v134
  %v168 = vpack.c.b16 %v138, %v135
  %v169 = vpack.c.b16 %v142, %v139
  %v170 = vpack.c.b16 %v143, %v140
  %v171 = vpack.c.b16 %v144, %v141
  %v172 = vpack.c.b16 %v148, %v145
  %v173 = vpack.c.b16 %v149, %v146
  %v174 = vpack.c.b16 %v150, %v147
  %199 = vmatprep.subr.bf16.mxu0 %v152
  %200 = vmatpush1.bf16.msra.mxu0 %v151
  %201 = vmatprep.subr.bf16.mxu0 %v155
  %202 = vmatpush1.bf16.msra.mxu0 %v154
  %203 = vmatprep.subr.bf16.mxu0 %v158
  %204 = vmatpush1.bf16.msra.mxu0 %v157
  %205 = vmatprep.subr.bf16.mxu0 %v161
  %206 = vmatpush1.bf16.msra.mxu0 %v160
  %207 = vmatprep.subr.bf16.mxu0 %v164
  %208 = vmatpush1.bf16.msra.mxu0 %v163
  %209 = vmatprep.subr.bf16.mxu0 %v167
  %210 = vmatpush1.bf16.msra.mxu0 %v166
  %211 = vmatprep.subr.bf16.mxu0 %v170
  %212 = vmatpush1.bf16.msra.mxu0 %v169
  %213 = vmatprep.subr.bf16.mxu0 %v173
  %214 = vmatpush1.bf16.msra.mxu0 %v172
  %215 = vmatprep.subr.bf16.mxu0 0
  %216 = vmatpush1.bf16.msra.mxu0 0
  %217 = vmatprep.subr.bf16.mxu0 0
  %218 = vmatpush1.bf16.msra.mxu0 0
  %219 = vmatprep.subr.bf16.mxu0 0
  %220 = vmatpush1.bf16.msra.mxu0 0
  %221 = vmatprep.subr.bf16.mxu0 0
  %222 = vmatpush1.bf16.msra.mxu0 0
  %223 = vmatprep.subr.bf16.mxu0 0
  %224 = vmatpush1.bf16.msra.mxu0 0
  %225 = vmatprep.subr.bf16.mxu0 0
  %226 = vmatpush1.bf16.msra.mxu0 0
  %227 = vmatprep.subr.bf16.mxu0 0
  %228 = vmatpush1.bf16.msra.mxu0 0
  %229 = vmatprep.subr.bf16.mxu0 0
  %230 = vmatpush1.bf16.msra.mxu0 0
  %231 = vmatprep.mubr.bf16.mxu0 0
  %232 = vmatmul.mubr.bf16.gmra.mrb[0].mxu0 %v69
  %v233 = vpop.f32.mrb[0].mxu0
  %v234 = vadd.f32 0.0, %v233
  %v235 = vpop.f32.mrb[0].mxu0
  %v236 = vadd.f32 0.0, %v235
  %v237 = vpop.f32.mrb[0].mxu0
  %v238 = vadd.f32 0.0, %v237
  %v239 = vpop.f32.mrb[0].mxu0
  %v240 = vadd.f32 0.0, %v239
  %241 = vdwg.mxu0
  %242 = vmatprep.subr.bf16.mxu0 0
  %243 = vmatpush1.bf16.msra.mxu0 %v153
  %244 = vmatprep.subr.bf16.mxu0 0
  %245 = vmatpush1.bf16.msra.mxu0 %v156
  %246 = vmatprep.subr.bf16.mxu0 0
  %247 = vmatpush1.bf16.msra.mxu0 %v159
  %248 = vmatprep.subr.bf16.mxu0 0
  %249 = vmatpush1.bf16.msra.mxu0 %v162
  %250 = vmatprep.subr.bf16.mxu0 0
  %251 = vmatpush1.bf16.msra.mxu0 %v165
  %252 = vmatprep.subr.bf16.mxu0 0
  %253 = vmatpush1.bf16.msra.mxu0 %v168
  %254 = vmatprep.subr.bf16.mxu0 0
  %255 = vmatpush1.bf16.msra.mxu0 %v171
  %256 = vmatprep.subr.bf16.mxu0 0
  %257 = vmatpush1.bf16.msra.mxu0 %v174
  %258 = vmatprep.subr.bf16.mxu0 0
  %259 = vmatpush1.bf16.msra.mxu0 0
  %260 = vmatprep.subr.bf16.mxu0 0
  %261 = vmatpush1.bf16.msra.mxu0 0
  %262 = vmatprep.subr.bf16.mxu0 0
  %263 = vmatpush1.bf16.msra.mxu0 0
  %264 = vmatprep.subr.bf16.mxu0 0
  %265 = vmatpush1.bf16.msra.mxu0 0
  %266 = vmatprep.subr.bf16.mxu0 0
  %267 = vmatpush1.bf16.msra.mxu0 0
  %268 = vmatprep.subr.bf16.mxu0 0
  %269 = vmatpush1.bf16.msra.mxu0 0
  %270 = vmatprep.subr.bf16.mxu0 0
  %271 = vmatpush1.bf16.msra.mxu0 0
  %272 = vmatprep.subr.bf16.mxu0 0
  %273 = vmatpush1.bf16.msra.mxu0 0
  %274 = vmatprep.mubr.bf16.mxu0 0
  %275 = vmatmul.mubr.bf16.gmra.mrb[0].mxu0 %v69
  %v276 = vpop.f32.mrb[0].mxu0
  %v277 = vadd.f32 0.0, %v276
  %v278 = vpop.f32.mrb[0].mxu0
  %v279 = vpop.f32.mrb[0].mxu0
  %v280 = vadd.f32 0.0, %v279
  %v281 = vpop.f32.mrb[0].mxu0
  %282 = vdwg.mxu0
  %v283 = vadd.f32 %v25, %v234
  %v284 = vadd.f32 %v26, %v236
  %v285 = vadd.f32 %v27, %v277
  %v286 = vadd.f32 %v28, %v238
  %v287 = vadd.f32 %v29, %v240
  %v288 = vadd.f32 %v30, %v280
  %289 = vst [vmem:[#allocation2] sm:$0xff] %v283
  %290 = vst [vmem:[#allocation2 + $0x8] sm:$0xff] %v284
  %291 = vst [vmem:[#allocation2 + $0x10] sm:$0xff] %v285
  %292 = vst [vmem:[#allocation2 + $0x18] sm:$0xff] %v286
  %293 = vst [vmem:[#allocation2 + $0x20] sm:$0xff] %v287
  %294 = vst [vmem:[#allocation2 + $0x28] sm:$0xff] %v288
  // Predicated region
  $region18: #{forward.27} parent=0 // pred_check
    %p295 = pneg %p15
  $region19: #{forward.27} parent=0 // pred_check_branch
    %297 = sbr.rel (%p295) target = $region21
  $region20: #{forward.27} parent=0 // pred_region
    %v298 = vld [vmem:[#allocation2] sm:$0xff]
    %v299 = vld [vmem:[#allocation2 + $0x8] sm:$0xff]
    %v300 = vld [vmem:[#allocation2 + $0x10] sm:$0xff]
    %v301 = vld [vmem:[#allocation2 + $0x18] sm:$0xff]
    %v302 = vld [vmem:[#allocation2 + $0x20] sm:$0xff]
    %v303 = vld [vmem:[#allocation2 + $0x28] sm:$0xff]
    %v304 = vld [vmem:[%s2] sm:$0x7]
    %v306 = vlaneseq
    %v307 = vshrl.u32 %v306, 7
    %v308 = vsub.s32 0, %v307
    %v309 = vrot.slane %v304, %v308
    %v310 = vlaneseq
    %v311 = vshrl.u32 %v310, 7
    %v312 = vsub.s32 1, %v311
    %v313 = vrot.slane %v304, %v312
    %v314 = vlaneseq
    %v315 = vshrl.u32 %v314, 7
    %v316 = vsub.s32 2, %v315
    %v317 = vrot.slane %v304, %v316
    %v321 = vadd.f32 %v298, %v309
    %v322 = vadd.f32 %v299, %v313
    %v323 = vadd.f32 %v300, %v317
    %v324 = vadd.f32 %v301, %v309
    %v325 = vadd.f32 %v302, %v313
    %v326 = vadd.f32 %v303, %v317
    %327 = vst [vmem:[%s3] sm:$0xff] %v321
    %328 = vst [vmem:[%s3 + $0x8] sm:$0xff] %v322
    %329 = vst [vmem:[%s3 + $0x10] sm:$0xff] %v323
    %330 = vst [vmem:[%s3 + $0x18] sm:$0xff] %v324
    %331 = vst [vmem:[%s3 + $0x20] sm:$0xff] %v325
    %332 = vst [vmem:[%s3 + $0x28] sm:$0xff] %v326
  $region21: #{forward.27} parent=0 // pred_fallthru
    _
  // Predicated region
  $region22: #{forward.27} parent=0 // pred_check
    _
  $region23: #{forward.27} parent=0 // pred_check_branch
    %334 = sbr.rel (0) target = $region25
  $region24: #{forward.27} parent=0 // pred_region
    _
  $region25: #{forward.27} parent=0 // pred_fallthru
    _
  // Predicated region
  $region26: #{forward.27} parent=0 // pred_check
    _
  $region27: #{forward.27} parent=0 // pred_check_branch
    %336 = sbr.rel (0) target = $region29
  $region28: #{forward.27} parent=0 // pred_region
    _
  $region29: #{forward.27} parent=0 // pred_fallthru
    _

// kernel: forward.24
$region0: #{forward.24}
  #allocation0 [shape = 'u32[]', space=smem, size = 0x4, offset = 0x4, fixed_abs, tag = 'smem constant byte address 0x4 - core index']
  #allocation1 [shape = 'u32[144,128]{1,0:T(1,128)}', space=vmem, size = 0x12000, scoped, tag = 'internal scratch']
  #allocation2 [shape = 'f32[32,512]{1,0:T(8,128)}', space=vmem, size = 0x10000, scoped, tag = 'scratch operand']
  %s0 = inlined_call_operand.vmem [shape: bf16[32,128], index: 0, kind: input, shape index: {}]
  %s1 = inlined_call_operand.vmem [shape: bf16[128,512], index: 1, kind: input, shape index: {}]
  %s2 = inlined_call_operand.vmem [shape: f32[1,512], index: 2, kind: input, shape index: {}]
  %s3 = inlined_call_operand.vmem [shape: f32[32,512], index: 3, kind: output, shape index: {}]
  %s4 = sld [smem:[#allocation0]]
  $region30: #{forward.24} parent=0
    _
  %s6 = ssub.s32 1, %s4
  %s7 = scalar_select 0, %s6, %s4
  // Predicated region
  $region2: #{forward.24} parent=0 // pred_check
    _
  $region3: #{forward.24} parent=0 // pred_check_branch
    %9 = sbr.rel (0) target = $region5
  $region4: #{forward.24} parent=0 // pred_region
    _
  $region5: #{forward.24} parent=0 // pred_fallthru
    _
  // Predicated region
  $region6: #{forward.24} parent=0 // pred_check
    _
  $region7: #{forward.24} parent=0 // pred_check_branch
    %11 = sbr.rel (0) target = $region9
  $region8: #{forward.24} parent=0 // pred_region
    _
  $region9: #{forward.24} parent=0 // pred_fallthru
    _
  // Predicated region
  $region10: #{forward.24} parent=0 // pred_check
    _
  $region11: #{forward.24} parent=0 // pred_check_branch
    %13 = sbr.rel (0) target = $region13
  $region12: #{forward.24} parent=0 // pred_region
    _
  $region13: #{forward.24} parent=0 // pred_fallthru
    _
  %p15 = scmp.eq.s32.totalorder 0, 0
  // Predicated region
  $region14: #{forward.24} parent=0 // pred_check
    %p16 = pneg %p15
  $region15: #{forward.24} parent=0 // pred_check_branch
    %18 = sbr.rel (%p16) target = $region17
  $region16: #{forward.24} parent=0 // pred_region
    %19 = vst [vmem:[#allocation2] sm:$0xff] 0.0
    %20 = vst [vmem:[#allocation2 + $0x8] sm:$0xff] 0.0
    %21 = vst [vmem:[#allocation2 + $0x10] sm:$0xff] 0.0
    %22 = vst [vmem:[#allocation2 + $0x18] sm:$0xff] 0.0
    %23 = vst [vmem:[#allocation2 + $0x20] sm:$0xff] 0.0
    %24 = vst [vmem:[#allocation2 + $0x28] sm:$0xff] 0.0
    %25 = vst [vmem:[#allocation2 + $0x30] sm:$0xff] 0.0
    %26 = vst [vmem:[#allocation2 + $0x38] sm:$0xff] 0.0
    %27 = vst [vmem:[#allocation2 + $0x40] sm:$0xff] 0.0
    %28 = vst [vmem:[#allocation2 + $0x48] sm:$0xff] 0.0
    %29 = vst [vmem:[#allocation2 + $0x50] sm:$0xff] 0.0
    %30 = vst [vmem:[#allocation2 + $0x58] sm:$0xff] 0.0
    %31 = vst [vmem:[#allocation2 + $0x60] sm:$0xff] 0.0
    %32 = vst [vmem:[#allocation2 + $0x68] sm:$0xff] 0.0
    %33 = vst [vmem:[#allocation2 + $0x70] sm:$0xff] 0.0
    %34 = vst [vmem:[#allocation2 + $0x78] sm:$0xff] 0.0
  $region17: #{forward.24} parent=0 // pred_fallthru
    _
  %v35 = vld [vmem:[#allocation2] sm:$0xff]
  %v36 = vld [vmem:[#allocation2 + $0x8] sm:$0xff]
  %v37 = vld [vmem:[#allocation2 + $0x10] sm:$0xff]
  %v38 = vld [vmem:[#allocation2 + $0x18] sm:$0xff]
  %v39 = vld [vmem:[#allocation2 + $0x20] sm:$0xff]
  %v40 = vld [vmem:[#allocation2 + $0x28] sm:$0xff]
  %v41 = vld [vmem:[#allocation2 + $0x30] sm:$0xff]
  %v42 = vld [vmem:[#allocation2 + $0x38] sm:$0xff]
  %v43 = vld [vmem:[#allocation2 + $0x40] sm:$0xff]
  %v44 = vld [vmem:[#allocation2 + $0x48] sm:$0xff]
  %v45 = vld [vmem:[#allocation2 + $0x50] sm:$0xff]
  %v46 = vld [vmem:[#allocation2 + $0x58] sm:$0xff]
  %v47 = vld [vmem:[#allocation2 + $0x60] sm:$0xff]
  %v48 = vld [vmem:[#allocation2 + $0x68] sm:$0xff]
  %v49 = vld [vmem:[#allocation2 + $0x70] sm:$0xff]
  %v50 = vld [vmem:[#allocation2 + $0x78] sm:$0xff]
  %v51 = vld [vmem:[%s0] sm:$0xf]
  %v52 = vld [vmem:[%s0 + $0x4] sm:$0xf]
  %v53 = vld [vmem:[%s0 + $0x8] sm:$0xf]
  %v54 = vld [vmem:[%s0 + $0xc] sm:$0xf]
  %v55 = vld [vmem:[%s1] sm:$0xff]
  %v56 = vld [vmem:[%s1 + $0x8] sm:$0xff]
  %v57 = vld [vmem:[%s1 + $0x10] sm:$0xff]
  %v58 = vld [vmem:[%s1 + $0x18] sm:$0xff]
  %v59 = vld [vmem:[%s1 + $0x20] sm:$0xff]
  %v60 = vld [vmem:[%s1 + $0x28] sm:$0xff]
  %v61 = vld [vmem:[%s1 + $0x30] sm:$0xff]
  %v62 = vld [vmem:[%s1 + $0x38] sm:$0xff]
  %v63 = vld [vmem:[%s1 + $0x40] sm:$0xff]
  %v64 = vld [vmem:[%s1 + $0x48] sm:$0xff]
  %v65 = vld [vmem:[%s1 + $0x50] sm:$0xff]
  %v66 = vld [vmem:[%s1 + $0x58] sm:$0xff]
  %v67 = vld [vmem:[%s1 + $0x60] sm:$0xff]
  %v68 = vld [vmem:[%s1 + $0x68] sm:$0xff]
  %v69 = vld [vmem:[%s1 + $0x70] sm:$0xff]
  %v70 = vld [vmem:[%s1 + $0x78] sm:$0xff]
  %v71 = vld [vmem:[%s1 + $0x80] sm:$0xff]
  %v72 = vld [vmem:[%s1 + $0x88] sm:$0xff]
  %v73 = vld [vmem:[%s1 + $0x90] sm:$0xff]
  %v74 = vld [vmem:[%s1 + $0x98] sm:$0xff]
  %v75 = vld [vmem:[%s1 + $0xa0] sm:$0xff]
  %v76 = vld [vmem:[%s1 + $0xa8] sm:$0xff]
  %v77 = vld [vmem:[%s1 + $0xb0] sm:$0xff]
  %v78 = vld [vmem:[%s1 + $0xb8] sm:$0xff]
  %v79 = vld [vmem:[%s1 + $0xc0] sm:$0xff]
  %v80 = vld [vmem:[%s1 + $0xc8] sm:$0xff]
  %v81 = vld [vmem:[%s1 + $0xd0] sm:$0xff]
  %v82 = vld [vmem:[%s1 + $0xd8] sm:$0xff]
  %v83 = vld [vmem:[%s1 + $0xe0] sm:$0xff]
  %v84 = vld [vmem:[%s1 + $0xe8] sm:$0xff]
  %v85 = vld [vmem:[%s1 + $0xf0] sm:$0xff]
  %v86 = vld [vmem:[%s1 + $0xf8] sm:$0xff]
  %v91 = vunpack.c.l.b16 %v51
  %v92 = vunpack.c.l.b16 %v52
  %v93 = vunpack.c.l.b16 %v53
  %v94 = vunpack.c.l.b16 %v54
  %v95 = vpack.c.b16 %v92, %v91
  %v96 = vpack.c.b16 %v94, %v93
  %v131 = vunpack.c.l.b16 %v55
  %v132 = vunpack.c.h.b16 %v55
  %v133 = vunpack.c.l.b16 %v56
  %v134 = vunpack.c.h.b16 %v56
  %v135 = vunpack.c.l.b16 %v57
  %v136 = vunpack.c.h.b16 %v57
  %v137 = vunpack.c.l.b16 %v58
  %v138 = vunpack.c.h.b16 %v58
  %v139 = vunpack.c.l.b16 %v59
  %v140 = vunpack.c.h.b16 %v59
  %v141 = vunpack.c.l.b16 %v60
  %v142 = vunpack.c.h.b16 %v60
  %v143 = vunpack.c.l.b16 %v61
  %v144 = vunpack.c.h.b16 %v61
  %v145 = vunpack.c.l.b16 %v62
  %v146 = vunpack.c.h.b16 %v62
  %v147 = vunpack.c.l.b16 %v63
  %v148 = vunpack.c.h.b16 %v63
  %v149 = vunpack.c.l.b16 %v64
  %v150 = vunpack.c.h.b16 %v64
  %v151 = vunpack.c.l.b16 %v65
  %v152 = vunpack.c.h.b16 %v65
  %v153 = vunpack.c.l.b16 %v66
  %v154 = vunpack.c.h.b16 %v66
  %v155 = vunpack.c.l.b16 %v67
  %v156 = vunpack.c.h.b16 %v67
  %v157 = vunpack.c.l.b16 %v68
  %v158 = vunpack.c.h.b16 %v68
  %v159 = vunpack.c.l.b16 %v69
  %v160 = vunpack.c.h.b16 %v69
  %v161 = vunpack.c.l.b16 %v70
  %v162 = vunpack.c.h.b16 %v70
  %v163 = vunpack.c.l.b16 %v71
  %v164 = vunpack.c.h.b16 %v71
  %v165 = vunpack.c.l.b16 %v72
  %v166 = vunpack.c.h.b16 %v72
  %v167 = vunpack.c.l.b16 %v73
  %v168 = vunpack.c.h.b16 %v73
  %v169 = vunpack.c.l.b16 %v74
  %v170 = vunpack.c.h.b16 %v74
  %v171 = vunpack.c.l.b16 %v75
  %v172 = vunpack.c.h.b16 %v75
  %v173 = vunpack.c.l.b16 %v76
  %v174 = vunpack.c.h.b16 %v76
  %v175 = vunpack.c.l.b16 %v77
  %v176 = vunpack.c.h.b16 %v77
  %v177 = vunpack.c.l.b16 %v78
  %v178 = vunpack.c.h.b16 %v78
  %v179 = vunpack.c.l.b16 %v79
  %v180 = vunpack.c.h.b16 %v79
  %v181 = vunpack.c.l.b16 %v80
  %v182 = vunpack.c.h.b16 %v80
  %v183 = vunpack.c.l.b16 %v81
  %v184 = vunpack.c.h.b16 %v81
  %v185 = vunpack.c.l.b16 %v82
  %v186 = vunpack.c.h.b16 %v82
  %v187 = vunpack.c.l.b16 %v83
  %v188 = vunpack.c.h.b16 %v83
  %v189 = vunpack.c.l.b16 %v84
  %v190 = vunpack.c.h.b16 %v84
  %v191 = vunpack.c.l.b16 %v85
  %v192 = vunpack.c.h.b16 %v85
  %v193 = vunpack.c.l.b16 %v86
  %v194 = vunpack.c.h.b16 %v86
  %v195 = vpack.c.b16 %v135, %v131
  %v196 = vpack.c.b16 %v136, %v132
  %v197 = vpack.c.b16 %v137, %v133
  %v198 = vpack.c.b16 %v138, %v134
  %v199 = vpack.c.b16 %v143, %v139
  %v200 = vpack.c.b16 %v144, %v140
  %v201 = vpack.c.b16 %v145, %v141
  %v202 = vpack.c.b16 %v146, %v142
  %v203 = vpack.c.b16 %v151, %v147
  %v204 = vpack.c.b16 %v152, %v148
  %v205 = vpack.c.b16 %v153, %v149
  %v206 = vpack.c.b16 %v154, %v150
  %v207 = vpack.c.b16 %v159, %v155
  %v208 = vpack.c.b16 %v160, %v156
  %v209 = vpack.c.b16 %v161, %v157
  %v210 = vpack.c.b16 %v162, %v158
  %v211 = vpack.c.b16 %v167, %v163
  %v212 = vpack.c.b16 %v168, %v164
  %v213 = vpack.c.b16 %v169, %v165
  %v214 = vpack.c.b16 %v170, %v166
  %v215 = vpack.c.b16 %v175, %v171
  %v216 = vpack.c.b16 %v176, %v172
  %v217 = vpack.c.b16 %v177, %v173
  %v218 = vpack.c.b16 %v178, %v174
  %v219 = vpack.c.b16 %v183, %v179
  %v220 = vpack.c.b16 %v184, %v180
  %v221 = vpack.c.b16 %v185, %v181
  %v222 = vpack.c.b16 %v186, %v182
  %v223 = vpack.c.b16 %v191, %v187
  %v224 = vpack.c.b16 %v192, %v188
  %v225 = vpack.c.b16 %v193, %v189
  %v226 = vpack.c.b16 %v194, %v190
  %259 = vmatprep.subr.bf16.mxu0 %v196
  %260 = vmatpush1.bf16.msra.mxu0 %v195
  %261 = vmatprep.subr.bf16.mxu0 %v200
  %262 = vmatpush1.bf16.msra.mxu0 %v199
  %263 = vmatprep.subr.bf16.mxu0 %v204
  %264 = vmatpush1.bf16.msra.mxu0 %v203
  %265 = vmatprep.subr.bf16.mxu0 %v208
  %266 = vmatpush1.bf16.msra.mxu0 %v207
  %267 = vmatprep.subr.bf16.mxu0 %v212
  %268 = vmatpush1.bf16.msra.mxu0 %v211
  %269 = vmatprep.subr.bf16.mxu0 %v216
  %270 = vmatpush1.bf16.msra.mxu0 %v215
  %271 = vmatprep.subr.bf16.mxu0 %v220
  %272 = vmatpush1.bf16.msra.mxu0 %v219
  %273 = vmatprep.subr.bf16.mxu0 %v224
  %274 = vmatpush1.bf16.msra.mxu0 %v223
  %275 = vmatprep.subr.bf16.mxu0 0
  %276 = vmatpush1.bf16.msra.mxu0 0
  %277 = vmatprep.subr.bf16.mxu0 0
  %278 = vmatpush1.bf16.msra.mxu0 0
  %279 = vmatprep.subr.bf16.mxu0 0
  %280 = vmatpush1.bf16.msra.mxu0 0
  %281 = vmatprep.subr.bf16.mxu0 0
  %282 = vmatpush1.bf16.msra.mxu0 0
  %283 = vmatprep.subr.bf16.mxu0 0
  %284 = vmatpush1.bf16.msra.mxu0 0
  %285 = vmatprep.subr.bf16.mxu0 0
  %286 = vmatpush1.bf16.msra.mxu0 0
  %287 = vmatprep.subr.bf16.mxu0 0
  %288 = vmatpush1.bf16.msra.mxu0 0
  %289 = vmatprep.subr.bf16.mxu0 0
  %290 = vmatpush1.bf16.msra.mxu0 0
  %291 = vmatprep.mubr.bf16.mxu0 0
  %292 = vmatmul.mubr.bf16.gmra.mrb[0].mxu0 %v95
  %v293 = vpop.f32.mrb[0].mxu0
  %v294 = vadd.f32 0.0, %v293
  %v295 = vpop.f32.mrb[0].mxu0
  %v296 = vadd.f32 0.0, %v295
  %v297 = vpop.f32.mrb[0].mxu0
  %v298 = vadd.f32 0.0, %v297
  %v299 = vpop.f32.mrb[0].mxu0
  %v300 = vadd.f32 0.0, %v299
  %301 = vmatprep.mubr.bf16.mxu0 0
  %302 = vmatmul.mubr.bf16.gmra.mrb[0].mxu0 %v96
  %v303 = vpop.f32.mrb[0].mxu0
  %v304 = vadd.f32 0.0, %v303
  %v305 = vpop.f32.mrb[0].mxu0
  %v306 = vadd.f32 0.0, %v305
  %v307 = vpop.f32.mrb[0].mxu0
  %v308 = vadd.f32 0.0, %v307
  %v309 = vpop.f32.mrb[0].mxu0
  %v310 = vadd.f32 0.0, %v309
  %311 = vdwg.mxu0
  %312 = vmatprep.subr.bf16.mxu0 %v198
  %313 = vmatpush1.bf16.msra.mxu0 %v197
  %314 = vmatprep.subr.bf16.mxu0 %v202
  %315 = vmatpush1.bf16.msra.mxu0 %v201
  %316 = vmatprep.subr.bf16.mxu0 %v206
  %317 = vmatpush1.bf16.msra.mxu0 %v205
  %318 = vmatprep.subr.bf16.mxu0 %v210
  %319 = vmatpush1.bf16.msra.mxu0 %v209
  %320 = vmatprep.subr.bf16.mxu0 %v214
  %321 = vmatpush1.bf16.msra.mxu0 %v213
  %322 = vmatprep.subr.bf16.mxu0 %v218
  %323 = vmatpush1.bf16.msra.mxu0 %v217
  %324 = vmatprep.subr.bf16.mxu0 %v222
  %325 = vmatpush1.bf16.msra.mxu0 %v221
  %326 = vmatprep.subr.bf16.mxu0 %v226
  %327 = vmatpush1.bf16.msra.mxu0 %v225
  %328 = vmatprep.subr.bf16.mxu0 0
  %329 = vmatpush1.bf16.msra.mxu0 0
  %330 = vmatprep.subr.bf16.mxu0 0
  %331 = vmatpush1.bf16.msra.mxu0 0
  %332 = vmatprep.subr.bf16.mxu0 0
  %333 = vmatpush1.bf16.msra.mxu0 0
  %334 = vmatprep.subr.bf16.mxu0 0
  %335 = vmatpush1.bf16.msra.mxu0 0
  %336 = vmatprep.subr.bf16.mxu0 0
  %337 = vmatpush1.bf16.msra.mxu0 0
  %338 = vmatprep.subr.bf16.mxu0 0
  %339 = vmatpush1.bf16.msra.mxu0 0
  %340 = vmatprep.subr.bf16.mxu0 0
  %341 = vmatpush1.bf16.msra.mxu0 0
  %342 = vmatprep.subr.bf16.mxu0 0
  %343 = vmatpush1.bf16.msra.mxu0 0
  %344 = vmatprep.mubr.bf16.mxu0 0
  %345 = vmatmul.mubr.bf16.gmra.mrb[0].mxu0 %v95
  %v346 = vpop.f32.mrb[0].mxu0
  %v347 = vadd.f32 0.0, %v346
  %v348 = vpop.f32.mrb[0].mxu0
  %v349 = vadd.f32 0.0, %v348
  %v350 = vpop.f32.mrb[0].mxu0
  %v351 = vadd.f32 0.0, %v350
  %v352 = vpop.f32.mrb[0].mxu0
  %v353 = vadd.f32 0.0, %v352
  %354 = vmatprep.mubr.bf16.mxu0 0
  %355 = vmatmul.mubr.bf16.gmra.mrb[0].mxu0 %v96
  %v356 = vpop.f32.mrb[0].mxu0
  %v357 = vadd.f32 0.0, %v356
  %v358 = vpop.f32.mrb[0].mxu0
  %v359 = vadd.f32 0.0, %v358
  %v360 = vpop.f32.mrb[0].mxu0
  %v361 = vadd.f32 0.0, %v360
  %v362 = vpop.f32.mrb[0].mxu0
  %v363 = vadd.f32 0.0, %v362
  %364 = vdwg.mxu0
  %v365 = vadd.f32 %v35, %v294
  %v366 = vadd.f32 %v36, %v296
  %v367 = vadd.f32 %v37, %v347
  %v368 = vadd.f32 %v38, %v349
  %v369 = vadd.f32 %v39, %v298
  %v370 = vadd.f32 %v40, %v300
  %v371 = vadd.f32 %v41, %v351
  %v372 = vadd.f32 %v42, %v353
  %v373 = vadd.f32 %v43, %v304
  %v374 = vadd.f32 %v44, %v306
  %v375 = vadd.f32 %v45, %v357
  %v376 = vadd.f32 %v46, %v359
  %v377 = vadd.f32 %v47, %v308
  %v378 = vadd.f32 %v48, %v310
  %v379 = vadd.f32 %v49, %v361
  %v380 = vadd.f32 %v50, %v363
  %381 = vst [vmem:[#allocation2] sm:$0xff] %v365
  %382 = vst [vmem:[#allocation2 + $0x8] sm:$0xff] %v366
  %383 = vst [vmem:[#allocation2 + $0x10] sm:$0xff] %v367
  %384 = vst [vmem:[#allocation2 + $0x18] sm:$0xff] %v368
  %385 = vst [vmem:[#allocation2 + $0x20] sm:$0xff] %v369
  %386 = vst [vmem:[#allocation2 + $0x28] sm:$0xff] %v370
  %387 = vst [vmem:[#allocation2 + $0x30] sm:$0xff] %v371
  %388 = vst [vmem:[#allocation2 + $0x38] sm:$0xff] %v372
  %389 = vst [vmem:[#allocation2 + $0x40] sm:$0xff] %v373
  %390 = vst [vmem:[#allocation2 + $0x48] sm:$0xff] %v374
  %391 = vst [vmem:[#allocation2 + $0x50] sm:$0xff] %v375
  %392 = vst [vmem:[#allocation2 + $0x58] sm:$0xff] %v376
  %393 = vst [vmem:[#allocation2 + $0x60] sm:$0xff] %v377
  %394 = vst [vmem:[#allocation2 + $0x68] sm:$0xff] %v378
  %395 = vst [vmem:[#allocation2 + $0x70] sm:$0xff] %v379
  %396 = vst [vmem:[#allocation2 + $0x78] sm:$0xff] %v380
  // Predicated region
  $region18: #{forward.24} parent=0 // pred_check
    %p397 = pneg %p15
  $region19: #{forward.24} parent=0 // pred_check_branch
    %399 = sbr.rel (%p397) target = $region21
  $region20: #{forward.24} parent=0 // pred_region
    %v400 = vld [vmem:[#allocation2] sm:$0xff]
    %v401 = vld [vmem:[#allocation2 + $0x8] sm:$0xff]
    %v402 = vld [vmem:[#allocation2 + $0x10] sm:$0xff]
    %v403 = vld [vmem:[#allocation2 + $0x18] sm:$0xff]
    %v404 = vld [vmem:[#allocation2 + $0x20] sm:$0xff]
    %v405 = vld [vmem:[#allocation2 + $0x28] sm:$0xff]
    %v406 = vld [vmem:[#allocation2 + $0x30] sm:$0xff]
    %v407 = vld [vmem:[#allocation2 + $0x38] sm:$0xff]
    %v408 = vld [vmem:[#allocation2 + $0x40] sm:$0xff]
    %v409 = vld [vmem:[#allocation2 + $0x48] sm:$0xff]
    %v410 = vld [vmem:[#allocation2 + $0x50] sm:$0xff]
    %v411 = vld [vmem:[#allocation2 + $0x58] sm:$0xff]
    %v412 = vld [vmem:[#allocation2 + $0x60] sm:$0xff]
    %v413 = vld [vmem:[#allocation2 + $0x68] sm:$0xff]
    %v414 = vld [vmem:[#allocation2 + $0x70] sm:$0xff]
    %v415 = vld [vmem:[#allocation2 + $0x78] sm:$0xff]
    %v416 = vld [vmem:[%s2] sm:$0xf]
    %v418 = vlaneseq
    %v419 = vshrl.u32 %v418, 7
    %v420 = vsub.s32 0, %v419
    %v421 = vrot.slane %v416, %v420
    %v422 = vlaneseq
    %v423 = vshrl.u32 %v422, 7
    %v424 = vsub.s32 1, %v423
    %v425 = vrot.slane %v416, %v424
    %v426 = vlaneseq
    %v427 = vshrl.u32 %v426, 7
    %v428 = vsub.s32 2, %v427
    %v429 = vrot.slane %v416, %v428
    %v430 = vlaneseq
    %v431 = vshrl.u32 %v430, 7
    %v432 = vsub.s32 3, %v431
    %v433 = vrot.slane %v416, %v432
    %v438 = vadd.f32 %v400, %v421
    %v439 = vadd.f32 %v401, %v425
    %v440 = vadd.f32 %v402, %v429
    %v441 = vadd.f32 %v403, %v433
    %v442 = vadd.f32 %v404, %v421
    %v443 = vadd.f32 %v405, %v425
    %v444 = vadd.f32 %v406, %v429
    %v445 = vadd.f32 %v407, %v433
    %v446 = vadd.f32 %v408, %v421
    %v447 = vadd.f32 %v409, %v425
    %v448 = vadd.f32 %v410, %v429
    %v449 = vadd.f32 %v411, %v433
    %v450 = vadd.f32 %v412, %v421
    %v451 = vadd.f32 %v413, %v425
    %v452 = vadd.f32 %v414, %v429
    %v453 = vadd.f32 %v415, %v433
    %454 = vst [vmem:[%s3] sm:$0xff] %v438
    %455 = vst [vmem:[%s3 + $0x8] sm:$0xff] %v439
    %456 = vst [vmem:[%s3 + $0x10] sm:$0xff] %v440
    %457 = vst [vmem:[%s3 + $0x18] sm:$0xff] %v441
    %458 = vst [vmem:[%s3 + $0x20] sm:$0xff] %v442
    %459 = vst [vmem:[%s3 + $0x28] sm:$0xff] %v443
    %460 = vst [vmem:[%s3 + $0x30] sm:$0xff] %v444
    %461 = vst [vmem:[%s3 + $0x38] sm:$0xff] %v445
    %462 = vst [vmem:[%s3 + $0x40] sm:$0xff] %v446
    %463 = vst [vmem:[%s3 + $0x48] sm:$0xff] %v447
    %464 = vst [vmem:[%s3 + $0x50] sm:$0xff] %v448
    %465 = vst [vmem:[%s3 + $0x58] sm:$0xff] %v449
    %466 = vst [vmem:[%s3 + $0x60] sm:$0xff] %v450
    %467 = vst [vmem:[%s3 + $0x68] sm:$0xff] %v451
    %468 = vst [vmem:[%s3 + $0x70] sm:$0xff] %v452
    %469 = vst [vmem:[%s3 + $0x78] sm:$0xff] %v453
  $region21: #{forward.24} parent=0 // pred_fallthru
    _
  // Predicated region
  $region22: #{forward.24} parent=0 // pred_check
    _
  $region23: #{forward.24} parent=0 // pred_check_branch
    %471 = sbr.rel (0) target = $region25
  $region24: #{forward.24} parent=0 // pred_region
    _
  $region25: #{forward.24} parent=0 // pred_fallthru
    _
  // Predicated region
  $region26: #{forward.24} parent=0 // pred_check
    _
  $region27: #{forward.24} parent=0 // pred_check_branch
    %473 = sbr.rel (0) target = $region29
  $region28: #{forward.24} parent=0 // pred_region
    _
  $region29: #{forward.24} parent=0 // pred_fallthru
    _

// kernel: forward.28
$region0: #{forward.28}
  #allocation0 [shape = 'u32[]', space=smem, size = 0x4, offset = 0x4, fixed_abs, tag = 'smem constant byte address 0x4 - core index']
  #allocation1 [shape = 'u32[144,128]{1,0:T(1,128)}', space=vmem, size = 0x12000, scoped, tag = 'internal scratch']
  #allocation2 [shape = 'f32[8,128]{1,0:T(8,128)}', space=vmem, size = 0x1000, scoped, tag = 'scratch operand']
  %s0 = inlined_call_operand.vmem [shape: f32[8,8,384], index: 0, kind: input, shape index: {}]
  %s1 = inlined_call_operand.vmem [shape: bf16[128,384], index: 1, kind: input, shape index: {}]
  %s2 = inlined_call_operand.vmem [shape: f32[1,384], index: 2, kind: input, shape index: {}]
  %s3 = inlined_call_operand.vmem [shape: f32[8,128], index: 3, kind: input, shape index: {}]
  %s4 = inlined_call_operand.vmem [shape: f32[8,8,128], index: 4, kind: output, shape index: {0}]
  %s5 = inlined_call_operand.vmem [shape: f32[8,128], index: 5, kind: output, shape index: {1}]
  %6 = xla_tuple %s4, %s5
  %s7 = sld [smem:[#allocation0]]
  $region65: #{forward.28} parent=0
    _
  %s9 = ssub.s32 1, %s7
  %s10 = scalar_select 0, %s9, %s7
  loop: start=0, step=1, limit=10
  $region2: #{forward.28} parent=0 // loop_pre_header
    _
  $region3: #{forward.28} parent=0 // loop_header
    %s12 = sphi 0, %s16
    %p13 = scmp.ge.s32.totalorder %s12, 10
    %s22 = sphi 0, %s24
    %s25 = sphi 0, %s22
    %s26 = sphi 0, %s25
    %s42 = sphi 0, %s26
    %s46 = sphi 0, %s46
    %s48 = sphi 0, %s46
    %s49 = sphi 0, %s48
    %s63 = sphi 0, %s49
    %s67 = sphi 0, %s67
    %s69 = sphi 0, %s67
    %s70 = sphi 0, %s69
    %s84 = sphi 0, %s70
    %s88 = sphi 0, %s88
    %s90 = sphi 0, %s88
    %s91 = sphi 0, %s90
    %s105 = sphi 0, %s91
    %s111 = sphi 0, %s113
    %s114 = sphi 0, %s111
    %s115 = sphi 0, %s114
    %s131 = sphi 0, %s115
    %s135 = sphi 0, %s135
    %s137 = sphi 0, %s135
    %s138 = sphi 0, %s137
    %s152 = sphi 0, %s138
  $region4: #{forward.28} parent=0 // loop_header_branch
    %15 = sbr.rel (%p13) target = $region8
  $region5: #{forward.28} parent=0 // loop_body
    %s17 = ssub.s32 %s12, 1
    %s18 = ssub.s32 %s12, 2
    %s19 = sadd.s32 %s12, 1
    %s20 = ssub.s32 %s12, %s19
    %p21 = scmp.eq.s32.totalorder %s20, 0
    %s23 = sadd.s32 %s22, 1
    %s24 = scalar_select %p21, %s22, %s23
    %p27 = pneg %p21
    %p28 = scmp.eq.s32.totalorder %s12, 7
    %p29 = por %p27, %p28
    %p30 = scmp.ne.s32.totalorder %s22, %s25
    %p31 = scmp.eq.s32.totalorder %s12, 0
    %p32 = por %p30, %p31
    %p33 = scmp.ne.s32.totalorder %s22, %s25
    %p34 = scmp.eq.s32.totalorder %s17, 7
    %p35 = por %p33, %p34
    %p36 = scmp.ne.s32.totalorder %s25, %s26
    %p37 = scmp.eq.s32.totalorder %s17, 0
    %p38 = por %p36, %p37
    %p39 = scmp.ne.s32.totalorder %s25, %s26
    %p40 = scmp.eq.s32.totalorder %s18, 7
    %p41 = por %p39, %p40
    %p43 = scmp.ne.s32.totalorder %s26, %s42
    %p44 = scmp.eq.s32.totalorder %s18, 0
    %p45 = por %p43, %p44
    %s47 = sadd.s32 %s46, 1
    %p50 = scmp.eq.s32.totalorder %s12, 7
    %p51 = scmp.ne.s32.totalorder %s46, %s48
    %p52 = scmp.eq.s32.totalorder %s12, 0
    %p53 = por %p51, %p52
    %p54 = scmp.ne.s32.totalorder %s46, %s48
    %p55 = scmp.eq.s32.totalorder %s17, 7
    %p56 = por %p54, %p55
    %p57 = scmp.ne.s32.totalorder %s48, %s49
    %p58 = scmp.eq.s32.totalorder %s17, 0
    %p59 = por %p57, %p58
    %p60 = scmp.ne.s32.totalorder %s48, %s49
    %p61 = scmp.eq.s32.totalorder %s18, 7
    %p62 = por %p60, %p61
    %p64 = scmp.ne.s32.totalorder %s49, %s63
    %p65 = scmp.eq.s32.totalorder %s18, 0
    %p66 = por %p64, %p65
    %s68 = sadd.s32 %s67, 1
    %p71 = scmp.eq.s32.totalorder %s12, 7
    %p72 = scmp.ne.s32.totalorder %s67, %s69
    %p73 = scmp.eq.s32.totalorder %s12, 0
    %p74 = por %p72, %p73
    %p75 = scmp.ne.s32.totalorder %s67, %s69
    %p76 = scmp.eq.s32.totalorder %s17, 7
    %p77 = por %p75, %p76
    %p78 = scmp.ne.s32.totalorder %s69, %s70
    %p79 = scmp.eq.s32.totalorder %s17, 0
    %p80 = por %p78, %p79
    %p81 = scmp.ne.s32.totalorder %s69, %s70
    %p82 = scmp.eq.s32.totalorder %s18, 7
    %p83 = por %p81, %p82
    %p85 = scmp.ne.s32.totalorder %s70, %s84
    %p86 = scmp.eq.s32.totalorder %s18, 0
    %p87 = por %p85, %p86
    %s89 = sadd.s32 %s88, 1
    %p92 = scmp.eq.s32.totalorder %s12, 7
    %p93 = scmp.ne.s32.totalorder %s88, %s90
    %p94 = scmp.eq.s32.totalorder %s12, 0
    %p95 = por %p93, %p94
    %p96 = scmp.ne.s32.totalorder %s88, %s90
    %p97 = scmp.eq.s32.totalorder %s17, 7
    %p98 = por %p96, %p97
    %p99 = scmp.ne.s32.totalorder %s90, %s91
    %p100 = scmp.eq.s32.totalorder %s17, 0
    %p101 = por %p99, %p100
    %p102 = scmp.ne.s32.totalorder %s90, %s91
    %p103 = scmp.eq.s32.totalorder %s18, 7
    %p104 = por %p102, %p103
    %p106 = scmp.ne.s32.totalorder %s91, %s105
    %p107 = scmp.eq.s32.totalorder %s18, 0
    %p108 = por %p106, %p107
    %s109 = ssub.s32 %s12, %s19
    %p110 = scmp.eq.s32.totalorder %s109, 0
    %s112 = sadd.s32 %s111, 1
    %s113 = scalar_select %p110, %s111, %s112
    %p116 = pneg %p110
    %p117 = scmp.eq.s32.totalorder %s12, 7
    %p118 = por %p116, %p117
    %p119 = scmp.ne.s32.totalorder %s111, %s114
    %p120 = scmp.eq.s32.totalorder %s12, 0
    %p121 = por %p119, %p120
    %p122 = scmp.ne.s32.totalorder %s111, %s114
    %p123 = scmp.eq.s32.totalorder %s17, 7
    %p124 = por %p122, %p123
    %p125 = scmp.ne.s32.totalorder %s114, %s115
    %p126 = scmp.eq.s32.totalorder %s17, 0
    %p127 = por %p125, %p126
    %p128 = scmp.ne.s32.totalorder %s114, %s115
    %p129 = scmp.eq.s32.totalorder %s18, 7
    %p130 = por %p128, %p129
    %p132 = scmp.ne.s32.totalorder %s115, %s131
    %p133 = scmp.eq.s32.totalorder %s18, 0
    %p134 = por %p132, %p133
    %s136 = sadd.s32 %s135, 1
    %p139 = scmp.eq.s32.totalorder %s12, 7
    %p140 = scmp.ne.s32.totalorder %s135, %s137
    %p141 = scmp.eq.s32.totalorder %s12, 0
    %p142 = por %p140, %p141
    %p143 = scmp.ne.s32.totalorder %s135, %s137
    %p144 = scmp.eq.s32.totalorder %s17, 7
    %p145 = por %p143, %p144
    %p146 = scmp.ne.s32.totalorder %s137, %s138
    %p147 = scmp.eq.s32.totalorder %s17, 0
    %p148 = por %p146, %p147
    %p149 = scmp.ne.s32.totalorder %s137, %s138
    %p150 = scmp.eq.s32.totalorder %s18, 7
    %p151 = por %p149, %p150
    %p153 = scmp.ne.s32.totalorder %s138, %s152
    %p154 = scmp.eq.s32.totalorder %s18, 0
    %p155 = por %p153, %p154
    %p156 = scmp.le.s32.totalorder 1, %s12
    %p157 = scmp.lt.s32.totalorder %s12, 9
    %p158 = pnand %p156, %p157
    %p159 = pneg %p158
    // Predicated region
    $region9: #{forward.28} parent=5 // pred_check
      _
    $region10: #{forward.28} parent=5 // pred_check_branch
      %161 = sbr.rel (%p158) target = $region12
    $region11: #{forward.28} parent=5 // pred_region
      %s162 = ssub.s32 %s12, 1
      // Predicated region
      $region13: #{forward.28} parent=11 // pred_check
        %p163 = pneg %p59
      $region14: #{forward.28} parent=11 // pred_check_branch
        %165 = sbr.rel (%p163) target = $region16
      $region15: #{forward.28} parent=11 // pred_region
        _
      $region16: #{forward.28} parent=11 // pred_fallthru
        _
      // Predicated region
      $region17: #{forward.28} parent=11 // pred_check
        %p166 = pneg %p80
      $region18: #{forward.28} parent=11 // pred_check_branch
        %168 = sbr.rel (%p166) target = $region20
      $region19: #{forward.28} parent=11 // pred_region
        _
      $region20: #{forward.28} parent=11 // pred_fallthru
        _
      // Predicated region
      $region21: #{forward.28} parent=11 // pred_check
        %p169 = pneg %p101
      $region22: #{forward.28} parent=11 // pred_check_branch
        %171 = sbr.rel (%p169) target = $region24
      $region23: #{forward.28} parent=11 // pred_region
        _
      $region24: #{forward.28} parent=11 // pred_fallthru
        _
    $region12: #{forward.28} parent=5 // pred_fallthru
      _
    %p172 = scmp.lt.s32.totalorder %s12, 8
    // Predicated region
    $region25: #{forward.28} parent=5 // pred_check
      %p173 = pneg %p172
    $region26: #{forward.28} parent=5 // pred_check_branch
      %175 = sbr.rel (%p173) target = $region28
    $region27: #{forward.28} parent=5 // pred_region
      // Predicated region
      $region29: #{forward.28} parent=27 // pred_check
        %p176 = pneg %p32
      $region30: #{forward.28} parent=27 // pred_check_branch
        %178 = sbr.rel (%p176) target = $region32
      $region31: #{forward.28} parent=27 // pred_region
        %p179 = scmp.lt.s32.totalorder %s12, 7
        %s180 = scalar_select %p179, %s12, 7
        %s181 = smul.addr %s180, 3
        %s182 = smul.addr %s181, 8
        %s183 = scalar_lea.vmem %s0, %s182
      $region32: #{forward.28} parent=27 // pred_fallthru
        _
    $region28: #{forward.28} parent=5 // pred_fallthru
      _
    %p184 = scmp.le.s32.totalorder 1, %s12
    %p185 = scmp.lt.s32.totalorder %s12, 9
    %p186 = pnand %p184, %p185
    %p187 = pneg %p186
    // Predicated region
    $region33: #{forward.28} parent=5 // pred_check
      _
    $region34: #{forward.28} parent=5 // pred_check_branch
      %189 = sbr.rel (%p186) target = $region36
    $region35: #{forward.28} parent=5 // pred_region
      %s190 = ssub.s32 %s12, 1
      %p191 = scmp.lt.s32.totalorder %s17, 7
      %s192 = scalar_select %p191, %s17, 7
      %s193 = smul.addr %s192, 3
      %s194 = smul.addr %s193, 8
      %s195 = scalar_lea.vmem %s0, %s194
      %p196 = pneg %p38
      %p197 = pneg %p35
      %p198 = pneg %p59
      %p199 = pneg %p56
      %p200 = pneg %p80
      %p201 = pneg %p77
      %p202 = pneg %p101
      %p203 = pneg %p98
      %p204 = pneg %p127
      %p205 = pneg %p124
      %p206 = scmp.lt.s32.totalorder %s17, 7
      %s207 = scalar_select %p206, %s17, 7
      %s208 = smul.addr %s207, 8
      %s209 = scalar_lea.vmem %s4, %s208
      %p210 = pneg %p148
      %p211 = pneg %p145
      %p212 = scmp.lt.s32.totalorder %s17, 7
      %s213 = scalar_select %p212, %s17, 7
      %s214 = smul.addr %s213, 3
      %s215 = smul.addr %s214, 8
      %s216 = scalar_lea.vmem %s0, %s215
      %p217 = scmp.lt.s32.totalorder %s17, 7
      %s218 = scalar_select %p217, %s17, 7
      %s219 = smul.addr %s218, 8
      %s220 = scalar_lea.vmem %s4, %s219
      %p222 = scmp.eq.s32.totalorder %s17, 0
      // Predicated region
      $region37: #{forward.28} parent=35 // pred_check
        %p223 = pneg %p222
      $region38: #{forward.28} parent=35 // pred_check_branch
        %225 = sbr.rel (%p223) target = $region40
      $region39: #{forward.28} parent=35 // pred_region
        %v226 = vld [vmem:[%s3] sm:$0xff]
        %227 = vst [vmem:[#allocation2] sm:$0xff] %v226
      $region40: #{forward.28} parent=35 // pred_fallthru
        _
      %v228 = vld [vmem:[#allocation2] sm:$0xff]
      %v229 = vpack.c.bf16 %v228, %v228
      %v230 = vld [vmem:[%s1] sm:$0xff]
      %v231 = vld [vmem:[%s1 + $0x8] sm:$0xf]
      %v232 = vld [vmem:[%s1 + $0xc] sm:$0xff]
      %v233 = vld [vmem:[%s1 + $0x14] sm:$0xf]
      %v234 = vld [vmem:[%s1 + $0x18] sm:$0xff]
      %v235 = vld [vmem:[%s1 + $0x20] sm:$0xf]
      %v236 = vld [vmem:[%s1 + $0x24] sm:$0xff]
      %v237 = vld [vmem:[%s1 + $0x2c] sm:$0xf]
      %v238 = vld [vmem:[%s1 + $0x30] sm:$0xff]
      %v239 = vld [vmem:[%s1 + $0x38] sm:$0xf]
      %v240 = vld [vmem:[%s1 + $0x3c] sm:$0xff]
      %v241 = vld [vmem:[%s1 + $0x44] sm:$0xf]
      %v242 = vld [vmem:[%s1 + $0x48] sm:$0xff]
      %v243 = vld [vmem:[%s1 + $0x50] sm:$0xf]
      %v244 = vld [vmem:[%s1 + $0x54] sm:$0xff]
      %v245 = vld [vmem:[%s1 + $0x5c] sm:$0xf]
      %v246 = vld [vmem:[%s1 + $0x60] sm:$0xff]
      %v247 = vld [vmem:[%s1 + $0x68] sm:$0xf]
      %v248 = vld [vmem:[%s1 + $0x6c] sm:$0xff]
      %v249 = vld [vmem:[%s1 + $0x74] sm:$0xf]
      %v250 = vld [vmem:[%s1 + $0x78] sm:$0xff]
      %v251 = vld [vmem:[%s1 + $0x80] sm:$0xf]
      %v252 = vld [vmem:[%s1 + $0x84] sm:$0xff]
      %v253 = vld [vmem:[%s1 + $0x8c] sm:$0xf]
      %v254 = vld [vmem:[%s1 + $0x90] sm:$0xff]
      %v255 = vld [vmem:[%s1 + $0x98] sm:$0xf]
      %v256 = vld [vmem:[%s1 + $0x9c] sm:$0xff]
      %v257 = vld [vmem:[%s1 + $0xa4] sm:$0xf]
      %v258 = vld [vmem:[%s1 + $0xa8] sm:$0xff]
      %v259 = vld [vmem:[%s1 + $0xb0] sm:$0xf]
      %v260 = vld [vmem:[%s1 + $0xb4] sm:$0xff]
      %v261 = vld [vmem:[%s1 + $0xbc] sm:$0xf]
      %v262 = vld [vmem:[%s2] sm:$0x7]
      %v264 = vlaneseq
      %v265 = vshrl.u32 %v264, 7
      %v266 = vsub.s32 0, %v265
      %v267 = vrot.slane %v262, %v266
      %v268 = vlaneseq
      %v269 = vshrl.u32 %v268, 7
      %v270 = vsub.s32 1, %v269
      %v271 = vrot.slane %v262, %v270
      %v272 = vlaneseq
      %v273 = vshrl.u32 %v272, 7
      %v274 = vsub.s32 2, %v273
      %v275 = vrot.slane %v262, %v274
      %v311 = vunpack.c.l.b16 %v230
      %v312 = vunpack.c.h.b16 %v230
      %v313 = vunpack.c.l.b16 %v231
      %v314 = vunpack.c.l.b16 %v232
      %v315 = vunpack.c.h.b16 %v232
      %v316 = vunpack.c.l.b16 %v233
      %v317 = vunpack.c.l.b16 %v234
      %v318 = vunpack.c.h.b16 %v234
      %v319 = vunpack.c.l.b16 %v235
      %v320 = vunpack.c.l.b16 %v236
      %v321 = vunpack.c.h.b16 %v236
      %v322 = vunpack.c.l.b16 %v237
      %v323 = vunpack.c.l.b16 %v238
      %v324 = vunpack.c.h.b16 %v238
      %v325 = vunpack.c.l.b16 %v239
      %v326 = vunpack.c.l.b16 %v240
      %v327 = vunpack.c.h.b16 %v240
      %v328 = vunpack.c.l.b16 %v241
      %v329 = vunpack.c.l.b16 %v242
      %v330 = vunpack.c.h.b16 %v242
      %v331 = vunpack.c.l.b16 %v243
      %v332 = vunpack.c.l.b16 %v244
      %v333 = vunpack.c.h.b16 %v244
      %v334 = vunpack.c.l.b16 %v245
      %v335 = vunpack.c.l.b16 %v246
      %v336 = vunpack.c.h.b16 %v246
      %v337 = vunpack.c.l.b16 %v247
      %v338 = vunpack.c.l.b16 %v248
      %v339 = vunpack.c.h.b16 %v248
      %v340 = vunpack.c.l.b16 %v249
      %v341 = vunpack.c.l.b16 %v250
      %v342 = vunpack.c.h.b16 %v250
      %v343 = vunpack.c.l.b16 %v251
      %v344 = vunpack.c.l.b16 %v252
      %v345 = vunpack.c.h.b16 %v252
      %v346 = vunpack.c.l.b16 %v253
      %v347 = vunpack.c.l.b16 %v254
      %v348 = vunpack.c.h.b16 %v254
      %v349 = vunpack.c.l.b16 %v255
      %v350 = vunpack.c.l.b16 %v256
      %v351 = vunpack.c.h.b16 %v256
      %v352 = vunpack.c.l.b16 %v257
      %v353 = vunpack.c.l.b16 %v258
      %v354 = vunpack.c.h.b16 %v258
      %v355 = vunpack.c.l.b16 %v259
      %v356 = vunpack.c.l.b16 %v260
      %v357 = vunpack.c.h.b16 %v260
      %v358 = vunpack.c.l.b16 %v261
      %v359 = vpack.c.b16 %v314, %v311
      %v360 = vpack.c.b16 %v315, %v312
      %v361 = vpack.c.b16 %v316, %v313
      %v362 = vpack.c.b16 %v320, %v317
      %v363 = vpack.c.b16 %v321, %v318
      %v364 = vpack.c.b16 %v322, %v319
      %v365 = vpack.c.b16 %v326, %v323
      %v366 = vpack.c.b16 %v327, %v324
      %v367 = vpack.c.b16 %v328, %v325
      %v368 = vpack.c.b16 %v332, %v329
      %v369 = vpack.c.b16 %v333, %v330
      %v370 = vpack.c.b16 %v334, %v331
      %v371 = vpack.c.b16 %v338, %v335
      %v372 = vpack.c.b16 %v339, %v336
      %v373 = vpack.c.b16 %v340, %v337
      %v374 = vpack.c.b16 %v344, %v341
      %v375 = vpack.c.b16 %v345, %v342
      %v376 = vpack.c.b16 %v346, %v343
      %v377 = vpack.c.b16 %v350, %v347
      %v378 = vpack.c.b16 %v351, %v348
      %v379 = vpack.c.b16 %v352, %v349
      %v380 = vpack.c.b16 %v356, %v353
      %v381 = vpack.c.b16 %v357, %v354
      %v382 = vpack.c.b16 %v358, %v355
      %407 = vmatprep.subr.bf16.mxu0 %v360
      %408 = vmatpush1.bf16.msra.mxu0 %v359
      %409 = vmatprep.subr.bf16.mxu0 %v363
      %410 = vmatpush1.bf16.msra.mxu0 %v362
      %411 = vmatprep.subr.bf16.mxu0 %v366
      %412 = vmatpush1.bf16.msra.mxu0 %v365
      %413 = vmatprep.subr.bf16.mxu0 %v369
      %414 = vmatpush1.bf16.msra.mxu0 %v368
      %415 = vmatprep.subr.bf16.mxu0 %v372
      %416 = vmatpush1.bf16.msra.mxu0 %v371
      %417 = vmatprep.subr.bf16.mxu0 %v375
      %418 = vmatpush1.bf16.msra.mxu0 %v374
      %419 = vmatprep.subr.bf16.mxu0 %v378
      %420 = vmatpush1.bf16.msra.mxu0 %v377
      %421 = vmatprep.subr.bf16.mxu0 %v381
      %422 = vmatpush1.bf16.msra.mxu0 %v380
      %423 = vmatprep.subr.bf16.mxu0 0
      %424 = vmatpush1.bf16.msra.mxu0 0
      %425 = vmatprep.subr.bf16.mxu0 0
      %426 = vmatpush1.bf16.msra.mxu0 0
      %427 = vmatprep.subr.bf16.mxu0 0
      %428 = vmatpush1.bf16.msra.mxu0 0
      %429 = vmatprep.subr.bf16.mxu0 0
      %430 = vmatpush1.bf16.msra.mxu0 0
      %431 = vmatprep.subr.bf16.mxu0 0
      %432 = vmatpush1.bf16.msra.mxu0 0
      %433 = vmatprep.subr.bf16.mxu0 0
      %434 = vmatpush1.bf16.msra.mxu0 0
      %435 = vmatprep.subr.bf16.mxu0 0
      %436 = vmatpush1.bf16.msra.mxu0 0
      %437 = vmatprep.subr.bf16.mxu0 0
      %438 = vmatpush1.bf16.msra.mxu0 0
      %439 = vmatprep.mubr.bf16.mxu0 0
      %440 = vmatmul.mubr.bf16.gmra.mrb[0].mxu0 %v229
      %v441 = vpop.f32.mrb[0].mxu0
      %v442 = vadd.f32 %v267, %v441
      %v443 = vpop.f32.mrb[0].mxu0
      %v444 = vadd.f32 %v271, %v443
      %v445 = vpop.f32.mrb[0].mxu0
      %v446 = vpop.f32.mrb[0].mxu0
      %447 = vdwg.mxu0
      %448 = vmatprep.subr.bf16.mxu0 0
      %449 = vmatpush1.bf16.msra.mxu0 %v361
      %450 = vmatprep.subr.bf16.mxu0 0
      %451 = vmatpush1.bf16.msra.mxu0 %v364
      %452 = vmatprep.subr.bf16.mxu0 0
      %453 = vmatpush1.bf16.msra.mxu0 %v367
      %454 = vmatprep.subr.bf16.mxu0 0
      %455 = vmatpush1.bf16.msra.mxu0 %v370
      %456 = vmatprep.subr.bf16.mxu0 0
      %457 = vmatpush1.bf16.msra.mxu0 %v373
      %458 = vmatprep.subr.bf16.mxu0 0
      %459 = vmatpush1.bf16.msra.mxu0 %v376
      %460 = vmatprep.subr.bf16.mxu0 0
      %461 = vmatpush1.bf16.msra.mxu0 %v379
      %462 = vmatprep.subr.bf16.mxu0 0
      %463 = vmatpush1.bf16.msra.mxu0 %v382
      %464 = vmatprep.subr.bf16.mxu0 0
      %465 = vmatpush1.bf16.msra.mxu0 0
      %466 = vmatprep.subr.bf16.mxu0 0
      %467 = vmatpush1.bf16.msra.mxu0 0
      %468 = vmatprep.subr.bf16.mxu0 0
      %469 = vmatpush1.bf16.msra.mxu0 0
      %470 = vmatprep.subr.bf16.mxu0 0
      %471 = vmatpush1.bf16.msra.mxu0 0
      %472 = vmatprep.subr.bf16.mxu0 0
      %473 = vmatpush1.bf16.msra.mxu0 0
      %474 = vmatprep.subr.bf16.mxu0 0
      %475 = vmatpush1.bf16.msra.mxu0 0
      %476 = vmatprep.subr.bf16.mxu0 0
      %477 = vmatpush1.bf16.msra.mxu0 0
      %478 = vmatprep.subr.bf16.mxu0 0
      %479 = vmatpush1.bf16.msra.mxu0 0
      %480 = vmatprep.mubr.bf16.mxu0 0
      %481 = vmatmul.mubr.bf16.gmra.mrb[0].mxu0 %v229
      %v482 = vpop.f32.mrb[0].mxu0
      %v483 = vadd.f32 %v275, %v482
      %v484 = vpop.f32.mrb[0].mxu0
      %v485 = vpop.f32.mrb[0].mxu0
      %v486 = vpop.f32.mrb[0].mxu0
      %487 = vdwg.mxu0
      %v488 = vld [vmem:[%s216] sm:$0xff]
      %v489 = vld [vmem:[%s216 + $0x8] sm:$0xff]
      %v490 = vld [vmem:[%s216 + $0x10] sm:$0xff]
      %v491 = vadd.f32 %v488, %v442
      %v492 = vxor.u32 %v491, 2147483648
      %v493 = vmul.f32 %v492, 1.442695
      %v494 = vpow.pop %v493
      %v495 = vadd.f32 %v494, 1.0
      %v496 = vrcp.pop %v495
      %v497 = vmul.f32 1.0, %v496
      %v498 = vadd.f32 %v489, %v444
      %v499 = vxor.u32 %v498, 2147483648
      %v500 = vmul.f32 %v499, 1.442695
      %v501 = vpow.pop %v500
      %v502 = vadd.f32 %v501, 1.0
      %v503 = vrcp.pop %v502
      %v504 = vmul.f32 1.0, %v503
      %v505 = vmul.f32 %v497, %v483
      %v506 = vadd.f32 %v490, %v505
      %v507 = vtanh.pop %v506
      %v508 = vsub.f32 1.0, %v504
      %v509 = vmul.f32 %v508, %v507
      %v510 = vmul.f32 %v504, %v228
      %v511 = vadd.f32 %v509, %v510
      %512 = vst [vmem:[#allocation2] sm:$0xff] %v511
      %513 = vst [vmem:[%s220] sm:$0xff] %v511
      %p514 = scmp.eq.s32.totalorder %s17, 7
      // Predicated region
      $region41: #{forward.28} parent=35 // pred_check
        %p515 = pneg %p514
      $region42: #{forward.28} parent=35 // pred_check_branch
        %517 = sbr.rel (%p515) target = $region44
      $region43: #{forward.28} parent=35 // pred_region
        %518 = vst [vmem:[%s5] sm:$0xff] %v511
      $region44: #{forward.28} parent=35 // pred_fallthru
        _
      %p519 = scmp.lt.s32.totalorder %s17, 7
      %s520 = scalar_select %p519, %s17, 7
      %s521 = smul.addr %s520, 8
      %s522 = scalar_lea.vmem %s4, %s521
      // Predicated region
      $region45: #{forward.28} parent=35 // pred_check
        %p523 = pneg %p124
      $region46: #{forward.28} parent=35 // pred_check_branch
        %525 = sbr.rel (%p523) target = $region48
      $region47: #{forward.28} parent=35 // pred_region
        _
      $region48: #{forward.28} parent=35 // pred_fallthru
        _
      // Predicated region
      $region49: #{forward.28} parent=35 // pred_check
        %p526 = pneg %p145
      $region50: #{forward.28} parent=35 // pred_check_branch
        %528 = sbr.rel (%p526) target = $region52
      $region51: #{forward.28} parent=35 // pred_region
        _
      $region52: #{forward.28} parent=35 // pred_fallthru
        _
      // Predicated region
      $region53: #{forward.28} parent=35 // pred_check
        %p529 = pneg %p145
      $region54: #{forward.28} parent=35 // pred_check_branch
        %531 = sbr.rel (%p529) target = $region56
      $region55: #{forward.28} parent=35 // pred_region
        _
      $region56: #{forward.28} parent=35 // pred_fallthru
        _
    $region36: #{forward.28} parent=5 // pred_fallthru
      _
    %p532 = scmp.le.s32.totalorder 2, %s12
    // Predicated region
    $region57: #{forward.28} parent=5 // pred_check
      %p533 = pneg %p532
    $region58: #{forward.28} parent=5 // pred_check_branch
      %535 = sbr.rel (%p533) target = $region60
    $region59: #{forward.28} parent=5 // pred_region
      %s536 = ssub.s32 %s12, 2
      // Predicated region
      $region61: #{forward.28} parent=59 // pred_check
        %p537 = pneg %p130
      $region62: #{forward.28} parent=59 // pred_check_branch
        %539 = sbr.rel (%p537) target = $region64
      $region63: #{forward.28} parent=59 // pred_region
        %p540 = scmp.lt.s32.totalorder %s18, 7
        %s541 = scalar_select %p540, %s18, 7
        %s542 = smul.addr %s541, 8
        %s543 = scalar_lea.vmem %s4, %s542
      $region64: #{forward.28} parent=59 // pred_fallthru
        _
    $region60: #{forward.28} parent=5 // pred_fallthru
      _
  $region6: #{forward.28} parent=0 // loop_footer
    %s16 = sadd.s32 1, %s12
  $region7: #{forward.28} parent=0 // loop_footer_branch
    %11 = sbr.rel target = $region3
  $region8: #{forward.28} parent=0 // loop_exit
    _

// kernel: forward.25
$region0: #{forward.25}
  #allocation0 [shape = 'u32[]', space=smem, size = 0x4, offset = 0x4, fixed_abs, tag = 'smem constant byte address 0x4 - core index']
  #allocation1 [shape = 'u32[144,128]{1,0:T(1,128)}', space=vmem, size = 0x12000, scoped, tag = 'internal scratch']
  #allocation2 [shape = 'f32[8,128]{1,0:T(8,128)}', space=vmem, size = 0x1000, scoped, tag = 'scratch operand']
  #allocation3 [shape = 'f32[8,128]{1,0:T(8,128)}', space=vmem, size = 0x1000, scoped, tag = 'scratch operand']
  %s0 = inlined_call_operand.vmem [shape: f32[16,8,512], index: 0, kind: input, shape index: {}]
  %s1 = inlined_call_operand.vmem [shape: bf16[128,512], index: 1, kind: input, shape index: {}]
  %s2 = inlined_call_operand.vmem [shape: f32[1,512], index: 2, kind: input, shape index: {}]
  %s3 = inlined_call_operand.vmem [shape: f32[8,128], index: 3, kind: input, shape index: {}, may-alias: {3,4}]
  %s4 = inlined_call_operand.vmem [shape: f32[8,128], index: 4, kind: input, shape index: {}, may-alias: {3,4}]
  %s5 = inlined_call_operand.vmem [shape: f32[16,1,128], index: 5, kind: input, shape index: {}]
  %s6 = inlined_call_operand.vmem [shape: f32[16,8,128], index: 6, kind: output, shape index: {0}]
  %s7 = inlined_call_operand.vmem [shape: f32[8,128], index: 7, kind: output, shape index: {1}]
  %8 = xla_tuple %s6, %s7
  %s9 = sld [smem:[#allocation0]]
  $region73: #{forward.25} parent=0
    _
  %s11 = ssub.s32 1, %s9
  %s12 = scalar_select 0, %s11, %s9
  loop: start=0, step=1, limit=18
  $region2: #{forward.25} parent=0 // loop_pre_header
    _
  $region3: #{forward.25} parent=0 // loop_header
    %s14 = sphi 0, %s18
    %p15 = scmp.ge.s32.totalorder %s14, 18
    %s24 = sphi 0, %s26
    %s27 = sphi 0, %s24
    %s28 = sphi 0, %s27
    %s44 = sphi 0, %s28
    %s48 = sphi 0, %s48
    %s50 = sphi 0, %s48
    %s51 = sphi 0, %s50
    %s65 = sphi 0, %s51
    %s69 = sphi 0, %s69
    %s71 = sphi 0, %s69
    %s72 = sphi 0, %s71
    %s86 = sphi 0, %s72
    %s90 = sphi 0, %s90
    %s92 = sphi 0, %s90
    %s93 = sphi 0, %s92
    %s107 = sphi 0, %s93
    %s111 = sphi 0, %s111
    %s113 = sphi 0, %s111
    %s114 = sphi 0, %s113
    %s128 = sphi 0, %s114
    %s134 = sphi 0, %s136
    %s137 = sphi 0, %s134
    %s138 = sphi 0, %s137
    %s154 = sphi 0, %s138
    %s160 = sphi 0, %s162
    %s163 = sphi 0, %s160
    %s164 = sphi 0, %s163
    %s180 = sphi 0, %s164
    %s184 = sphi 0, %s184
    %s186 = sphi 0, %s184
    %s187 = sphi 0, %s186
    %s201 = sphi 0, %s187
  $region4: #{forward.25} parent=0 // loop_header_branch
    %17 = sbr.rel (%p15) target = $region8
  $region5: #{forward.25} parent=0 // loop_body
    %s19 = ssub.s32 %s14, 1
    %s20 = ssub.s32 %s14, 2
    %s21 = sadd.s32 %s14, 1
    %s22 = ssub.s32 %s14, %s21
    %p23 = scmp.eq.s32.totalorder %s22, 0
    %s25 = sadd.s32 %s24, 1
    %s26 = scalar_select %p23, %s24, %s25
    %p29 = pneg %p23
    %p30 = scmp.eq.s32.totalorder %s14, 15
    %p31 = por %p29, %p30
    %p32 = scmp.ne.s32.totalorder %s24, %s27
    %p33 = scmp.eq.s32.totalorder %s14, 0
    %p34 = por %p32, %p33
    %p35 = scmp.ne.s32.totalorder %s24, %s27
    %p36 = scmp.eq.s32.totalorder %s19, 15
    %p37 = por %p35, %p36
    %p38 = scmp.ne.s32.totalorder %s27, %s28
    %p39 = scmp.eq.s32.totalorder %s19, 0
    %p40 = por %p38, %p39
    %p41 = scmp.ne.s32.totalorder %s27, %s28
    %p42 = scmp.eq.s32.totalorder %s20, 15
    %p43 = por %p41, %p42
    %p45 = scmp.ne.s32.totalorder %s28, %s44
    %p46 = scmp.eq.s32.totalorder %s20, 0
    %p47 = por %p45, %p46
    %s49 = sadd.s32 %s48, 1
    %p52 = scmp.eq.s32.totalorder %s14, 15
    %p53 = scmp.ne.s32.totalorder %s48, %s50
    %p54 = scmp.eq.s32.totalorder %s14, 0
    %p55 = por %p53, %p54
    %p56 = scmp.ne.s32.totalorder %s48, %s50
    %p57 = scmp.eq.s32.totalorder %s19, 15
    %p58 = por %p56, %p57
    %p59 = scmp.ne.s32.totalorder %s50, %s51
    %p60 = scmp.eq.s32.totalorder %s19, 0
    %p61 = por %p59, %p60
    %p62 = scmp.ne.s32.totalorder %s50, %s51
    %p63 = scmp.eq.s32.totalorder %s20, 15
    %p64 = por %p62, %p63
    %p66 = scmp.ne.s32.totalorder %s51, %s65
    %p67 = scmp.eq.s32.totalorder %s20, 0
    %p68 = por %p66, %p67
    %s70 = sadd.s32 %s69, 1
    %p73 = scmp.eq.s32.totalorder %s14, 15
    %p74 = scmp.ne.s32.totalorder %s69, %s71
    %p75 = scmp.eq.s32.totalorder %s14, 0
    %p76 = por %p74, %p75
    %p77 = scmp.ne.s32.totalorder %s69, %s71
    %p78 = scmp.eq.s32.totalorder %s19, 15
    %p79 = por %p77, %p78
    %p80 = scmp.ne.s32.totalorder %s71, %s72
    %p81 = scmp.eq.s32.totalorder %s19, 0
    %p82 = por %p80, %p81
    %p83 = scmp.ne.s32.totalorder %s71, %s72
    %p84 = scmp.eq.s32.totalorder %s20, 15
    %p85 = por %p83, %p84
    %p87 = scmp.ne.s32.totalorder %s72, %s86
    %p88 = scmp.eq.s32.totalorder %s20, 0
    %p89 = por %p87, %p88
    %s91 = sadd.s32 %s90, 1
    %p94 = scmp.eq.s32.totalorder %s14, 15
    %p95 = scmp.ne.s32.totalorder %s90, %s92
    %p96 = scmp.eq.s32.totalorder %s14, 0
    %p97 = por %p95, %p96
    %p98 = scmp.ne.s32.totalorder %s90, %s92
    %p99 = scmp.eq.s32.totalorder %s19, 15
    %p100 = por %p98, %p99
    %p101 = scmp.ne.s32.totalorder %s92, %s93
    %p102 = scmp.eq.s32.totalorder %s19, 0
    %p103 = por %p101, %p102
    %p104 = scmp.ne.s32.totalorder %s92, %s93
    %p105 = scmp.eq.s32.totalorder %s20, 15
    %p106 = por %p104, %p105
    %p108 = scmp.ne.s32.totalorder %s93, %s107
    %p109 = scmp.eq.s32.totalorder %s20, 0
    %p110 = por %p108, %p109
    %s112 = sadd.s32 %s111, 1
    %p115 = scmp.eq.s32.totalorder %s14, 15
    %p116 = scmp.ne.s32.totalorder %s111, %s113
    %p117 = scmp.eq.s32.totalorder %s14, 0
    %p118 = por %p116, %p117
    %p119 = scmp.ne.s32.totalorder %s111, %s113
    %p120 = scmp.eq.s32.totalorder %s19, 15
    %p121 = por %p119, %p120
    %p122 = scmp.ne.s32.totalorder %s113, %s114
    %p123 = scmp.eq.s32.totalorder %s19, 0
    %p124 = por %p122, %p123
    %p125 = scmp.ne.s32.totalorder %s113, %s114
    %p126 = scmp.eq.s32.totalorder %s20, 15
    %p127 = por %p125, %p126
    %p129 = scmp.ne.s32.totalorder %s114, %s128
    %p130 = scmp.eq.s32.totalorder %s20, 0
    %p131 = por %p129, %p130
    %s132 = ssub.s32 %s14, %s21
    %p133 = scmp.eq.s32.totalorder %s132, 0
    %s135 = sadd.s32 %s134, 1
    %s136 = scalar_select %p133, %s134, %s135
    %p139 = pneg %p133
    %p140 = scmp.eq.s32.totalorder %s14, 15
    %p141 = por %p139, %p140
    %p142 = scmp.ne.s32.totalorder %s134, %s137
    %p143 = scmp.eq.s32.totalorder %s14, 0
    %p144 = por %p142, %p143
    %p145 = scmp.ne.s32.totalorder %s134, %s137
    %p146 = scmp.eq.s32.totalorder %s19, 15
    %p147 = por %p145, %p146
    %p148 = scmp.ne.s32.totalorder %s137, %s138
    %p149 = scmp.eq.s32.totalorder %s19, 0
    %p150 = por %p148, %p149
    %p151 = scmp.ne.s32.totalorder %s137, %s138
    %p152 = scmp.eq.s32.totalorder %s20, 15
    %p153 = por %p151, %p152
    %p155 = scmp.ne.s32.totalorder %s138, %s154
    %p156 = scmp.eq.s32.totalorder %s20, 0
    %p157 = por %p155, %p156
    %s158 = ssub.s32 %s14, %s21
    %p159 = scmp.eq.s32.totalorder %s158, 0
    %s161 = sadd.s32 %s160, 1
    %s162 = scalar_select %p159, %s160, %s161
    %p165 = pneg %p159
    %p166 = scmp.eq.s32.totalorder %s14, 15
    %p167 = por %p165, %p166
    %p168 = scmp.ne.s32.totalorder %s160, %s163
    %p169 = scmp.eq.s32.totalorder %s14, 0
    %p170 = por %p168, %p169
    %p171 = scmp.ne.s32.totalorder %s160, %s163
    %p172 = scmp.eq.s32.totalorder %s19, 15
    %p173 = por %p171, %p172
    %p174 = scmp.ne.s32.totalorder %s163, %s164
    %p175 = scmp.eq.s32.totalorder %s19, 0
    %p176 = por %p174, %p175
    %p177 = scmp.ne.s32.totalorder %s163, %s164
    %p178 = scmp.eq.s32.totalorder %s20, 15
    %p179 = por %p177, %p178
    %p181 = scmp.ne.s32.totalorder %s164, %s180
    %p182 = scmp.eq.s32.totalorder %s20, 0
    %p183 = por %p181, %p182
    %s185 = sadd.s32 %s184, 1
    %p188 = scmp.eq.s32.totalorder %s14, 15
    %p189 = scmp.ne.s32.totalorder %s184, %s186
    %p190 = scmp.eq.s32.totalorder %s14, 0
    %p191 = por %p189, %p190
    %p192 = scmp.ne.s32.totalorder %s184, %s186
    %p193 = scmp.eq.s32.totalorder %s19, 15
    %p194 = por %p192, %p193
    %p195 = scmp.ne.s32.totalorder %s186, %s187
    %p196 = scmp.eq.s32.totalorder %s19, 0
    %p197 = por %p195, %p196
    %p198 = scmp.ne.s32.totalorder %s186, %s187
    %p199 = scmp.eq.s32.totalorder %s20, 15
    %p200 = por %p198, %p199
    %p202 = scmp.ne.s32.totalorder %s187, %s201
    %p203 = scmp.eq.s32.totalorder %s20, 0
    %p204 = por %p202, %p203
    %p205 = scmp.le.s32.totalorder 1, %s14
    %p206 = scmp.lt.s32.totalorder %s14, 17
    %p207 = pnand %p205, %p206
    %p208 = pneg %p207
    // Predicated region
    $region9: #{forward.25} parent=5 // pred_check
      _
    $region10: #{forward.25} parent=5 // pred_check_branch
      %210 = sbr.rel (%p207) target = $region12
    $region11: #{forward.25} parent=5 // pred_region
      %s211 = ssub.s32 %s14, 1
      // Predicated region
      $region13: #{forward.25} parent=11 // pred_check
        %p212 = pneg %p61
      $region14: #{forward.25} parent=11 // pred_check_branch
        %214 = sbr.rel (%p212) target = $region16
      $region15: #{forward.25} parent=11 // pred_region
        _
      $region16: #{forward.25} parent=11 // pred_fallthru
        _
      // Predicated region
      $region17: #{forward.25} parent=11 // pred_check
        %p215 = pneg %p82
      $region18: #{forward.25} parent=11 // pred_check_branch
        %217 = sbr.rel (%p215) target = $region20
      $region19: #{forward.25} parent=11 // pred_region
        _
      $region20: #{forward.25} parent=11 // pred_fallthru
        _
      // Predicated region
      $region21: #{forward.25} parent=11 // pred_check
        %p218 = pneg %p103
      $region22: #{forward.25} parent=11 // pred_check_branch
        %220 = sbr.rel (%p218) target = $region24
      $region23: #{forward.25} parent=11 // pred_region
        _
      $region24: #{forward.25} parent=11 // pred_fallthru
        _
      // Predicated region
      $region25: #{forward.25} parent=11 // pred_check
        %p221 = pneg %p124
      $region26: #{forward.25} parent=11 // pred_check_branch
        %223 = sbr.rel (%p221) target = $region28
      $region27: #{forward.25} parent=11 // pred_region
        _
      $region28: #{forward.25} parent=11 // pred_fallthru
        _
    $region12: #{forward.25} parent=5 // pred_fallthru
      _
    %p224 = scmp.lt.s32.totalorder %s14, 16
    // Predicated region
    $region29: #{forward.25} parent=5 // pred_check
      %p225 = pneg %p224
    $region30: #{forward.25} parent=5 // pred_check_branch
      %227 = sbr.rel (%p225) target = $region32
    $region31: #{forward.25} parent=5 // pred_region
      // Predicated region
      $region33: #{forward.25} parent=31 // pred_check
        %p228 = pneg %p34
      $region34: #{forward.25} parent=31 // pred_check_branch
        %230 = sbr.rel (%p228) target = $region36
      $region35: #{forward.25} parent=31 // pred_region
        %p231 = scmp.lt.s32.totalorder %s14, 15
        %s232 = scalar_select %p231, %s14, 15
        %s233 = smul.addr %s232, 4
        %s234 = smul.addr %s233, 8
        %s235 = scalar_lea.vmem %s0, %s234
      $region36: #{forward.25} parent=31 // pred_fallthru
        _
      // Predicated region
      $region37: #{forward.25} parent=31 // pred_check
        %p236 = pneg %p144
      $region38: #{forward.25} parent=31 // pred_check_branch
        %238 = sbr.rel (%p236) target = $region40
      $region39: #{forward.25} parent=31 // pred_region
        %p239 = scmp.lt.s32.totalorder %s14, 15
        %s240 = scalar_select %p239, %s14, 15
        %s241 = scalar_lea.vmem %s5, %s240
      $region40: #{forward.25} parent=31 // pred_fallthru
        _
    $region32: #{forward.25} parent=5 // pred_fallthru
      _
    %p242 = scmp.le.s32.totalorder 1, %s14
    %p243 = scmp.lt.s32.totalorder %s14, 17
    %p244 = pnand %p242, %p243
    %p245 = pneg %p244
    // Predicated region
    $region41: #{forward.25} parent=5 // pred_check
      _
    $region42: #{forward.25} parent=5 // pred_check_branch
      %247 = sbr.rel (%p244) target = $region44
    $region43: #{forward.25} parent=5 // pred_region
      %s248 = ssub.s32 %s14, 1
      %p249 = scmp.lt.s32.totalorder %s19, 15
      %s250 = scalar_select %p249, %s19, 15
      %s251 = smul.addr %s250, 4
      %s252 = smul.addr %s251, 8
      %s253 = scalar_lea.vmem %s0, %s252
      %p254 = pneg %p40
      %p255 = pneg %p37
      %p256 = pneg %p61
      %p257 = pneg %p58
      %p258 = pneg %p82
      %p259 = pneg %p79
      %p260 = pneg %p103
      %p261 = pneg %p100
      %p262 = pneg %p124
      %p263 = pneg %p121
      %p264 = scmp.lt.s32.totalorder %s19, 15
      %s265 = scalar_select %p264, %s19, 15
      %s266 = scalar_lea.vmem %s5, %s265
      %p267 = pneg %p150
      %p268 = pneg %p147
      %p269 = pneg %p176
      %p270 = pneg %p173
      %p271 = scmp.lt.s32.totalorder %s19, 15
      %s272 = scalar_select %p271, %s19, 15
      %s273 = smul.addr %s272, 8
      %s274 = scalar_lea.vmem %s6, %s273
      %p275 = pneg %p197
      %p276 = pneg %p194
      %p277 = scmp.lt.s32.totalorder %s19, 15
      %s278 = scalar_select %p277, %s19, 15
      %s279 = smul.addr %s278, 4
      %s280 = smul.addr %s279, 8
      %s281 = scalar_lea.vmem %s0, %s280
      %p282 = scmp.lt.s32.totalorder %s19, 15
      %s283 = scalar_select %p282, %s19, 15
      %s284 = scalar_lea.vmem %s5, %s283
      %p285 = scmp.lt.s32.totalorder %s19, 15
      %s286 = scalar_select %p285, %s19, 15
      %s287 = smul.addr %s286, 8
      %s288 = scalar_lea.vmem %s6, %s287
      %p290 = scmp.eq.s32.totalorder %s19, 0
      // Predicated region
      $region45: #{forward.25} parent=43 // pred_check
        %p291 = pneg %p290
      $region46: #{forward.25} parent=43 // pred_check_branch
        %293 = sbr.rel (%p291) target = $region48
      $region47: #{forward.25} parent=43 // pred_region
        %v294 = vld [vmem:[%s3] sm:$0xff]
        %295 = vst [vmem:[#allocation2] sm:$0xff] %v294
        %v296 = vld [vmem:[%s4] sm:$0xff]
        %297 = vst [vmem:[#allocation3] sm:$0xff] %v296
      $region48: #{forward.25} parent=43 // pred_fallthru
        _
      %v298 = vld [vmem:[#allocation2] sm:$0xff]
      %v299 = vld [vmem:[#allocation3] sm:$0xff]
      %v300 = vpack.c.bf16 %v298, %v298
      %v301 = vld [vmem:[%s1] sm:$0xff]
      %v302 = vld [vmem:[%s1 + $0x8] sm:$0xff]
      %v303 = vld [vmem:[%s1 + $0x10] sm:$0xff]
      %v304 = vld [vmem:[%s1 + $0x18] sm:$0xff]
      %v305 = vld [vmem:[%s1 + $0x20] sm:$0xff]
      %v306 = vld [vmem:[%s1 + $0x28] sm:$0xff]
      %v307 = vld [vmem:[%s1 + $0x30] sm:$0xff]
      %v308 = vld [vmem:[%s1 + $0x38] sm:$0xff]
      %v309 = vld [vmem:[%s1 + $0x40] sm:$0xff]
      %v310 = vld [vmem:[%s1 + $0x48] sm:$0xff]
      %v311 = vld [vmem:[%s1 + $0x50] sm:$0xff]
      %v312 = vld [vmem:[%s1 + $0x58] sm:$0xff]
      %v313 = vld [vmem:[%s1 + $0x60] sm:$0xff]
      %v314 = vld [vmem:[%s1 + $0x68] sm:$0xff]
      %v315 = vld [vmem:[%s1 + $0x70] sm:$0xff]
      %v316 = vld [vmem:[%s1 + $0x78] sm:$0xff]
      %v317 = vld [vmem:[%s1 + $0x80] sm:$0xff]
      %v318 = vld [vmem:[%s1 + $0x88] sm:$0xff]
      %v319 = vld [vmem:[%s1 + $0x90] sm:$0xff]
      %v320 = vld [vmem:[%s1 + $0x98] sm:$0xff]
      %v321 = vld [vmem:[%s1 + $0xa0] sm:$0xff]
      %v322 = vld [vmem:[%s1 + $0xa8] sm:$0xff]
      %v323 = vld [vmem:[%s1 + $0xb0] sm:$0xff]
      %v324 = vld [vmem:[%s1 + $0xb8] sm:$0xff]
      %v325 = vld [vmem:[%s1 + $0xc0] sm:$0xff]
      %v326 = vld [vmem:[%s1 + $0xc8] sm:$0xff]
      %v327 = vld [vmem:[%s1 + $0xd0] sm:$0xff]
      %v328 = vld [vmem:[%s1 + $0xd8] sm:$0xff]
      %v329 = vld [vmem:[%s1 + $0xe0] sm:$0xff]
      %v330 = vld [vmem:[%s1 + $0xe8] sm:$0xff]
      %v331 = vld [vmem:[%s1 + $0xf0] sm:$0xff]
      %v332 = vld [vmem:[%s1 + $0xf8] sm:$0xff]
      %v333 = vld [vmem:[%s2] sm:$0xf]
      %v335 = vlaneseq
      %v336 = vshrl.u32 %v335, 7
      %v337 = vsub.s32 0, %v336
      %v338 = vrot.slane %v333, %v337
      %v339 = vlaneseq
      %v340 = vshrl.u32 %v339, 7
      %v341 = vsub.s32 1, %v340
      %v342 = vrot.slane %v333, %v341
      %v343 = vlaneseq
      %v344 = vshrl.u32 %v343, 7
      %v345 = vsub.s32 2, %v344
      %v346 = vrot.slane %v333, %v345
      %v347 = vlaneseq
      %v348 = vshrl.u32 %v347, 7
      %v349 = vsub.s32 3, %v348
      %v350 = vrot.slane %v333, %v349
      %v387 = vunpack.c.l.b16 %v301
      %v388 = vunpack.c.h.b16 %v301
      %v389 = vunpack.c.l.b16 %v302
      %v390 = vunpack.c.h.b16 %v302
      %v391 = vunpack.c.l.b16 %v303
      %v392 = vunpack.c.h.b16 %v303
      %v393 = vunpack.c.l.b16 %v304
      %v394 = vunpack.c.h.b16 %v304
      %v395 = vunpack.c.l.b16 %v305
      %v396 = vunpack.c.h.b16 %v305
      %v397 = vunpack.c.l.b16 %v306
      %v398 = vunpack.c.h.b16 %v306
      %v399 = vunpack.c.l.b16 %v307
      %v400 = vunpack.c.h.b16 %v307
      %v401 = vunpack.c.l.b16 %v308
      %v402 = vunpack.c.h.b16 %v308
      %v403 = vunpack.c.l.b16 %v309
      %v404 = vunpack.c.h.b16 %v309
      %v405 = vunpack.c.l.b16 %v310
      %v406 = vunpack.c.h.b16 %v310
      %v407 = vunpack.c.l.b16 %v311
      %v408 = vunpack.c.h.b16 %v311
      %v409 = vunpack.c.l.b16 %v312
      %v410 = vunpack.c.h.b16 %v312
      %v411 = vunpack.c.l.b16 %v313
      %v412 = vunpack.c.h.b16 %v313
      %v413 = vunpack.c.l.b16 %v314
      %v414 = vunpack.c.h.b16 %v314
      %v415 = vunpack.c.l.b16 %v315
      %v416 = vunpack.c.h.b16 %v315
      %v417 = vunpack.c.l.b16 %v316
      %v418 = vunpack.c.h.b16 %v316
      %v419 = vunpack.c.l.b16 %v317
      %v420 = vunpack.c.h.b16 %v317
      %v421 = vunpack.c.l.b16 %v318
      %v422 = vunpack.c.h.b16 %v318
      %v423 = vunpack.c.l.b16 %v319
      %v424 = vunpack.c.h.b16 %v319
      %v425 = vunpack.c.l.b16 %v320
      %v426 = vunpack.c.h.b16 %v320
      %v427 = vunpack.c.l.b16 %v321
      %v428 = vunpack.c.h.b16 %v321
      %v429 = vunpack.c.l.b16 %v322
      %v430 = vunpack.c.h.b16 %v322
      %v431 = vunpack.c.l.b16 %v323
      %v432 = vunpack.c.h.b16 %v323
      %v433 = vunpack.c.l.b16 %v324
      %v434 = vunpack.c.h.b16 %v324
      %v435 = vunpack.c.l.b16 %v325
      %v436 = vunpack.c.h.b16 %v325
      %v437 = vunpack.c.l.b16 %v326
      %v438 = vunpack.c.h.b16 %v326
      %v439 = vunpack.c.l.b16 %v327
      %v440 = vunpack.c.h.b16 %v327
      %v441 = vunpack.c.l.b16 %v328
      %v442 = vunpack.c.h.b16 %v328
      %v443 = vunpack.c.l.b16 %v329
      %v444 = vunpack.c.h.b16 %v329
      %v445 = vunpack.c.l.b16 %v330
      %v446 = vunpack.c.h.b16 %v330
      %v447 = vunpack.c.l.b16 %v331
      %v448 = vunpack.c.h.b16 %v331
      %v449 = vunpack.c.l.b16 %v332
      %v450 = vunpack.c.h.b16 %v332
      %v451 = vpack.c.b16 %v391, %v387
      %v452 = vpack.c.b16 %v392, %v388
      %v453 = vpack.c.b16 %v393, %v389
      %v454 = vpack.c.b16 %v394, %v390
      %v455 = vpack.c.b16 %v399, %v395
      %v456 = vpack.c.b16 %v400, %v396
      %v457 = vpack.c.b16 %v401, %v397
      %v458 = vpack.c.b16 %v402, %v398
      %v459 = vpack.c.b16 %v407, %v403
      %v460 = vpack.c.b16 %v408, %v404
      %v461 = vpack.c.b16 %v409, %v405
      %v462 = vpack.c.b16 %v410, %v406
      %v463 = vpack.c.b16 %v415, %v411
      %v464 = vpack.c.b16 %v416, %v412
      %v465 = vpack.c.b16 %v417, %v413
      %v466 = vpack.c.b16 %v418, %v414
      %v467 = vpack.c.b16 %v423, %v419
      %v468 = vpack.c.b16 %v424, %v420
      %v469 = vpack.c.b16 %v425, %v421
      %v470 = vpack.c.b16 %v426, %v422
      %v471 = vpack.c.b16 %v431, %v427
      %v472 = vpack.c.b16 %v432, %v428
      %v473 = vpack.c.b16 %v433, %v429
      %v474 = vpack.c.b16 %v434, %v430
      %v475 = vpack.c.b16 %v439, %v435
      %v476 = vpack.c.b16 %v440, %v436
      %v477 = vpack.c.b16 %v441, %v437
      %v478 = vpack.c.b16 %v442, %v438
      %v479 = vpack.c.b16 %v447, %v443
      %v480 = vpack.c.b16 %v448, %v444
      %v481 = vpack.c.b16 %v449, %v445
      %v482 = vpack.c.b16 %v450, %v446
      %515 = vmatprep.subr.bf16.mxu0 %v452
      %516 = vmatpush1.bf16.msra.mxu0 %v451
      %517 = vmatprep.subr.bf16.mxu0 %v456
      %518 = vmatpush1.bf16.msra.mxu0 %v455
      %519 = vmatprep.subr.bf16.mxu0 %v460
      %520 = vmatpush1.bf16.msra.mxu0 %v459
      %521 = vmatprep.subr.bf16.mxu0 %v464
      %522 = vmatpush1.bf16.msra.mxu0 %v463
      %523 = vmatprep.subr.bf16.mxu0 %v468
      %524 = vmatpush1.bf16.msra.mxu0 %v467
      %525 = vmatprep.subr.bf16.mxu0 %v472
      %526 = vmatpush1.bf16.msra.mxu0 %v471
      %527 = vmatprep.subr.bf16.mxu0 %v476
      %528 = vmatpush1.bf16.msra.mxu0 %v475
      %529 = vmatprep.subr.bf16.mxu0 %v480
      %530 = vmatpush1.bf16.msra.mxu0 %v479
      %531 = vmatprep.subr.bf16.mxu0 0
      %532 = vmatpush1.bf16.msra.mxu0 0
      %533 = vmatprep.subr.bf16.mxu0 0
      %534 = vmatpush1.bf16.msra.mxu0 0
      %535 = vmatprep.subr.bf16.mxu0 0
      %536 = vmatpush1.bf16.msra.mxu0 0
      %537 = vmatprep.subr.bf16.mxu0 0
      %538 = vmatpush1.bf16.msra.mxu0 0
      %539 = vmatprep.subr.bf16.mxu0 0
      %540 = vmatpush1.bf16.msra.mxu0 0
      %541 = vmatprep.subr.bf16.mxu0 0
      %542 = vmatpush1.bf16.msra.mxu0 0
      %543 = vmatprep.subr.bf16.mxu0 0
      %544 = vmatpush1.bf16.msra.mxu0 0
      %545 = vmatprep.subr.bf16.mxu0 0
      %546 = vmatpush1.bf16.msra.mxu0 0
      %547 = vmatprep.mubr.bf16.mxu0 0
      %548 = vmatmul.mubr.bf16.gmra.mrb[0].mxu0 %v300
      %v549 = vpop.f32.mrb[0].mxu0
      %v550 = vadd.f32 %v338, %v549
      %v551 = vpop.f32.mrb[0].mxu0
      %v552 = vadd.f32 %v342, %v551
      %v553 = vpop.f32.mrb[0].mxu0
      %v554 = vpop.f32.mrb[0].mxu0
      %555 = vdwg.mxu0
      %556 = vmatprep.subr.bf16.mxu0 %v454
      %557 = vmatpush1.bf16.msra.mxu0 %v453
      %558 = vmatprep.subr.bf16.mxu0 %v458
      %559 = vmatpush1.bf16.msra.mxu0 %v457
      %560 = vmatprep.subr.bf16.mxu0 %v462
      %561 = vmatpush1.bf16.msra.mxu0 %v461
      %562 = vmatprep.subr.bf16.mxu0 %v466
      %563 = vmatpush1.bf16.msra.mxu0 %v465
      %564 = vmatprep.subr.bf16.mxu0 %v470
      %565 = vmatpush1.bf16.msra.mxu0 %v469
      %566 = vmatprep.subr.bf16.mxu0 %v474
      %567 = vmatpush1.bf16.msra.mxu0 %v473
      %568 = vmatprep.subr.bf16.mxu0 %v478
      %569 = vmatpush1.bf16.msra.mxu0 %v477
      %570 = vmatprep.subr.bf16.mxu0 %v482
      %571 = vmatpush1.bf16.msra.mxu0 %v481
      %572 = vmatprep.subr.bf16.mxu0 0
      %573 = vmatpush1.bf16.msra.mxu0 0
      %574 = vmatprep.subr.bf16.mxu0 0
      %575 = vmatpush1.bf16.msra.mxu0 0
      %576 = vmatprep.subr.bf16.mxu0 0
      %577 = vmatpush1.bf16.msra.mxu0 0
      %578 = vmatprep.subr.bf16.mxu0 0
      %579 = vmatpush1.bf16.msra.mxu0 0
      %580 = vmatprep.subr.bf16.mxu0 0
      %581 = vmatpush1.bf16.msra.mxu0 0
      %582 = vmatprep.subr.bf16.mxu0 0
      %583 = vmatpush1.bf16.msra.mxu0 0
      %584 = vmatprep.subr.bf16.mxu0 0
      %585 = vmatpush1.bf16.msra.mxu0 0
      %586 = vmatprep.subr.bf16.mxu0 0
      %587 = vmatpush1.bf16.msra.mxu0 0
      %588 = vmatprep.mubr.bf16.mxu0 0
      %589 = vmatmul.mubr.bf16.gmra.mrb[0].mxu0 %v300
      %v590 = vpop.f32.mrb[0].mxu0
      %v591 = vadd.f32 %v346, %v590
      %v592 = vpop.f32.mrb[0].mxu0
      %v593 = vadd.f32 %v350, %v592
      %v594 = vpop.f32.mrb[0].mxu0
      %v595 = vpop.f32.mrb[0].mxu0
      %596 = vdwg.mxu0
      %v597 = vld [vmem:[%s281] sm:$0xff]
      %v598 = vld [vmem:[%s281 + $0x8] sm:$0xff]
      %v599 = vld [vmem:[%s281 + $0x10] sm:$0xff]
      %v600 = vld [vmem:[%s281 + $0x18] sm:$0xff]
      %v601 = vadd.f32 %v550, %v597
      %v602 = vadd.f32 %v552, %v598
      %v603 = vadd.f32 %v591, %v599
      %v604 = vadd.f32 %v593, %v600
      %v605 = vxor.u32 %v601, 2147483648
      %v606 = vmul.f32 %v605, 1.442695
      %v607 = vpow.pop %v606
      %v608 = vadd.f32 %v607, 1.0
      %v609 = vrcp.pop %v608
      %v610 = vmul.f32 1.0, %v609
      %v611 = vxor.u32 %v602, 2147483648
      %v612 = vmul.f32 %v611, 1.442695
      %v613 = vpow.pop %v612
      %v614 = vadd.f32 %v613, 1.0
      %v615 = vrcp.pop %v614
      %v616 = vmul.f32 1.0, %v615
      %v617 = vtanh.pop %v603
      %v618 = vxor.u32 %v604, 2147483648
      %v619 = vmul.f32 %v618, 1.442695
      %v620 = vpow.pop %v619
      %v621 = vadd.f32 %v620, 1.0
      %v622 = vrcp.pop %v621
      %v623 = vmul.f32 1.0, %v622
      %v624 = vmul.f32 %v616, %v299
      %v625 = vmul.f32 %v610, %v617
      %v626 = vadd.f32 %v624, %v625
      %v627 = vtanh.pop %v626
      %v628 = vmul.f32 %v623, %v627
      %629 = vst [vmem:[#allocation2] sm:$0xff] %v628
      %630 = vst [vmem:[#allocation3] sm:$0xff] %v626
      %v631 = vld [vmem:[%s284] sm:$0x1]
      %v633 = vlaneseq
      %v634 = vshrl.u32 %v633, 7
      %v635 = vsub.s32 0, %v634
      %v636 = vrot.slane %v631, %v635
      %v638 = vadd.f32 %v628, %v636
      %639 = vst [vmem:[%s288] sm:$0xff] %v638
      %p640 = scmp.eq.s32.totalorder %s19, 15
      // Predicated region
      $region49: #{forward.25} parent=43 // pred_check
        %p641 = pneg %p640
      $region50: #{forward.25} parent=43 // pred_check_branch
        %643 = sbr.rel (%p641) target = $region52
      $region51: #{forward.25} parent=43 // pred_region
        %644 = vst [vmem:[%s7] sm:$0xff] %v628
      $region52: #{forward.25} parent=43 // pred_fallthru
        _
      %p645 = scmp.lt.s32.totalorder %s19, 15
      %s646 = scalar_select %p645, %s19, 15
      %s647 = smul.addr %s646, 8
      %s648 = scalar_lea.vmem %s6, %s647
      // Predicated region
      $region53: #{forward.25} parent=43 // pred_check
        %p649 = pneg %p173
      $region54: #{forward.25} parent=43 // pred_check_branch
        %651 = sbr.rel (%p649) target = $region56
      $region55: #{forward.25} parent=43 // pred_region
        _
      $region56: #{forward.25} parent=43 // pred_fallthru
        _
      // Predicated region
      $region57: #{forward.25} parent=43 // pred_check
        %p652 = pneg %p194
      $region58: #{forward.25} parent=43 // pred_check_branch
        %654 = sbr.rel (%p652) target = $region60
      $region59: #{forward.25} parent=43 // pred_region
        _
      $region60: #{forward.25} parent=43 // pred_fallthru
        _
      // Predicated region
      $region61: #{forward.25} parent=43 // pred_check
        %p655 = pneg %p194
      $region62: #{forward.25} parent=43 // pred_check_branch
        %657 = sbr.rel (%p655) target = $region64
      $region63: #{forward.25} parent=43 // pred_region
        _
      $region64: #{forward.25} parent=43 // pred_fallthru
        _
    $region44: #{forward.25} parent=5 // pred_fallthru
      _
    %p658 = scmp.le.s32.totalorder 2, %s14
    // Predicated region
    $region65: #{forward.25} parent=5 // pred_check
      %p659 = pneg %p658
    $region66: #{forward.25} parent=5 // pred_check_branch
      %661 = sbr.rel (%p659) target = $region68
    $region67: #{forward.25} parent=5 // pred_region
      %s662 = ssub.s32 %s14, 2
      // Predicated region
      $region69: #{forward.25} parent=67 // pred_check
        %p663 = pneg %p179
      $region70: #{forward.25} parent=67 // pred_check_branch
        %665 = sbr.rel (%p663) target = $region72
      $region71: #{forward.25} parent=67 // pred_region
        %p666 = scmp.lt.s32.totalorder %s20, 15
        %s667 = scalar_select %p666, %s20, 15
        %s668 = smul.addr %s667, 8
        %s669 = scalar_lea.vmem %s6, %s668
      $region72: #{forward.25} parent=67 // pred_fallthru
        _
    $region68: #{forward.25} parent=5 // pred_fallthru
      _
  $region6: #{forward.25} parent=0 // loop_footer
    %s18 = sadd.s32 1, %s14
  $region7: #{forward.25} parent=0 // loop_footer_branch
    %13 = sbr.rel target = $region3
  $region8: #{forward.25} parent=0 // loop_exit
    _

// kernel: forward.26
$region0: #{forward.26}
  #allocation0 [shape = 'u32[]', space=smem, size = 0x4, offset = 0x4, fixed_abs, tag = 'smem constant byte address 0x4 - core index']
  #allocation1 [shape = 'u32[144,128]{1,0:T(1,128)}', space=vmem, size = 0x12000, scoped, tag = 'internal scratch']
  #allocation2 [shape = 'f32[16,128]{1,0:T(8,128)}', space=vmem, size = 0x2000, scoped, tag = 'scratch operand']
  %s0 = inlined_call_operand.vmem [shape: bf16[16,128], index: 0, kind: input, shape index: {}]
  %s1 = inlined_call_operand.vmem [shape: bf16[128,128], index: 1, kind: input, shape index: {}]
  %s2 = inlined_call_operand.vmem [shape: f32[1,128], index: 2, kind: input, shape index: {}]
  %s3 = inlined_call_operand.vmem [shape: f32[16,128], index: 3, kind: output, shape index: {}]
  %s4 = sld [smem:[#allocation0]]
  $region30: #{forward.26} parent=0
    _
  %s6 = ssub.s32 1, %s4
  %s7 = scalar_select 0, %s6, %s4
  // Predicated region
  $region2: #{forward.26} parent=0 // pred_check
    _
  $region3: #{forward.26} parent=0 // pred_check_branch
    %9 = sbr.rel (0) target = $region5
  $region4: #{forward.26} parent=0 // pred_region
    _
  $region5: #{forward.26} parent=0 // pred_fallthru
    _
  // Predicated region
  $region6: #{forward.26} parent=0 // pred_check
    _
  $region7: #{forward.26} parent=0 // pred_check_branch
    %11 = sbr.rel (0) target = $region9
  $region8: #{forward.26} parent=0 // pred_region
    _
  $region9: #{forward.26} parent=0 // pred_fallthru
    _
  // Predicated region
  $region10: #{forward.26} parent=0 // pred_check
    _
  $region11: #{forward.26} parent=0 // pred_check_branch
    %13 = sbr.rel (0) target = $region13
  $region12: #{forward.26} parent=0 // pred_region
    _
  $region13: #{forward.26} parent=0 // pred_fallthru
    _
  %p15 = scmp.eq.s32.totalorder 0, 0
  // Predicated region
  $region14: #{forward.26} parent=0 // pred_check
    %p16 = pneg %p15
  $region15: #{forward.26} parent=0 // pred_check_branch
    %18 = sbr.rel (%p16) target = $region17
  $region16: #{forward.26} parent=0 // pred_region
    %19 = vst [vmem:[#allocation2] sm:$0xff] 0.0
    %20 = vst [vmem:[#allocation2 + $0x8] sm:$0xff] 0.0
  $region17: #{forward.26} parent=0 // pred_fallthru
    _
  %v21 = vld [vmem:[#allocation2] sm:$0xff]
  %v22 = vld [vmem:[#allocation2 + $0x8] sm:$0xff]
  %v23 = vld [vmem:[%s0] sm:$0xf]
  %v24 = vld [vmem:[%s0 + $0x4] sm:$0xf]
  %v25 = vld [vmem:[%s1] sm:$0xf]
  %v26 = vld [vmem:[%s1 + $0x4] sm:$0xf]
  %v27 = vld [vmem:[%s1 + $0x8] sm:$0xf]
  %v28 = vld [vmem:[%s1 + $0xc] sm:$0xf]
  %v29 = vld [vmem:[%s1 + $0x10] sm:$0xf]
  %v30 = vld [vmem:[%s1 + $0x14] sm:$0xf]
  %v31 = vld [vmem:[%s1 + $0x18] sm:$0xf]
  %v32 = vld [vmem:[%s1 + $0x1c] sm:$0xf]
  %v33 = vld [vmem:[%s1 + $0x20] sm:$0xf]
  %v34 = vld [vmem:[%s1 + $0x24] sm:$0xf]
  %v35 = vld [vmem:[%s1 + $0x28] sm:$0xf]
  %v36 = vld [vmem:[%s1 + $0x2c] sm:$0xf]
  %v37 = vld [vmem:[%s1 + $0x30] sm:$0xf]
  %v38 = vld [vmem:[%s1 + $0x34] sm:$0xf]
  %v39 = vld [vmem:[%s1 + $0x38] sm:$0xf]
  %v40 = vld [vmem:[%s1 + $0x3c] sm:$0xf]
  %v43 = vunpack.c.l.b16 %v23
  %v44 = vunpack.c.l.b16 %v24
  %v45 = vpack.c.b16 %v44, %v43
  %v63 = vunpack.c.l.b16 %v25
  %v64 = vunpack.c.l.b16 %v26
  %v65 = vunpack.c.l.b16 %v27
  %v66 = vunpack.c.l.b16 %v28
  %v67 = vunpack.c.l.b16 %v29
  %v68 = vunpack.c.l.b16 %v30
  %v69 = vunpack.c.l.b16 %v31
  %v70 = vunpack.c.l.b16 %v32
  %v71 = vunpack.c.l.b16 %v33
  %v72 = vunpack.c.l.b16 %v34
  %v73 = vunpack.c.l.b16 %v35
  %v74 = vunpack.c.l.b16 %v36
  %v75 = vunpack.c.l.b16 %v37
  %v76 = vunpack.c.l.b16 %v38
  %v77 = vunpack.c.l.b16 %v39
  %v78 = vunpack.c.l.b16 %v40
  %v79 = vpack.c.b16 %v64, %v63
  %v80 = vpack.c.b16 %v66, %v65
  %v81 = vpack.c.b16 %v68, %v67
  %v82 = vpack.c.b16 %v70, %v69
  %v83 = vpack.c.b16 %v72, %v71
  %v84 = vpack.c.b16 %v74, %v73
  %v85 = vpack.c.b16 %v76, %v75
  %v86 = vpack.c.b16 %v78, %v77
  %95 = vmatprep.subr.bf16.mxu0 0
  %96 = vmatpush1.bf16.msra.mxu0 %v79
  %97 = vmatprep.subr.bf16.mxu0 0
  %98 = vmatpush1.bf16.msra.mxu0 %v80
  %99 = vmatprep.subr.bf16.mxu0 0
  %100 = vmatpush1.bf16.msra.mxu0 %v81
  %101 = vmatprep.subr.bf16.mxu0 0
  %102 = vmatpush1.bf16.msra.mxu0 %v82
  %103 = vmatprep.subr.bf16.mxu0 0
  %104 = vmatpush1.bf16.msra.mxu0 %v83
  %105 = vmatprep.subr.bf16.mxu0 0
  %106 = vmatpush1.bf16.msra.mxu0 %v84
  %107 = vmatprep.subr.bf16.mxu0 0
  %108 = vmatpush1.bf16.msra.mxu0 %v85
  %109 = vmatprep.subr.bf16.mxu0 0
  %110 = vmatpush1.bf16.msra.mxu0 %v86
  %111 = vmatprep.subr.bf16.mxu0 0
  %112 = vmatpush1.bf16.msra.mxu0 0
  %113 = vmatprep.subr.bf16.mxu0 0
  %114 = vmatpush1.bf16.msra.mxu0 0
  %115 = vmatprep.subr.bf16.mxu0 0
  %116 = vmatpush1.bf16.msra.mxu0 0
  %117 = vmatprep.subr.bf16.mxu0 0
  %118 = vmatpush1.bf16.msra.mxu0 0
  %119 = vmatprep.subr.bf16.mxu0 0
  %120 = vmatpush1.bf16.msra.mxu0 0
  %121 = vmatprep.subr.bf16.mxu0 0
  %122 = vmatpush1.bf16.msra.mxu0 0
  %123 = vmatprep.subr.bf16.mxu0 0
  %124 = vmatpush1.bf16.msra.mxu0 0
  %125 = vmatprep.subr.bf16.mxu0 0
  %126 = vmatpush1.bf16.msra.mxu0 0
  %127 = vmatprep.mubr.bf16.mxu0 0
  %128 = vmatmul.mubr.bf16.gmra.mrb[0].mxu0 %v45
  %v129 = vpop.f32.mrb[0].mxu0
  %v130 = vadd.f32 0.0, %v129
  %v131 = vpop.f32.mrb[0].mxu0
  %v132 = vpop.f32.mrb[0].mxu0
  %v133 = vadd.f32 0.0, %v132
  %v134 = vpop.f32.mrb[0].mxu0
  %135 = vdwg.mxu0
  %v136 = vadd.f32 %v21, %v130
  %v137 = vadd.f32 %v22, %v133
  %138 = vst [vmem:[#allocation2] sm:$0xff] %v136
  %139 = vst [vmem:[#allocation2 + $0x8] sm:$0xff] %v137
  // Predicated region
  $region18: #{forward.26} parent=0 // pred_check
    %p140 = pneg %p15
  $region19: #{forward.26} parent=0 // pred_check_branch
    %142 = sbr.rel (%p140) target = $region21
  $region20: #{forward.26} parent=0 // pred_region
    %v143 = vld [vmem:[#allocation2] sm:$0xff]
    %v144 = vld [vmem:[#allocation2 + $0x8] sm:$0xff]
    %v145 = vld [vmem:[%s2] sm:$0x1]
    %v147 = vlaneseq
    %v148 = vshrl.u32 %v147, 7
    %v149 = vsub.s32 0, %v148
    %v150 = vrot.slane %v145, %v149
    %v152 = vadd.f32 %v143, %v150
    %v153 = vadd.f32 %v144, %v150
    %154 = vst [vmem:[%s3] sm:$0xff] %v152
    %155 = vst [vmem:[%s3 + $0x8] sm:$0xff] %v153
  $region21: #{forward.26} parent=0 // pred_fallthru
    _
  // Predicated region
  $region22: #{forward.26} parent=0 // pred_check
    _
  $region23: #{forward.26} parent=0 // pred_check_branch
    %157 = sbr.rel (0) target = $region25
  $region24: #{forward.26} parent=0 // pred_region
    _
  $region25: #{forward.26} parent=0 // pred_fallthru
    _
  // Predicated region
  $region26: #{forward.26} parent=0 // pred_check
    _
  $region27: #{forward.26} parent=0 // pred_check_branch
    %159 = sbr.rel (0) target = $region29
  $region28: #{forward.26} parent=0 // pred_region
    _
  $region29: #{forward.26} parent=0 // pred_fallthru
    _

// kernel: forward.32
$region0: #{forward.32}
  #allocation0 [shape = 'u32[]', space=smem, size = 0x4, offset = 0x4, fixed_abs, tag = 'smem constant byte address 0x4 - core index']
  #allocation1 [shape = 'u32[144,128]{1,0:T(1,128)}', space=vmem, size = 0x12000, scoped, tag = 'internal scratch']
  #allocation2 [shape = 'f32[8,128]{1,0:T(8,128)}', space=vmem, size = 0x1000, scoped, tag = 'scratch operand']
  %s0 = inlined_call_operand.vmem [shape: f32[16,8,384], index: 0, kind: input, shape index: {}]
  %s1 = inlined_call_operand.vmem [shape: bf16[128,384], index: 1, kind: input, shape index: {}]
  %s2 = inlined_call_operand.vmem [shape: f32[1,384], index: 2, kind: input, shape index: {}]
  %s3 = inlined_call_operand.vmem [shape: f32[8,128], index: 3, kind: input, shape index: {}]
  %s4 = inlined_call_operand.vmem [shape: f32[16,8,128], index: 4, kind: output, shape index: {0}]
  %s5 = inlined_call_operand.hbm [shape: f32[8,128], index: 5, kind: output, shape index: {1}]
  %6 = xla_tuple %s4, %s5
  %s7 = sld [smem:[#allocation0]]
  $region65: #{forward.32} parent=0
    _
  %s9 = ssub.s32 1, %s7
  %s10 = scalar_select 0, %s9, %s7
  $region1: #{forward.32} parent=0
    #allocation3 [shape = 'u8[4096]{0}', space=vmem, size = 0x1000, scoped, tag = 'output window, operand 1, single buffered']
    #allocation4 [shape = 's32[2]{0}', space=sflag, size = 0x8, scoped, tag = 'scoped memory for forward.32']
    %11 = vsyncpa [#allocation4], 0
    loop: start=0, step=1, limit=18
    $region2: #{forward.32} parent=1 // loop_pre_header
      _
    $region3: #{forward.32} parent=1 // loop_header
      %s13 = sphi 0, %s17
      %p14 = scmp.ge.s32.totalorder %s13, 18
      %s23 = sphi 0, %s25
      %s26 = sphi 0, %s23
      %s27 = sphi 0, %s26
      %s43 = sphi 0, %s27
      %s47 = sphi 0, %s47
      %s49 = sphi 0, %s47
      %s50 = sphi 0, %s49
      %s64 = sphi 0, %s50
      %s68 = sphi 0, %s68
      %s70 = sphi 0, %s68
      %s71 = sphi 0, %s70
      %s85 = sphi 0, %s71
      %s89 = sphi 0, %s89
      %s91 = sphi 0, %s89
      %s92 = sphi 0, %s91
      %s106 = sphi 0, %s92
      %s112 = sphi 0, %s114
      %s115 = sphi 0, %s112
      %s116 = sphi 0, %s115
      %s132 = sphi 0, %s116
      %s136 = sphi 0, %s136
      %s138 = sphi 0, %s136
      %s139 = sphi 0, %s138
      %s153 = sphi 0, %s139
    $region4: #{forward.32} parent=1 // loop_header_branch
      %16 = sbr.rel (%p14) target = $region8
    $region5: #{forward.32} parent=1 // loop_body
      %s18 = ssub.s32 %s13, 1
      %s19 = ssub.s32 %s13, 2
      %s20 = sadd.s32 %s13, 1
      %s21 = ssub.s32 %s13, %s20
      %p22 = scmp.eq.s32.totalorder %s21, 0
      %s24 = sadd.s32 %s23, 1
      %s25 = scalar_select %p22, %s23, %s24
      %p28 = pneg %p22
      %p29 = scmp.eq.s32.totalorder %s13, 15
      %p30 = por %p28, %p29
      %p31 = scmp.ne.s32.totalorder %s23, %s26
      %p32 = scmp.eq.s32.totalorder %s13, 0
      %p33 = por %p31, %p32
      %p34 = scmp.ne.s32.totalorder %s23, %s26
      %p35 = scmp.eq.s32.totalorder %s18, 15
      %p36 = por %p34, %p35
      %p37 = scmp.ne.s32.totalorder %s26, %s27
      %p38 = scmp.eq.s32.totalorder %s18, 0
      %p39 = por %p37, %p38
      %p40 = scmp.ne.s32.totalorder %s26, %s27
      %p41 = scmp.eq.s32.totalorder %s19, 15
      %p42 = por %p40, %p41
      %p44 = scmp.ne.s32.totalorder %s27, %s43
      %p45 = scmp.eq.s32.totalorder %s19, 0
      %p46 = por %p44, %p45
      %s48 = sadd.s32 %s47, 1
      %p51 = scmp.eq.s32.totalorder %s13, 15
      %p52 = scmp.ne.s32.totalorder %s47, %s49
      %p53 = scmp.eq.s32.totalorder %s13, 0
      %p54 = por %p52, %p53
      %p55 = scmp.ne.s32.totalorder %s47, %s49
      %p56 = scmp.eq.s32.totalorder %s18, 15
      %p57 = por %p55, %p56
      %p58 = scmp.ne.s32.totalorder %s49, %s50
      %p59 = scmp.eq.s32.totalorder %s18, 0
      %p60 = por %p58, %p59
      %p61 = scmp.ne.s32.totalorder %s49, %s50
      %p62 = scmp.eq.s32.totalorder %s19, 15
      %p63 = por %p61, %p62
      %p65 = scmp.ne.s32.totalorder %s50, %s64
      %p66 = scmp.eq.s32.totalorder %s19, 0
      %p67 = por %p65, %p66
      %s69 = sadd.s32 %s68, 1
      %p72 = scmp.eq.s32.totalorder %s13, 15
      %p73 = scmp.ne.s32.totalorder %s68, %s70
      %p74 = scmp.eq.s32.totalorder %s13, 0
      %p75 = por %p73, %p74
      %p76 = scmp.ne.s32.totalorder %s68, %s70
      %p77 = scmp.eq.s32.totalorder %s18, 15
      %p78 = por %p76, %p77
      %p79 = scmp.ne.s32.totalorder %s70, %s71
      %p80 = scmp.eq.s32.totalorder %s18, 0
      %p81 = por %p79, %p80
      %p82 = scmp.ne.s32.totalorder %s70, %s71
      %p83 = scmp.eq.s32.totalorder %s19, 15
      %p84 = por %p82, %p83
      %p86 = scmp.ne.s32.totalorder %s71, %s85
      %p87 = scmp.eq.s32.totalorder %s19, 0
      %p88 = por %p86, %p87
      %s90 = sadd.s32 %s89, 1
      %p93 = scmp.eq.s32.totalorder %s13, 15
      %p94 = scmp.ne.s32.totalorder %s89, %s91
      %p95 = scmp.eq.s32.totalorder %s13, 0
      %p96 = por %p94, %p95
      %p97 = scmp.ne.s32.totalorder %s89, %s91
      %p98 = scmp.eq.s32.totalorder %s18, 15
      %p99 = por %p97, %p98
      %p100 = scmp.ne.s32.totalorder %s91, %s92
      %p101 = scmp.eq.s32.totalorder %s18, 0
      %p102 = por %p100, %p101
      %p103 = scmp.ne.s32.totalorder %s91, %s92
      %p104 = scmp.eq.s32.totalorder %s19, 15
      %p105 = por %p103, %p104
      %p107 = scmp.ne.s32.totalorder %s92, %s106
      %p108 = scmp.eq.s32.totalorder %s19, 0
      %p109 = por %p107, %p108
      %s110 = ssub.s32 %s13, %s20
      %p111 = scmp.eq.s32.totalorder %s110, 0
      %s113 = sadd.s32 %s112, 1
      %s114 = scalar_select %p111, %s112, %s113
      %p117 = pneg %p111
      %p118 = scmp.eq.s32.totalorder %s13, 15
      %p119 = por %p117, %p118
      %p120 = scmp.ne.s32.totalorder %s112, %s115
      %p121 = scmp.eq.s32.totalorder %s13, 0
      %p122 = por %p120, %p121
      %p123 = scmp.ne.s32.totalorder %s112, %s115
      %p124 = scmp.eq.s32.totalorder %s18, 15
      %p125 = por %p123, %p124
      %p126 = scmp.ne.s32.totalorder %s115, %s116
      %p127 = scmp.eq.s32.totalorder %s18, 0
      %p128 = por %p126, %p127
      %p129 = scmp.ne.s32.totalorder %s115, %s116
      %p130 = scmp.eq.s32.totalorder %s19, 15
      %p131 = por %p129, %p130
      %p133 = scmp.ne.s32.totalorder %s116, %s132
      %p134 = scmp.eq.s32.totalorder %s19, 0
      %p135 = por %p133, %p134
      %s137 = sadd.s32 %s136, 1
      %p140 = scmp.eq.s32.totalorder %s13, 15
      %p141 = scmp.ne.s32.totalorder %s136, %s138
      %p142 = scmp.eq.s32.totalorder %s13, 0
      %p143 = por %p141, %p142
      %p144 = scmp.ne.s32.totalorder %s136, %s138
      %p145 = scmp.eq.s32.totalorder %s18, 15
      %p146 = por %p144, %p145
      %p147 = scmp.ne.s32.totalorder %s138, %s139
      %p148 = scmp.eq.s32.totalorder %s18, 0
      %p149 = por %p147, %p148
      %p150 = scmp.ne.s32.totalorder %s138, %s139
      %p151 = scmp.eq.s32.totalorder %s19, 15
      %p152 = por %p150, %p151
      %p154 = scmp.ne.s32.totalorder %s139, %s153
      %p155 = scmp.eq.s32.totalorder %s19, 0
      %p156 = por %p154, %p155
      %p157 = scmp.le.s32.totalorder 1, %s13
      %p158 = scmp.lt.s32.totalorder %s13, 17
      %p159 = pnand %p157, %p158
      %p160 = pneg %p159
      // Predicated region
      $region9: #{forward.32} parent=5 // pred_check
        _
      $region10: #{forward.32} parent=5 // pred_check_branch
        %162 = sbr.rel (%p159) target = $region12
      $region11: #{forward.32} parent=5 // pred_region
        %s163 = ssub.s32 %s13, 1
        // Predicated region
        $region13: #{forward.32} parent=11 // pred_check
          %p164 = pneg %p60
        $region14: #{forward.32} parent=11 // pred_check_branch
          %166 = sbr.rel (%p164) target = $region16
        $region15: #{forward.32} parent=11 // pred_region
          _
        $region16: #{forward.32} parent=11 // pred_fallthru
          _
        // Predicated region
        $region17: #{forward.32} parent=11 // pred_check
          %p167 = pneg %p81
        $region18: #{forward.32} parent=11 // pred_check_branch
          %169 = sbr.rel (%p167) target = $region20
        $region19: #{forward.32} parent=11 // pred_region
          _
        $region20: #{forward.32} parent=11 // pred_fallthru
          _
        // Predicated region
        $region21: #{forward.32} parent=11 // pred_check
          %p170 = pneg %p102
        $region22: #{forward.32} parent=11 // pred_check_branch
          %172 = sbr.rel (%p170) target = $region24
        $region23: #{forward.32} parent=11 // pred_region
          _
        $region24: #{forward.32} parent=11 // pred_fallthru
          _
      $region12: #{forward.32} parent=5 // pred_fallthru
        _
      %p173 = scmp.lt.s32.totalorder %s13, 16
      // Predicated region
      $region25: #{forward.32} parent=5 // pred_check
        %p174 = pneg %p173
      $region26: #{forward.32} parent=5 // pred_check_branch
        %176 = sbr.rel (%p174) target = $region28
      $region27: #{forward.32} parent=5 // pred_region
        // Predicated region
        $region29: #{forward.32} parent=27 // pred_check
          %p177 = pneg %p33
        $region30: #{forward.32} parent=27 // pred_check_branch
          %179 = sbr.rel (%p177) target = $region32
        $region31: #{forward.32} parent=27 // pred_region
          %p180 = scmp.lt.s32.totalorder %s13, 15
          %s181 = scalar_select %p180, %s13, 15
          %s182 = smul.addr %s181, 3
          %s183 = smul.addr %s182, 8
          %s184 = scalar_lea.vmem %s0, %s183
        $region32: #{forward.32} parent=27 // pred_fallthru
          _
      $region28: #{forward.32} parent=5 // pred_fallthru
        _
      %p185 = scmp.le.s32.totalorder 1, %s13
      %p186 = scmp.lt.s32.totalorder %s13, 17
      %p187 = pnand %p185, %p186
      %p188 = pneg %p187
      // Predicated region
      $region33: #{forward.32} parent=5 // pred_check
        _
      $region34: #{forward.32} parent=5 // pred_check_branch
        %190 = sbr.rel (%p187) target = $region36
      $region35: #{forward.32} parent=5 // pred_region
        %s191 = ssub.s32 %s13, 1
        %p192 = scmp.lt.s32.totalorder %s18, 15
        %s193 = scalar_select %p192, %s18, 15
        %s194 = smul.addr %s193, 3
        %s195 = smul.addr %s194, 8
        %s196 = scalar_lea.vmem %s0, %s195
        %p197 = pneg %p39
        %p198 = pneg %p36
        %p199 = pneg %p60
        %p200 = pneg %p57
        %p201 = pneg %p81
        %p202 = pneg %p78
        %p203 = pneg %p102
        %p204 = pneg %p99
        %p205 = pneg %p128
        %p206 = pneg %p125
        %p207 = scmp.lt.s32.totalorder %s18, 15
        %s208 = scalar_select %p207, %s18, 15
        %s209 = smul.addr %s208, 8
        %s210 = scalar_lea.vmem %s4, %s209
        %p211 = pneg %p149
        %p212 = pneg %p146
        %p213 = scmp.lt.s32.totalorder %s18, 15
        %s214 = scalar_select %p213, %s18, 15
        %s215 = smul.addr %s214, 3
        %s216 = smul.addr %s215, 8
        %s217 = scalar_lea.vmem %s0, %s216
        %p218 = scmp.lt.s32.totalorder %s18, 15
        %s219 = scalar_select %p218, %s18, 15
        %s220 = smul.addr %s219, 8
        %s221 = scalar_lea.vmem %s4, %s220
        %p223 = scmp.eq.s32.totalorder %s18, 0
        // Predicated region
        $region37: #{forward.32} parent=35 // pred_check
          %p224 = pneg %p223
        $region38: #{forward.32} parent=35 // pred_check_branch
          %226 = sbr.rel (%p224) target = $region40
        $region39: #{forward.32} parent=35 // pred_region
          %v227 = vld [vmem:[%s3] sm:$0xff]
          %228 = vst [vmem:[#allocation2] sm:$0xff] %v227
        $region40: #{forward.32} parent=35 // pred_fallthru
          _
        %v229 = vld [vmem:[#allocation2] sm:$0xff]
        %v230 = vpack.c.bf16 %v229, %v229
        %v231 = vld [vmem:[%s1] sm:$0xff]
        %v232 = vld [vmem:[%s1 + $0x8] sm:$0xf]
        %v233 = vld [vmem:[%s1 + $0xc] sm:$0xff]
        %v234 = vld [vmem:[%s1 + $0x14] sm:$0xf]
        %v235 = vld [vmem:[%s1 + $0x18] sm:$0xff]
        %v236 = vld [vmem:[%s1 + $0x20] sm:$0xf]
        %v237 = vld [vmem:[%s1 + $0x24] sm:$0xff]
        %v238 = vld [vmem:[%s1 + $0x2c] sm:$0xf]
        %v239 = vld [vmem:[%s1 + $0x30] sm:$0xff]
        %v240 = vld [vmem:[%s1 + $0x38] sm:$0xf]
        %v241 = vld [vmem:[%s1 + $0x3c] sm:$0xff]
        %v242 = vld [vmem:[%s1 + $0x44] sm:$0xf]
        %v243 = vld [vmem:[%s1 + $0x48] sm:$0xff]
        %v244 = vld [vmem:[%s1 + $0x50] sm:$0xf]
        %v245 = vld [vmem:[%s1 + $0x54] sm:$0xff]
        %v246 = vld [vmem:[%s1 + $0x5c] sm:$0xf]
        %v247 = vld [vmem:[%s1 + $0x60] sm:$0xff]
        %v248 = vld [vmem:[%s1 + $0x68] sm:$0xf]
        %v249 = vld [vmem:[%s1 + $0x6c] sm:$0xff]
        %v250 = vld [vmem:[%s1 + $0x74] sm:$0xf]
        %v251 = vld [vmem:[%s1 + $0x78] sm:$0xff]
        %v252 = vld [vmem:[%s1 + $0x80] sm:$0xf]
        %v253 = vld [vmem:[%s1 + $0x84] sm:$0xff]
        %v254 = vld [vmem:[%s1 + $0x8c] sm:$0xf]
        %v255 = vld [vmem:[%s1 + $0x90] sm:$0xff]
        %v256 = vld [vmem:[%s1 + $0x98] sm:$0xf]
        %v257 = vld [vmem:[%s1 + $0x9c] sm:$0xff]
        %v258 = vld [vmem:[%s1 + $0xa4] sm:$0xf]
        %v259 = vld [vmem:[%s1 + $0xa8] sm:$0xff]
        %v260 = vld [vmem:[%s1 + $0xb0] sm:$0xf]
        %v261 = vld [vmem:[%s1 + $0xb4] sm:$0xff]
        %v262 = vld [vmem:[%s1 + $0xbc] sm:$0xf]
        %v263 = vld [vmem:[%s2] sm:$0x7]
        %v265 = vlaneseq
        %v266 = vshrl.u32 %v265, 7
        %v267 = vsub.s32 0, %v266
        %v268 = vrot.slane %v263, %v267
        %v269 = vlaneseq
        %v270 = vshrl.u32 %v269, 7
        %v271 = vsub.s32 1, %v270
        %v272 = vrot.slane %v263, %v271
        %v273 = vlaneseq
        %v274 = vshrl.u32 %v273, 7
        %v275 = vsub.s32 2, %v274
        %v276 = vrot.slane %v263, %v275
        %v312 = vunpack.c.l.b16 %v231
        %v313 = vunpack.c.h.b16 %v231
        %v314 = vunpack.c.l.b16 %v232
        %v315 = vunpack.c.l.b16 %v233
        %v316 = vunpack.c.h.b16 %v233
        %v317 = vunpack.c.l.b16 %v234
        %v318 = vunpack.c.l.b16 %v235
        %v319 = vunpack.c.h.b16 %v235
        %v320 = vunpack.c.l.b16 %v236
        %v321 = vunpack.c.l.b16 %v237
        %v322 = vunpack.c.h.b16 %v237
        %v323 = vunpack.c.l.b16 %v238
        %v324 = vunpack.c.l.b16 %v239
        %v325 = vunpack.c.h.b16 %v239
        %v326 = vunpack.c.l.b16 %v240
        %v327 = vunpack.c.l.b16 %v241
        %v328 = vunpack.c.h.b16 %v241
        %v329 = vunpack.c.l.b16 %v242
        %v330 = vunpack.c.l.b16 %v243
        %v331 = vunpack.c.h.b16 %v243
        %v332 = vunpack.c.l.b16 %v244
        %v333 = vunpack.c.l.b16 %v245
        %v334 = vunpack.c.h.b16 %v245
        %v335 = vunpack.c.l.b16 %v246
        %v336 = vunpack.c.l.b16 %v247
        %v337 = vunpack.c.h.b16 %v247
        %v338 = vunpack.c.l.b16 %v248
        %v339 = vunpack.c.l.b16 %v249
        %v340 = vunpack.c.h.b16 %v249
        %v341 = vunpack.c.l.b16 %v250
        %v342 = vunpack.c.l.b16 %v251
        %v343 = vunpack.c.h.b16 %v251
        %v344 = vunpack.c.l.b16 %v252
        %v345 = vunpack.c.l.b16 %v253
        %v346 = vunpack.c.h.b16 %v253
        %v347 = vunpack.c.l.b16 %v254
        %v348 = vunpack.c.l.b16 %v255
        %v349 = vunpack.c.h.b16 %v255
        %v350 = vunpack.c.l.b16 %v256
        %v351 = vunpack.c.l.b16 %v257
        %v352 = vunpack.c.h.b16 %v257
        %v353 = vunpack.c.l.b16 %v258
        %v354 = vunpack.c.l.b16 %v259
        %v355 = vunpack.c.h.b16 %v259
        %v356 = vunpack.c.l.b16 %v260
        %v357 = vunpack.c.l.b16 %v261
        %v358 = vunpack.c.h.b16 %v261
        %v359 = vunpack.c.l.b16 %v262
        %v360 = vpack.c.b16 %v315, %v312
        %v361 = vpack.c.b16 %v316, %v313
        %v362 = vpack.c.b16 %v317, %v314
        %v363 = vpack.c.b16 %v321, %v318
        %v364 = vpack.c.b16 %v322, %v319
        %v365 = vpack.c.b16 %v323, %v320
        %v366 = vpack.c.b16 %v327, %v324
        %v367 = vpack.c.b16 %v328, %v325
        %v368 = vpack.c.b16 %v329, %v326
        %v369 = vpack.c.b16 %v333, %v330
        %v370 = vpack.c.b16 %v334, %v331
        %v371 = vpack.c.b16 %v335, %v332
        %v372 = vpack.c.b16 %v339, %v336
        %v373 = vpack.c.b16 %v340, %v337
        %v374 = vpack.c.b16 %v341, %v338
        %v375 = vpack.c.b16 %v345, %v342
        %v376 = vpack.c.b16 %v346, %v343
        %v377 = vpack.c.b16 %v347, %v344
        %v378 = vpack.c.b16 %v351, %v348
        %v379 = vpack.c.b16 %v352, %v349
        %v380 = vpack.c.b16 %v353, %v350
        %v381 = vpack.c.b16 %v357, %v354
        %v382 = vpack.c.b16 %v358, %v355
        %v383 = vpack.c.b16 %v359, %v356
        %408 = vmatprep.subr.bf16.mxu0 %v361
        %409 = vmatpush1.bf16.msra.mxu0 %v360
        %410 = vmatprep.subr.bf16.mxu0 %v364
        %411 = vmatpush1.bf16.msra.mxu0 %v363
        %412 = vmatprep.subr.bf16.mxu0 %v367
        %413 = vmatpush1.bf16.msra.mxu0 %v366
        %414 = vmatprep.subr.bf16.mxu0 %v370
        %415 = vmatpush1.bf16.msra.mxu0 %v369
        %416 = vmatprep.subr.bf16.mxu0 %v373
        %417 = vmatpush1.bf16.msra.mxu0 %v372
        %418 = vmatprep.subr.bf16.mxu0 %v376
        %419 = vmatpush1.bf16.msra.mxu0 %v375
        %420 = vmatprep.subr.bf16.mxu0 %v379
        %421 = vmatpush1.bf16.msra.mxu0 %v378
        %422 = vmatprep.subr.bf16.mxu0 %v382
        %423 = vmatpush1.bf16.msra.mxu0 %v381
        %424 = vmatprep.subr.bf16.mxu0 0
        %425 = vmatpush1.bf16.msra.mxu0 0
        %426 = vmatprep.subr.bf16.mxu0 0
        %427 = vmatpush1.bf16.msra.mxu0 0
        %428 = vmatprep.subr.bf16.mxu0 0
        %429 = vmatpush1.bf16.msra.mxu0 0
        %430 = vmatprep.subr.bf16.mxu0 0
        %431 = vmatpush1.bf16.msra.mxu0 0
        %432 = vmatprep.subr.bf16.mxu0 0
        %433 = vmatpush1.bf16.msra.mxu0 0
        %434 = vmatprep.subr.bf16.mxu0 0
        %435 = vmatpush1.bf16.msra.mxu0 0
        %436 = vmatprep.subr.bf16.mxu0 0
        %437 = vmatpush1.bf16.msra.mxu0 0
        %438 = vmatprep.subr.bf16.mxu0 0
        %439 = vmatpush1.bf16.msra.mxu0 0
        %440 = vmatprep.mubr.bf16.mxu0 0
        %441 = vmatmul.mubr.bf16.gmra.mrb[0].mxu0 %v230
        %v442 = vpop.f32.mrb[0].mxu0
        %v443 = vadd.f32 %v268, %v442
        %v444 = vpop.f32.mrb[0].mxu0
        %v445 = vadd.f32 %v272, %v444
        %v446 = vpop.f32.mrb[0].mxu0
        %v447 = vpop.f32.mrb[0].mxu0
        %448 = vdwg.mxu0
        %449 = vmatprep.subr.bf16.mxu0 0
        %450 = vmatpush1.bf16.msra.mxu0 %v362
        %451 = vmatprep.subr.bf16.mxu0 0
        %452 = vmatpush1.bf16.msra.mxu0 %v365
        %453 = vmatprep.subr.bf16.mxu0 0
        %454 = vmatpush1.bf16.msra.mxu0 %v368
        %455 = vmatprep.subr.bf16.mxu0 0
        %456 = vmatpush1.bf16.msra.mxu0 %v371
        %457 = vmatprep.subr.bf16.mxu0 0
        %458 = vmatpush1.bf16.msra.mxu0 %v374
        %459 = vmatprep.subr.bf16.mxu0 0
        %460 = vmatpush1.bf16.msra.mxu0 %v377
        %461 = vmatprep.subr.bf16.mxu0 0
        %462 = vmatpush1.bf16.msra.mxu0 %v380
        %463 = vmatprep.subr.bf16.mxu0 0
        %464 = vmatpush1.bf16.msra.mxu0 %v383
        %465 = vmatprep.subr.bf16.mxu0 0
        %466 = vmatpush1.bf16.msra.mxu0 0
        %467 = vmatprep.subr.bf16.mxu0 0
        %468 = vmatpush1.bf16.msra.mxu0 0
        %469 = vmatprep.subr.bf16.mxu0 0
        %470 = vmatpush1.bf16.msra.mxu0 0
        %471 = vmatprep.subr.bf16.mxu0 0
        %472 = vmatpush1.bf16.msra.mxu0 0
        %473 = vmatprep.subr.bf16.mxu0 0
        %474 = vmatpush1.bf16.msra.mxu0 0
        %475 = vmatprep.subr.bf16.mxu0 0
        %476 = vmatpush1.bf16.msra.mxu0 0
        %477 = vmatprep.subr.bf16.mxu0 0
        %478 = vmatpush1.bf16.msra.mxu0 0
        %479 = vmatprep.subr.bf16.mxu0 0
        %480 = vmatpush1.bf16.msra.mxu0 0
        %481 = vmatprep.mubr.bf16.mxu0 0
        %482 = vmatmul.mubr.bf16.gmra.mrb[0].mxu0 %v230
        %v483 = vpop.f32.mrb[0].mxu0
        %v484 = vadd.f32 %v276, %v483
        %v485 = vpop.f32.mrb[0].mxu0
        %v486 = vpop.f32.mrb[0].mxu0
        %v487 = vpop.f32.mrb[0].mxu0
        %488 = vdwg.mxu0
        %v489 = vld [vmem:[%s217] sm:$0xff]
        %v490 = vld [vmem:[%s217 + $0x8] sm:$0xff]
        %v491 = vld [vmem:[%s217 + $0x10] sm:$0xff]
        %v492 = vadd.f32 %v489, %v443
        %v493 = vxor.u32 %v492, 2147483648
        %v494 = vmul.f32 %v493, 1.442695
        %v495 = vpow.pop %v494
        %v496 = vadd.f32 %v495, 1.0
        %v497 = vrcp.pop %v496
        %v498 = vmul.f32 1.0, %v497
        %v499 = vadd.f32 %v490, %v445
        %v500 = vxor.u32 %v499, 2147483648
        %v501 = vmul.f32 %v500, 1.442695
        %v502 = vpow.pop %v501
        %v503 = vadd.f32 %v502, 1.0
        %v504 = vrcp.pop %v503
        %v505 = vmul.f32 1.0, %v504
        %v506 = vmul.f32 %v498, %v484
        %v507 = vadd.f32 %v491, %v506
        %v508 = vtanh.pop %v507
        %v509 = vsub.f32 1.0, %v505
        %v510 = vmul.f32 %v509, %v508
        %v511 = vmul.f32 %v505, %v229
        %v512 = vadd.f32 %v510, %v511
        %513 = vst [vmem:[#allocation2] sm:$0xff] %v512
        %514 = vst [vmem:[%s221] sm:$0xff] %v512
        %p515 = scmp.eq.s32.totalorder %s18, 15
        // Predicated region
        $region41: #{forward.32} parent=35 // pred_check
          %p516 = pneg %p515
        $region42: #{forward.32} parent=35 // pred_check_branch
          %518 = sbr.rel (%p516) target = $region44
        $region43: #{forward.32} parent=35 // pred_region
          %519 = vst [vmem:[#allocation3] sm:$0xff] %v512
        $region44: #{forward.32} parent=35 // pred_fallthru
          _
        %p520 = scmp.lt.s32.totalorder %s18, 15
        %s521 = scalar_select %p520, %s18, 15
        %s522 = smul.addr %s521, 8
        %s523 = scalar_lea.vmem %s4, %s522
        // Predicated region
        $region45: #{forward.32} parent=35 // pred_check
          %p524 = pneg %p125
        $region46: #{forward.32} parent=35 // pred_check_branch
          %526 = sbr.rel (%p524) target = $region48
        $region47: #{forward.32} parent=35 // pred_region
          _
        $region48: #{forward.32} parent=35 // pred_fallthru
          _
        // Predicated region
        $region49: #{forward.32} parent=35 // pred_check
          %p527 = pneg %p146
        $region50: #{forward.32} parent=35 // pred_check_branch
          %529 = sbr.rel (%p527) target = $region52
        $region51: #{forward.32} parent=35 // pred_region
          %s531 = ssub.s32 128, 128
          %532 = vsyncadd [#allocation4], %s531
          %s534 = sshll.u32 [#allocation3], 4
          %s535 = int_to_ptr.vmem [resolvable:$true] %s534
          %537 = dma.vmem_to_hbm [thread:$0]  %s535, 128, %s5, [#allocation4]
        $region52: #{forward.32} parent=35 // pred_fallthru
          _
        // Predicated region
        $region53: #{forward.32} parent=35 // pred_check
          %p538 = pneg %p146
        $region54: #{forward.32} parent=35 // pred_check_branch
          %540 = sbr.rel (%p538) target = $region56
        $region55: #{forward.32} parent=35 // pred_region
          %541 = dma.done [#allocation4], 128
        $region56: #{forward.32} parent=35 // pred_fallthru
          _
      $region36: #{forward.32} parent=5 // pred_fallthru
        _
      %p542 = scmp.le.s32.totalorder 2, %s13
      // Predicated region
      $region57: #{forward.32} parent=5 // pred_check
        %p543 = pneg %p542
      $region58: #{forward.32} parent=5 // pred_check_branch
        %545 = sbr.rel (%p543) target = $region60
      $region59: #{forward.32} parent=5 // pred_region
        %s546 = ssub.s32 %s13, 2
        // Predicated region
        $region61: #{forward.32} parent=59 // pred_check
          %p547 = pneg %p131
        $region62: #{forward.32} parent=59 // pred_check_branch
          %549 = sbr.rel (%p547) target = $region64
        $region63: #{forward.32} parent=59 // pred_region
          %p550 = scmp.lt.s32.totalorder %s19, 15
          %s551 = scalar_select %p550, %s19, 15
          %s552 = smul.addr %s551, 8
          %s553 = scalar_lea.vmem %s4, %s552
        $region64: #{forward.32} parent=59 // pred_fallthru
          _
      $region60: #{forward.32} parent=5 // pred_fallthru
        _
    $region6: #{forward.32} parent=1 // loop_footer
      %s17 = sadd.s32 1, %s13
    $region7: #{forward.32} parent=1 // loop_footer_branch
      %12 = sbr.rel target = $region3
    $region8: #{forward.32} parent=1 // loop_exit
      _
    %554 = vsyncpa [#allocation4], 1
    %s555 = scalar_lea.sflag [#allocation4], 1
    %556 = vsyncpa %s555, 1

// kernel: forward.36
$region0: #{forward.36}
  #allocation0 [shape = 'u32[]', space=smem, size = 0x4, offset = 0x4, fixed_abs, tag = 'smem constant byte address 0x4 - core index']
  #allocation1 [shape = 'u32[144,128]{1,0:T(1,128)}', space=vmem, size = 0x12000, scoped, tag = 'internal scratch']
  %s0 = inlined_call_operand.vmem [shape: bf16[32,128], index: 0, kind: input, shape index: {}]
  %s1 = inlined_call_operand.vmem [shape: bf16[32,128], index: 1, kind: input, shape index: {}]
  %s2 = inlined_call_operand.vmem [shape: bf16[128,128], index: 2, kind: input, shape index: {}]
  %s3 = inlined_call_operand.vmem [shape: bf16[128,128], index: 3, kind: input, shape index: {}]
  %s4 = inlined_call_operand.vmem [shape: f32[1,128], index: 4, kind: input, shape index: {}]
  %s5 = inlined_call_operand.vmem [shape: f32[32,1], index: 5, kind: input, shape index: {}]
  %s6 = inlined_call_operand.vmem [shape: f32[32,128], index: 6, kind: output, shape index: {}]
  %s7 = sld [smem:[#allocation0]]
  $region34: #{forward.36} parent=0
    _
  %s9 = ssub.s32 1, %s7
  %s10 = scalar_select 0, %s9, %s7
  // Predicated region
  $region2: #{forward.36} parent=0 // pred_check
    _
  $region3: #{forward.36} parent=0 // pred_check_branch
    %12 = sbr.rel (0) target = $region5
  $region4: #{forward.36} parent=0 // pred_region
    _
  $region5: #{forward.36} parent=0 // pred_fallthru
    _
  // Predicated region
  $region6: #{forward.36} parent=0 // pred_check
    _
  $region7: #{forward.36} parent=0 // pred_check_branch
    %14 = sbr.rel (0) target = $region9
  $region8: #{forward.36} parent=0 // pred_region
    _
  $region9: #{forward.36} parent=0 // pred_fallthru
    _
  // Predicated region
  $region10: #{forward.36} parent=0 // pred_check
    _
  $region11: #{forward.36} parent=0 // pred_check_branch
    %16 = sbr.rel (0) target = $region13
  $region12: #{forward.36} parent=0 // pred_region
    _
  $region13: #{forward.36} parent=0 // pred_fallthru
    _
  // Predicated region
  $region14: #{forward.36} parent=0 // pred_check
    _
  $region15: #{forward.36} parent=0 // pred_check_branch
    %18 = sbr.rel (0) target = $region17
  $region16: #{forward.36} parent=0 // pred_region
    _
  $region17: #{forward.36} parent=0 // pred_fallthru
    _
  // Predicated region
  $region18: #{forward.36} parent=0 // pred_check
    _
  $region19: #{forward.36} parent=0 // pred_check_branch
    %20 = sbr.rel (0) target = $region21
  $region20: #{forward.36} parent=0 // pred_region
    _
  $region21: #{forward.36} parent=0 // pred_fallthru
    _
  // Predicated region
  $region22: #{forward.36} parent=0 // pred_check
    _
  $region23: #{forward.36} parent=0 // pred_check_branch
    %22 = sbr.rel (0) target = $region25
  $region24: #{forward.36} parent=0 // pred_region
    _
  $region25: #{forward.36} parent=0 // pred_fallthru
    _
  %v24 = vld [vmem:[%s0] sm:$0xf]
  %v25 = vld [vmem:[%s0 + $0x4] sm:$0xf]
  %v26 = vld [vmem:[%s0 + $0x8] sm:$0xf]
  %v27 = vld [vmem:[%s0 + $0xc] sm:$0xf]
  %v28 = vld [vmem:[%s2] sm:$0xf]
  %v29 = vld [vmem:[%s2 + $0x4] sm:$0xf]
  %v30 = vld [vmem:[%s2 + $0x8] sm:$0xf]
  %v31 = vld [vmem:[%s2 + $0xc] sm:$0xf]
  %v32 = vld [vmem:[%s2 + $0x10] sm:$0xf]
  %v33 = vld [vmem:[%s2 + $0x14] sm:$0xf]
  %v34 = vld [vmem:[%s2 + $0x18] sm:$0xf]
  %v35 = vld [vmem:[%s2 + $0x1c] sm:$0xf]
  %v36 = vld [vmem:[%s2 + $0x20] sm:$0xf]
  %v37 = vld [vmem:[%s2 + $0x24] sm:$0xf]
  %v38 = vld [vmem:[%s2 + $0x28] sm:$0xf]
  %v39 = vld [vmem:[%s2 + $0x2c] sm:$0xf]
  %v40 = vld [vmem:[%s2 + $0x30] sm:$0xf]
  %v41 = vld [vmem:[%s2 + $0x34] sm:$0xf]
  %v42 = vld [vmem:[%s2 + $0x38] sm:$0xf]
  %v43 = vld [vmem:[%s2 + $0x3c] sm:$0xf]
  %v44 = vld [vmem:[%s1] sm:$0xf]
  %v45 = vld [vmem:[%s1 + $0x4] sm:$0xf]
  %v46 = vld [vmem:[%s1 + $0x8] sm:$0xf]
  %v47 = vld [vmem:[%s1 + $0xc] sm:$0xf]
  %v48 = vld [vmem:[%s3] sm:$0xf]
  %v49 = vld [vmem:[%s3 + $0x4] sm:$0xf]
  %v50 = vld [vmem:[%s3 + $0x8] sm:$0xf]
  %v51 = vld [vmem:[%s3 + $0xc] sm:$0xf]
  %v52 = vld [vmem:[%s3 + $0x10] sm:$0xf]
  %v53 = vld [vmem:[%s3 + $0x14] sm:$0xf]
  %v54 = vld [vmem:[%s3 + $0x18] sm:$0xf]
  %v55 = vld [vmem:[%s3 + $0x1c] sm:$0xf]
  %v56 = vld [vmem:[%s3 + $0x20] sm:$0xf]
  %v57 = vld [vmem:[%s3 + $0x24] sm:$0xf]
  %v58 = vld [vmem:[%s3 + $0x28] sm:$0xf]
  %v59 = vld [vmem:[%s3 + $0x2c] sm:$0xf]
  %v60 = vld [vmem:[%s3 + $0x30] sm:$0xf]
  %v61 = vld [vmem:[%s3 + $0x34] sm:$0xf]
  %v62 = vld [vmem:[%s3 + $0x38] sm:$0xf]
  %v63 = vld [vmem:[%s3 + $0x3c] sm:$0xf]
  %v68 = vunpack.c.l.b16 %v44
  %v69 = vunpack.c.l.b16 %v45
  %v70 = vunpack.c.l.b16 %v46
  %v71 = vunpack.c.l.b16 %v47
  %v72 = vpack.c.b16 %v69, %v68
  %v73 = vpack.c.b16 %v71, %v70
  %v92 = vunpack.c.l.b16 %v48
  %v93 = vunpack.c.l.b16 %v49
  %v94 = vunpack.c.l.b16 %v50
  %v95 = vunpack.c.l.b16 %v51
  %v96 = vunpack.c.l.b16 %v52
  %v97 = vunpack.c.l.b16 %v53
  %v98 = vunpack.c.l.b16 %v54
  %v99 = vunpack.c.l.b16 %v55
  %v100 = vunpack.c.l.b16 %v56
  %v101 = vunpack.c.l.b16 %v57
  %v102 = vunpack.c.l.b16 %v58
  %v103 = vunpack.c.l.b16 %v59
  %v104 = vunpack.c.l.b16 %v60
  %v105 = vunpack.c.l.b16 %v61
  %v106 = vunpack.c.l.b16 %v62
  %v107 = vunpack.c.l.b16 %v63
  %v108 = vpack.c.b16 %v93, %v92
  %v109 = vpack.c.b16 %v95, %v94
  %v110 = vpack.c.b16 %v97, %v96
  %v111 = vpack.c.b16 %v99, %v98
  %v112 = vpack.c.b16 %v101, %v100
  %v113 = vpack.c.b16 %v103, %v102
  %v114 = vpack.c.b16 %v105, %v104
  %v115 = vpack.c.b16 %v107, %v106
  %124 = vmatprep.subr.bf16.mxu0 0
  %125 = vmatpush1.bf16.msra.mxu0 %v108
  %126 = vmatprep.subr.bf16.mxu0 0
  %127 = vmatpush1.bf16.msra.mxu0 %v109
  %128 = vmatprep.subr.bf16.mxu0 0
  %129 = vmatpush1.bf16.msra.mxu0 %v110
  %130 = vmatprep.subr.bf16.mxu0 0
  %131 = vmatpush1.bf16.msra.mxu0 %v111
  %132 = vmatprep.subr.bf16.mxu0 0
  %133 = vmatpush1.bf16.msra.mxu0 %v112
  %134 = vmatprep.subr.bf16.mxu0 0
  %135 = vmatpush1.bf16.msra.mxu0 %v113
  %136 = vmatprep.subr.bf16.mxu0 0
  %137 = vmatpush1.bf16.msra.mxu0 %v114
  %138 = vmatprep.subr.bf16.mxu0 0
  %139 = vmatpush1.bf16.msra.mxu0 %v115
  %140 = vmatprep.subr.bf16.mxu0 0
  %141 = vmatpush1.bf16.msra.mxu0 0
  %142 = vmatprep.subr.bf16.mxu0 0
  %143 = vmatpush1.bf16.msra.mxu0 0
  %144 = vmatprep.subr.bf16.mxu0 0
  %145 = vmatpush1.bf16.msra.mxu0 0
  %146 = vmatprep.subr.bf16.mxu0 0
  %147 = vmatpush1.bf16.msra.mxu0 0
  %148 = vmatprep.subr.bf16.mxu0 0
  %149 = vmatpush1.bf16.msra.mxu0 0
  %150 = vmatprep.subr.bf16.mxu0 0
  %151 = vmatpush1.bf16.msra.mxu0 0
  %152 = vmatprep.subr.bf16.mxu0 0
  %153 = vmatpush1.bf16.msra.mxu0 0
  %154 = vmatprep.subr.bf16.mxu0 0
  %155 = vmatpush1.bf16.msra.mxu0 0
  %156 = vmatprep.mubr.bf16.mxu0 0
  %157 = vmatmul.mubr.bf16.gmra.mrb[0].mxu0 %v72
  %v158 = vpop.f32.mrb[0].mxu0
  %v159 = vadd.f32 0.0, %v158
  %v160 = vpop.f32.mrb[0].mxu0
  %v161 = vpop.f32.mrb[0].mxu0
  %v162 = vadd.f32 0.0, %v161
  %v163 = vpop.f32.mrb[0].mxu0
  %164 = vmatprep.mubr.bf16.mxu0 0
  %165 = vmatmul.mubr.bf16.gmra.mrb[0].mxu0 %v73
  %v166 = vpop.f32.mrb[0].mxu0
  %v167 = vadd.f32 0.0, %v166
  %v168 = vpop.f32.mrb[0].mxu0
  %v169 = vpop.f32.mrb[0].mxu0
  %v170 = vadd.f32 0.0, %v169
  %v171 = vpop.f32.mrb[0].mxu0
  %172 = vdwg.mxu0
  %v177 = vunpack.c.l.b16 %v24
  %v178 = vunpack.c.l.b16 %v25
  %v179 = vunpack.c.l.b16 %v26
  %v180 = vunpack.c.l.b16 %v27
  %v181 = vpack.c.b16 %v178, %v177
  %v182 = vpack.c.b16 %v180, %v179
  %v201 = vunpack.c.l.b16 %v28
  %v202 = vunpack.c.l.b16 %v29
  %v203 = vunpack.c.l.b16 %v30
  %v204 = vunpack.c.l.b16 %v31
  %v205 = vunpack.c.l.b16 %v32
  %v206 = vunpack.c.l.b16 %v33
  %v207 = vunpack.c.l.b16 %v34
  %v208 = vunpack.c.l.b16 %v35
  %v209 = vunpack.c.l.b16 %v36
  %v210 = vunpack.c.l.b16 %v37
  %v211 = vunpack.c.l.b16 %v38
  %v212 = vunpack.c.l.b16 %v39
  %v213 = vunpack.c.l.b16 %v40
  %v214 = vunpack.c.l.b16 %v41
  %v215 = vunpack.c.l.b16 %v42
  %v216 = vunpack.c.l.b16 %v43
  %v217 = vpack.c.b16 %v202, %v201
  %v218 = vpack.c.b16 %v204, %v203
  %v219 = vpack.c.b16 %v206, %v205
  %v220 = vpack.c.b16 %v208, %v207
  %v221 = vpack.c.b16 %v210, %v209
  %v222 = vpack.c.b16 %v212, %v211
  %v223 = vpack.c.b16 %v214, %v213
  %v224 = vpack.c.b16 %v216, %v215
  %233 = vmatprep.subr.bf16.mxu0 0
  %234 = vmatpush1.bf16.msra.mxu0 %v217
  %235 = vmatprep.subr.bf16.mxu0 0
  %236 = vmatpush1.bf16.msra.mxu0 %v218
  %237 = vmatprep.subr.bf16.mxu0 0
  %238 = vmatpush1.bf16.msra.mxu0 %v219
  %239 = vmatprep.subr.bf16.mxu0 0
  %240 = vmatpush1.bf16.msra.mxu0 %v220
  %241 = vmatprep.subr.bf16.mxu0 0
  %242 = vmatpush1.bf16.msra.mxu0 %v221
  %243 = vmatprep.subr.bf16.mxu0 0
  %244 = vmatpush1.bf16.msra.mxu0 %v222
  %245 = vmatprep.subr.bf16.mxu0 0
  %246 = vmatpush1.bf16.msra.mxu0 %v223
  %247 = vmatprep.subr.bf16.mxu0 0
  %248 = vmatpush1.bf16.msra.mxu0 %v224
  %249 = vmatprep.subr.bf16.mxu0 0
  %250 = vmatpush1.bf16.msra.mxu0 0
  %251 = vmatprep.subr.bf16.mxu0 0
  %252 = vmatpush1.bf16.msra.mxu0 0
  %253 = vmatprep.subr.bf16.mxu0 0
  %254 = vmatpush1.bf16.msra.mxu0 0
  %255 = vmatprep.subr.bf16.mxu0 0
  %256 = vmatpush1.bf16.msra.mxu0 0
  %257 = vmatprep.subr.bf16.mxu0 0
  %258 = vmatpush1.bf16.msra.mxu0 0
  %259 = vmatprep.subr.bf16.mxu0 0
  %260 = vmatpush1.bf16.msra.mxu0 0
  %261 = vmatprep.subr.bf16.mxu0 0
  %262 = vmatpush1.bf16.msra.mxu0 0
  %263 = vmatprep.subr.bf16.mxu0 0
  %264 = vmatpush1.bf16.msra.mxu0 0
  %265 = vmatprep.mubr.bf16.mxu0 0
  %266 = vmatmul.mubr.bf16.gmra.mrb[0].mxu0 %v181
  %v267 = vpop.f32.mrb[0].mxu0
  %v268 = vadd.f32 %v159, %v267
  %v269 = vpop.f32.mrb[0].mxu0
  %v270 = vpop.f32.mrb[0].mxu0
  %v271 = vadd.f32 %v162, %v270
  %v272 = vpop.f32.mrb[0].mxu0
  %273 = vmatprep.mubr.bf16.mxu0 0
  %274 = vmatmul.mubr.bf16.gmra.mrb[0].mxu0 %v182
  %v275 = vpop.f32.mrb[0].mxu0
  %v276 = vadd.f32 %v167, %v275
  %v277 = vpop.f32.mrb[0].mxu0
  %v278 = vpop.f32.mrb[0].mxu0
  %v279 = vadd.f32 %v170, %v278
  %v280 = vpop.f32.mrb[0].mxu0
  %281 = vdwg.mxu0
  %v282 = vld [vmem:[%s4] sm:$0x1]
  %v284 = vlaneseq
  %v285 = vshrl.u32 %v284, 7
  %v286 = vsub.s32 0, %v285
  %v287 = vrot.slane %v282, %v286
  %v289 = vadd.f32 %v268, %v287
  %v290 = vadd.f32 %v271, %v287
  %v291 = vadd.f32 %v276, %v287
  %v292 = vadd.f32 %v279, %v287
  %v293 = vtanh.pop %v289
  %v294 = vtanh.pop %v290
  %v295 = vtanh.pop %v291
  %v296 = vtanh.pop %v292
  %v297 = vld [vmem:[%s5] sm:$0xff]
  %v298 = vld [vmem:[%s5 + $0x8] sm:$0xff]
  %v299 = vld [vmem:[%s5 + $0x10] sm:$0xff]
  %v300 = vld [vmem:[%s5 + $0x18] sm:$0xff]
  %302 = vset.pattern.permute.xlu0 0
  %303 = vperm.xlu0 %302, %v297
  %v304 = vpop.permute.xlu0 %303
  %307 = vset.pattern.permute.xlu0 0
  %308 = vperm.xlu0 %307, %v298
  %v309 = vpop.permute.xlu0 %308
  %312 = vset.pattern.permute.xlu0 0
  %313 = vperm.xlu0 %312, %v299
  %v314 = vpop.permute.xlu0 %313
  %317 = vset.pattern.permute.xlu0 0
  %318 = vperm.xlu0 %317, %v300
  %v319 = vpop.permute.xlu0 %318
  %v321 = vmul.f32 %v293, %v304
  %v322 = vmul.f32 %v294, %v309
  %v323 = vmul.f32 %v295, %v314
  %v324 = vmul.f32 %v296, %v319
  %325 = vst [vmem:[%s6] sm:$0xff] %v321
  %326 = vst [vmem:[%s6 + $0x8] sm:$0xff] %v322
  %327 = vst [vmem:[%s6 + $0x10] sm:$0xff] %v323
  %328 = vst [vmem:[%s6 + $0x18] sm:$0xff] %v324
  // Predicated region
  $region26: #{forward.36} parent=0 // pred_check
    _
  $region27: #{forward.36} parent=0 // pred_check_branch
    %330 = sbr.rel (0) target = $region29
  $region28: #{forward.36} parent=0 // pred_region
    _
  $region29: #{forward.36} parent=0 // pred_fallthru
    _
  // Predicated region
  $region30: #{forward.36} parent=0 // pred_check
    _
  $region31: #{forward.36} parent=0 // pred_check_branch
    %332 = sbr.rel (0) target = $region33
  $region32: #{forward.36} parent=0 // pred_region
    _
  $region33: #{forward.36} parent=0 // pred_fallthru
    _

// kernel: forward.31
$region0: #{forward.31}
  #allocation0 [shape = 'u32[]', space=smem, size = 0x4, offset = 0x4, fixed_abs, tag = 'smem constant byte address 0x4 - core index']
  #allocation1 [shape = 'u32[144,128]{1,0:T(1,128)}', space=vmem, size = 0x12000, scoped, tag = 'internal scratch']
  #allocation2 [shape = 'f32[32,384]{1,0:T(8,128)}', space=vmem, size = 0xc000, scoped, tag = 'scratch operand']
  %s0 = inlined_call_operand.vmem [shape: bf16[32,128], index: 0, kind: input, shape index: {}]
  %s1 = inlined_call_operand.vmem [shape: bf16[128,384], index: 1, kind: input, shape index: {}]
  %s2 = inlined_call_operand.vmem [shape: f32[1,384], index: 2, kind: input, shape index: {}]
  %s3 = inlined_call_operand.vmem [shape: f32[32,384], index: 3, kind: output, shape index: {}]
  %s4 = sld [smem:[#allocation0]]
  $region30: #{forward.31} parent=0
    _
  %s6 = ssub.s32 1, %s4
  %s7 = scalar_select 0, %s6, %s4
  // Predicated region
  $region2: #{forward.31} parent=0 // pred_check
    _
  $region3: #{forward.31} parent=0 // pred_check_branch
    %9 = sbr.rel (0) target = $region5
  $region4: #{forward.31} parent=0 // pred_region
    _
  $region5: #{forward.31} parent=0 // pred_fallthru
    _
  // Predicated region
  $region6: #{forward.31} parent=0 // pred_check
    _
  $region7: #{forward.31} parent=0 // pred_check_branch
    %11 = sbr.rel (0) target = $region9
  $region8: #{forward.31} parent=0 // pred_region
    _
  $region9: #{forward.31} parent=0 // pred_fallthru
    _
  // Predicated region
  $region10: #{forward.31} parent=0 // pred_check
    _
  $region11: #{forward.31} parent=0 // pred_check_branch
    %13 = sbr.rel (0) target = $region13
  $region12: #{forward.31} parent=0 // pred_region
    _
  $region13: #{forward.31} parent=0 // pred_fallthru
    _
  %p15 = scmp.eq.s32.totalorder 0, 0
  // Predicated region
  $region14: #{forward.31} parent=0 // pred_check
    %p16 = pneg %p15
  $region15: #{forward.31} parent=0 // pred_check_branch
    %18 = sbr.rel (%p16) target = $region17
  $region16: #{forward.31} parent=0 // pred_region
    %19 = vst [vmem:[#allocation2] sm:$0xff] 0.0
    %20 = vst [vmem:[#allocation2 + $0x8] sm:$0xff] 0.0
    %21 = vst [vmem:[#allocation2 + $0x10] sm:$0xff] 0.0
    %22 = vst [vmem:[#allocation2 + $0x18] sm:$0xff] 0.0
    %23 = vst [vmem:[#allocation2 + $0x20] sm:$0xff] 0.0
    %24 = vst [vmem:[#allocation2 + $0x28] sm:$0xff] 0.0
    %25 = vst [vmem:[#allocation2 + $0x30] sm:$0xff] 0.0
    %26 = vst [vmem:[#allocation2 + $0x38] sm:$0xff] 0.0
    %27 = vst [vmem:[#allocation2 + $0x40] sm:$0xff] 0.0
    %28 = vst [vmem:[#allocation2 + $0x48] sm:$0xff] 0.0
    %29 = vst [vmem:[#allocation2 + $0x50] sm:$0xff] 0.0
    %30 = vst [vmem:[#allocation2 + $0x58] sm:$0xff] 0.0
  $region17: #{forward.31} parent=0 // pred_fallthru
    _
  %v31 = vld [vmem:[#allocation2] sm:$0xff]
  %v32 = vld [vmem:[#allocation2 + $0x8] sm:$0xff]
  %v33 = vld [vmem:[#allocation2 + $0x10] sm:$0xff]
  %v34 = vld [vmem:[#allocation2 + $0x18] sm:$0xff]
  %v35 = vld [vmem:[#allocation2 + $0x20] sm:$0xff]
  %v36 = vld [vmem:[#allocation2 + $0x28] sm:$0xff]
  %v37 = vld [vmem:[#allocation2 + $0x30] sm:$0xff]
  %v38 = vld [vmem:[#allocation2 + $0x38] sm:$0xff]
  %v39 = vld [vmem:[#allocation2 + $0x40] sm:$0xff]
  %v40 = vld [vmem:[#allocation2 + $0x48] sm:$0xff]
  %v41 = vld [vmem:[#allocation2 + $0x50] sm:$0xff]
  %v42 = vld [vmem:[#allocation2 + $0x58] sm:$0xff]
  %v43 = vld [vmem:[%s0] sm:$0xf]
  %v44 = vld [vmem:[%s0 + $0x4] sm:$0xf]
  %v45 = vld [vmem:[%s0 + $0x8] sm:$0xf]
  %v46 = vld [vmem:[%s0 + $0xc] sm:$0xf]
  %v47 = vld [vmem:[%s1] sm:$0xff]
  %v48 = vld [vmem:[%s1 + $0x8] sm:$0xf]
  %v49 = vld [vmem:[%s1 + $0xc] sm:$0xff]
  %v50 = vld [vmem:[%s1 + $0x14] sm:$0xf]
  %v51 = vld [vmem:[%s1 + $0x18] sm:$0xff]
  %v52 = vld [vmem:[%s1 + $0x20] sm:$0xf]
  %v53 = vld [vmem:[%s1 + $0x24] sm:$0xff]
  %v54 = vld [vmem:[%s1 + $0x2c] sm:$0xf]
  %v55 = vld [vmem:[%s1 + $0x30] sm:$0xff]
  %v56 = vld [vmem:[%s1 + $0x38] sm:$0xf]
  %v57 = vld [vmem:[%s1 + $0x3c] sm:$0xff]
  %v58 = vld [vmem:[%s1 + $0x44] sm:$0xf]
  %v59 = vld [vmem:[%s1 + $0x48] sm:$0xff]
  %v60 = vld [vmem:[%s1 + $0x50] sm:$0xf]
  %v61 = vld [vmem:[%s1 + $0x54] sm:$0xff]
  %v62 = vld [vmem:[%s1 + $0x5c] sm:$0xf]
  %v63 = vld [vmem:[%s1 + $0x60] sm:$0xff]
  %v64 = vld [vmem:[%s1 + $0x68] sm:$0xf]
  %v65 = vld [vmem:[%s1 + $0x6c] sm:$0xff]
  %v66 = vld [vmem:[%s1 + $0x74] sm:$0xf]
  %v67 = vld [vmem:[%s1 + $0x78] sm:$0xff]
  %v68 = vld [vmem:[%s1 + $0x80] sm:$0xf]
  %v69 = vld [vmem:[%s1 + $0x84] sm:$0xff]
  %v70 = vld [vmem:[%s1 + $0x8c] sm:$0xf]
  %v71 = vld [vmem:[%s1 + $0x90] sm:$0xff]
  %v72 = vld [vmem:[%s1 + $0x98] sm:$0xf]
  %v73 = vld [vmem:[%s1 + $0x9c] sm:$0xff]
  %v74 = vld [vmem:[%s1 + $0xa4] sm:$0xf]
  %v75 = vld [vmem:[%s1 + $0xa8] sm:$0xff]
  %v76 = vld [vmem:[%s1 + $0xb0] sm:$0xf]
  %v77 = vld [vmem:[%s1 + $0xb4] sm:$0xff]
  %v78 = vld [vmem:[%s1 + $0xbc] sm:$0xf]
  %v83 = vunpack.c.l.b16 %v43
  %v84 = vunpack.c.l.b16 %v44
  %v85 = vunpack.c.l.b16 %v45
  %v86 = vunpack.c.l.b16 %v46
  %v87 = vpack.c.b16 %v84, %v83
  %v88 = vpack.c.b16 %v86, %v85
  %v123 = vunpack.c.l.b16 %v47
  %v124 = vunpack.c.h.b16 %v47
  %v125 = vunpack.c.l.b16 %v48
  %v126 = vunpack.c.l.b16 %v49
  %v127 = vunpack.c.h.b16 %v49
  %v128 = vunpack.c.l.b16 %v50
  %v129 = vunpack.c.l.b16 %v51
  %v130 = vunpack.c.h.b16 %v51
  %v131 = vunpack.c.l.b16 %v52
  %v132 = vunpack.c.l.b16 %v53
  %v133 = vunpack.c.h.b16 %v53
  %v134 = vunpack.c.l.b16 %v54
  %v135 = vunpack.c.l.b16 %v55
  %v136 = vunpack.c.h.b16 %v55
  %v137 = vunpack.c.l.b16 %v56
  %v138 = vunpack.c.l.b16 %v57
  %v139 = vunpack.c.h.b16 %v57
  %v140 = vunpack.c.l.b16 %v58
  %v141 = vunpack.c.l.b16 %v59
  %v142 = vunpack.c.h.b16 %v59
  %v143 = vunpack.c.l.b16 %v60
  %v144 = vunpack.c.l.b16 %v61
  %v145 = vunpack.c.h.b16 %v61
  %v146 = vunpack.c.l.b16 %v62
  %v147 = vunpack.c.l.b16 %v63
  %v148 = vunpack.c.h.b16 %v63
  %v149 = vunpack.c.l.b16 %v64
  %v150 = vunpack.c.l.b16 %v65
  %v151 = vunpack.c.h.b16 %v65
  %v152 = vunpack.c.l.b16 %v66
  %v153 = vunpack.c.l.b16 %v67
  %v154 = vunpack.c.h.b16 %v67
  %v155 = vunpack.c.l.b16 %v68
  %v156 = vunpack.c.l.b16 %v69
  %v157 = vunpack.c.h.b16 %v69
  %v158 = vunpack.c.l.b16 %v70
  %v159 = vunpack.c.l.b16 %v71
  %v160 = vunpack.c.h.b16 %v71
  %v161 = vunpack.c.l.b16 %v72
  %v162 = vunpack.c.l.b16 %v73
  %v163 = vunpack.c.h.b16 %v73
  %v164 = vunpack.c.l.b16 %v74
  %v165 = vunpack.c.l.b16 %v75
  %v166 = vunpack.c.h.b16 %v75
  %v167 = vunpack.c.l.b16 %v76
  %v168 = vunpack.c.l.b16 %v77
  %v169 = vunpack.c.h.b16 %v77
  %v170 = vunpack.c.l.b16 %v78
  %v171 = vpack.c.b16 %v126, %v123
  %v172 = vpack.c.b16 %v127, %v124
  %v173 = vpack.c.b16 %v128, %v125
  %v174 = vpack.c.b16 %v132, %v129
  %v175 = vpack.c.b16 %v133, %v130
  %v176 = vpack.c.b16 %v134, %v131
  %v177 = vpack.c.b16 %v138, %v135
  %v178 = vpack.c.b16 %v139, %v136
  %v179 = vpack.c.b16 %v140, %v137
  %v180 = vpack.c.b16 %v144, %v141
  %v181 = vpack.c.b16 %v145, %v142
  %v182 = vpack.c.b16 %v146, %v143
  %v183 = vpack.c.b16 %v150, %v147
  %v184 = vpack.c.b16 %v151, %v148
  %v185 = vpack.c.b16 %v152, %v149
  %v186 = vpack.c.b16 %v156, %v153
  %v187 = vpack.c.b16 %v157, %v154
  %v188 = vpack.c.b16 %v158, %v155
  %v189 = vpack.c.b16 %v162, %v159
  %v190 = vpack.c.b16 %v163, %v160
  %v191 = vpack.c.b16 %v164, %v161
  %v192 = vpack.c.b16 %v168, %v165
  %v193 = vpack.c.b16 %v169, %v166
  %v194 = vpack.c.b16 %v170, %v167
  %219 = vmatprep.subr.bf16.mxu0 %v172
  %220 = vmatpush1.bf16.msra.mxu0 %v171
  %221 = vmatprep.subr.bf16.mxu0 %v175
  %222 = vmatpush1.bf16.msra.mxu0 %v174
  %223 = vmatprep.subr.bf16.mxu0 %v178
  %224 = vmatpush1.bf16.msra.mxu0 %v177
  %225 = vmatprep.subr.bf16.mxu0 %v181
  %226 = vmatpush1.bf16.msra.mxu0 %v180
  %227 = vmatprep.subr.bf16.mxu0 %v184
  %228 = vmatpush1.bf16.msra.mxu0 %v183
  %229 = vmatprep.subr.bf16.mxu0 %v187
  %230 = vmatpush1.bf16.msra.mxu0 %v186
  %231 = vmatprep.subr.bf16.mxu0 %v190
  %232 = vmatpush1.bf16.msra.mxu0 %v189
  %233 = vmatprep.subr.bf16.mxu0 %v193
  %234 = vmatpush1.bf16.msra.mxu0 %v192
  %235 = vmatprep.subr.bf16.mxu0 0
  %236 = vmatpush1.bf16.msra.mxu0 0
  %237 = vmatprep.subr.bf16.mxu0 0
  %238 = vmatpush1.bf16.msra.mxu0 0
  %239 = vmatprep.subr.bf16.mxu0 0
  %240 = vmatpush1.bf16.msra.mxu0 0
  %241 = vmatprep.subr.bf16.mxu0 0
  %242 = vmatpush1.bf16.msra.mxu0 0
  %243 = vmatprep.subr.bf16.mxu0 0
  %244 = vmatpush1.bf16.msra.mxu0 0
  %245 = vmatprep.subr.bf16.mxu0 0
  %246 = vmatpush1.bf16.msra.mxu0 0
  %247 = vmatprep.subr.bf16.mxu0 0
  %248 = vmatpush1.bf16.msra.mxu0 0
  %249 = vmatprep.subr.bf16.mxu0 0
  %250 = vmatpush1.bf16.msra.mxu0 0
  %251 = vmatprep.mubr.bf16.mxu0 0
  %252 = vmatmul.mubr.bf16.gmra.mrb[0].mxu0 %v87
  %v253 = vpop.f32.mrb[0].mxu0
  %v254 = vadd.f32 0.0, %v253
  %v255 = vpop.f32.mrb[0].mxu0
  %v256 = vadd.f32 0.0, %v255
  %v257 = vpop.f32.mrb[0].mxu0
  %v258 = vadd.f32 0.0, %v257
  %v259 = vpop.f32.mrb[0].mxu0
  %v260 = vadd.f32 0.0, %v259
  %261 = vmatprep.mubr.bf16.mxu0 0
  %262 = vmatmul.mubr.bf16.gmra.mrb[0].mxu0 %v88
  %v263 = vpop.f32.mrb[0].mxu0
  %v264 = vadd.f32 0.0, %v263
  %v265 = vpop.f32.mrb[0].mxu0
  %v266 = vadd.f32 0.0, %v265
  %v267 = vpop.f32.mrb[0].mxu0
  %v268 = vadd.f32 0.0, %v267
  %v269 = vpop.f32.mrb[0].mxu0
  %v270 = vadd.f32 0.0, %v269
  %271 = vdwg.mxu0
  %272 = vmatprep.subr.bf16.mxu0 0
  %273 = vmatpush1.bf16.msra.mxu0 %v173
  %274 = vmatprep.subr.bf16.mxu0 0
  %275 = vmatpush1.bf16.msra.mxu0 %v176
  %276 = vmatprep.subr.bf16.mxu0 0
  %277 = vmatpush1.bf16.msra.mxu0 %v179
  %278 = vmatprep.subr.bf16.mxu0 0
  %279 = vmatpush1.bf16.msra.mxu0 %v182
  %280 = vmatprep.subr.bf16.mxu0 0
  %281 = vmatpush1.bf16.msra.mxu0 %v185
  %282 = vmatprep.subr.bf16.mxu0 0
  %283 = vmatpush1.bf16.msra.mxu0 %v188
  %284 = vmatprep.subr.bf16.mxu0 0
  %285 = vmatpush1.bf16.msra.mxu0 %v191
  %286 = vmatprep.subr.bf16.mxu0 0
  %287 = vmatpush1.bf16.msra.mxu0 %v194
  %288 = vmatprep.subr.bf16.mxu0 0
  %289 = vmatpush1.bf16.msra.mxu0 0
  %290 = vmatprep.subr.bf16.mxu0 0
  %291 = vmatpush1.bf16.msra.mxu0 0
  %292 = vmatprep.subr.bf16.mxu0 0
  %293 = vmatpush1.bf16.msra.mxu0 0
  %294 = vmatprep.subr.bf16.mxu0 0
  %295 = vmatpush1.bf16.msra.mxu0 0
  %296 = vmatprep.subr.bf16.mxu0 0
  %297 = vmatpush1.bf16.msra.mxu0 0
  %298 = vmatprep.subr.bf16.mxu0 0
  %299 = vmatpush1.bf16.msra.mxu0 0
  %300 = vmatprep.subr.bf16.mxu0 0
  %301 = vmatpush1.bf16.msra.mxu0 0
  %302 = vmatprep.subr.bf16.mxu0 0
  %303 = vmatpush1.bf16.msra.mxu0 0
  %304 = vmatprep.mubr.bf16.mxu0 0
  %305 = vmatmul.mubr.bf16.gmra.mrb[0].mxu0 %v87
  %v306 = vpop.f32.mrb[0].mxu0
  %v307 = vadd.f32 0.0, %v306
  %v308 = vpop.f32.mrb[0].mxu0
  %v309 = vpop.f32.mrb[0].mxu0
  %v310 = vadd.f32 0.0, %v309
  %v311 = vpop.f32.mrb[0].mxu0
  %312 = vmatprep.mubr.bf16.mxu0 0
  %313 = vmatmul.mubr.bf16.gmra.mrb[0].mxu0 %v88
  %v314 = vpop.f32.mrb[0].mxu0
  %v315 = vadd.f32 0.0, %v314
  %v316 = vpop.f32.mrb[0].mxu0
  %v317 = vpop.f32.mrb[0].mxu0
  %v318 = vadd.f32 0.0, %v317
  %v319 = vpop.f32.mrb[0].mxu0
  %320 = vdwg.mxu0
  %v321 = vadd.f32 %v31, %v254
  %v322 = vadd.f32 %v32, %v256
  %v323 = vadd.f32 %v33, %v307
  %v324 = vadd.f32 %v34, %v258
  %v325 = vadd.f32 %v35, %v260
  %v326 = vadd.f32 %v36, %v310
  %v327 = vadd.f32 %v37, %v264
  %v328 = vadd.f32 %v38, %v266
  %v329 = vadd.f32 %v39, %v315
  %v330 = vadd.f32 %v40, %v268
  %v331 = vadd.f32 %v41, %v270
  %v332 = vadd.f32 %v42, %v318
  %333 = vst [vmem:[#allocation2] sm:$0xff] %v321
  %334 = vst [vmem:[#allocation2 + $0x8] sm:$0xff] %v322
  %335 = vst [vmem:[#allocation2 + $0x10] sm:$0xff] %v323
  %336 = vst [vmem:[#allocation2 + $0x18] sm:$0xff] %v324
  %337 = vst [vmem:[#allocation2 + $0x20] sm:$0xff] %v325
  %338 = vst [vmem:[#allocation2 + $0x28] sm:$0xff] %v326
  %339 = vst [vmem:[#allocation2 + $0x30] sm:$0xff] %v327
  %340 = vst [vmem:[#allocation2 + $0x38] sm:$0xff] %v328
  %341 = vst [vmem:[#allocation2 + $0x40] sm:$0xff] %v329
  %342 = vst [vmem:[#allocation2 + $0x48] sm:$0xff] %v330
  %343 = vst [vmem:[#allocation2 + $0x50] sm:$0xff] %v331
  %344 = vst [vmem:[#allocation2 + $0x58] sm:$0xff] %v332
  // Predicated region
  $region18: #{forward.31} parent=0 // pred_check
    %p345 = pneg %p15
  $region19: #{forward.31} parent=0 // pred_check_branch
    %347 = sbr.rel (%p345) target = $region21
  $region20: #{forward.31} parent=0 // pred_region
    %v348 = vld [vmem:[#allocation2] sm:$0xff]
    %v349 = vld [vmem:[#allocation2 + $0x8] sm:$0xff]
    %v350 = vld [vmem:[#allocation2 + $0x10] sm:$0xff]
    %v351 = vld [vmem:[#allocation2 + $0x18] sm:$0xff]
    %v352 = vld [vmem:[#allocation2 + $0x20] sm:$0xff]
    %v353 = vld [vmem:[#allocation2 + $0x28] sm:$0xff]
    %v354 = vld [vmem:[#allocation2 + $0x30] sm:$0xff]
    %v355 = vld [vmem:[#allocation2 + $0x38] sm:$0xff]
    %v356 = vld [vmem:[#allocation2 + $0x40] sm:$0xff]
    %v357 = vld [vmem:[#allocation2 + $0x48] sm:$0xff]
    %v358 = vld [vmem:[#allocation2 + $0x50] sm:$0xff]
    %v359 = vld [vmem:[#allocation2 + $0x58] sm:$0xff]
    %v360 = vld [vmem:[%s2] sm:$0x7]
    %v362 = vlaneseq
    %v363 = vshrl.u32 %v362, 7
    %v364 = vsub.s32 0, %v363
    %v365 = vrot.slane %v360, %v364
    %v366 = vlaneseq
    %v367 = vshrl.u32 %v366, 7
    %v368 = vsub.s32 1, %v367
    %v369 = vrot.slane %v360, %v368
    %v370 = vlaneseq
    %v371 = vshrl.u32 %v370, 7
    %v372 = vsub.s32 2, %v371
    %v373 = vrot.slane %v360, %v372
    %v377 = vadd.f32 %v348, %v365
    %v378 = vadd.f32 %v349, %v369
    %v379 = vadd.f32 %v350, %v373
    %v380 = vadd.f32 %v351, %v365
    %v381 = vadd.f32 %v352, %v369
    %v382 = vadd.f32 %v353, %v373
    %v383 = vadd.f32 %v354, %v365
    %v384 = vadd.f32 %v355, %v369
    %v385 = vadd.f32 %v356, %v373
    %v386 = vadd.f32 %v357, %v365
    %v387 = vadd.f32 %v358, %v369
    %v388 = vadd.f32 %v359, %v373
    %389 = vst [vmem:[%s3] sm:$0xff] %v377
    %390 = vst [vmem:[%s3 + $0x8] sm:$0xff] %v378
    %391 = vst [vmem:[%s3 + $0x10] sm:$0xff] %v379
    %392 = vst [vmem:[%s3 + $0x18] sm:$0xff] %v380
    %393 = vst [vmem:[%s3 + $0x20] sm:$0xff] %v381
    %394 = vst [vmem:[%s3 + $0x28] sm:$0xff] %v382
    %395 = vst [vmem:[%s3 + $0x30] sm:$0xff] %v383
    %396 = vst [vmem:[%s3 + $0x38] sm:$0xff] %v384
    %397 = vst [vmem:[%s3 + $0x40] sm:$0xff] %v385
    %398 = vst [vmem:[%s3 + $0x48] sm:$0xff] %v386
    %399 = vst [vmem:[%s3 + $0x50] sm:$0xff] %v387
    %400 = vst [vmem:[%s3 + $0x58] sm:$0xff] %v388
  $region21: #{forward.31} parent=0 // pred_fallthru
    _
  // Predicated region
  $region22: #{forward.31} parent=0 // pred_check
    _
  $region23: #{forward.31} parent=0 // pred_check_branch
    %402 = sbr.rel (0) target = $region25
  $region24: #{forward.31} parent=0 // pred_region
    _
  $region25: #{forward.31} parent=0 // pred_fallthru
    _
  // Predicated region
  $region26: #{forward.31} parent=0 // pred_check
    _
  $region27: #{forward.31} parent=0 // pred_check_branch
    %404 = sbr.rel (0) target = $region29
  $region28: #{forward.31} parent=0 // pred_region
    _
  $region29: #{forward.31} parent=0 // pred_fallthru
    _

// kernel: forward.35
$region0: #{forward.35}
  #allocation0 [shape = 'u32[]', space=smem, size = 0x4, offset = 0x4, fixed_abs, tag = 'smem constant byte address 0x4 - core index']
  #allocation1 [shape = 'u32[144,128]{1,0:T(1,128)}', space=vmem, size = 0x12000, scoped, tag = 'internal scratch']
  #allocation2 [shape = 'f32[16,1]{1,0:T(8,128)}', space=vmem, size = 0x2000, scoped, tag = 'scratch operand']
  #allocation3 [shape = 'f32[16,1]{1,0:T(8,128)}', space=vmem, size = 0x2000, scoped, tag = 'scratch operand']
  #allocation4 [shape = 'f32[16,128]{1,0:T(8,128)}', space=vmem, size = 0x2000, scoped, tag = 'scratch operand']
  %s0 = inlined_call_operand.vmem [shape: f32[2,1,128], index: 0, kind: input, shape index: {}]
  %s1 = inlined_call_operand.vmem [shape: bf16[2,16,128], index: 1, kind: input, shape index: {}]
  %s2 = inlined_call_operand.vmem [shape: bf16[2,128,128], index: 2, kind: input, shape index: {}]
  %s3 = inlined_call_operand.vmem [shape: f32[2,16,128], index: 3, kind: output, shape index: {}]
  %s4 = sld [smem:[#allocation0]]
  $region53: #{forward.35} parent=0
    _
  %s6 = ssub.s32 1, %s4
  %s7 = scalar_select 0, %s6, %s4
  loop: start=0, step=1, limit=4
  $region2: #{forward.35} parent=0 // loop_pre_header
    _
  $region3: #{forward.35} parent=0 // loop_header
    %s9 = sphi 0, %s13
    %p10 = scmp.ge.s32.totalorder %s9, 4
    %s16 = sphi 0, %s35
    %s17 = sphi 0, %s31
    %s18 = sphi 0, %s27
    %s19 = sphi 0, %s16
    %s20 = sphi 0, %s17
    %s21 = sphi 0, %s18
    %s22 = sphi 0, %s19
    %s23 = sphi 0, %s20
    %s24 = sphi 0, %s21
    %s40 = sphi 0, %s42
    %s43 = sphi 0, %s40
    %s44 = sphi 0, %s43
    %s60 = sphi 0, %s44
    %s68 = sphi 0, %s70
    %s71 = sphi 0, %s68
    %s72 = sphi 0, %s71
    %s88 = sphi 0, %s72
    %s96 = sphi 0, %s98
    %s99 = sphi 0, %s96
    %s100 = sphi 0, %s99
    %s116 = sphi 0, %s100
    %s124 = sphi 0, %s126
    %s127 = sphi 0, %s124
    %s128 = sphi 0, %s127
    %s144 = sphi 0, %s128
  $region4: #{forward.35} parent=0 // loop_header_branch
    %12 = sbr.rel (%p10) target = $region8
  $region5: #{forward.35} parent=0 // loop_body
    %s14 = ssub.s32 %s9, 1
    %s15 = ssub.s32 %s9, 2
    %s25 = sadd.s32 1, %s18
    %p26 = scmp.ge.s32.totalorder %s25, 1
    %s27 = scalar_select %p26, 0, %s25
    %s28 = sadd.s32 1, %s17
    %s29 = scalar_select %p26, %s28, %s17
    %p30 = scmp.ge.s32.totalorder %s29, 1
    %s31 = scalar_select %p30, 0, %s29
    %s32 = sadd.s32 1, %s16
    %s33 = scalar_select %p30, %s32, %s16
    %p34 = scmp.ge.s32.totalorder %s33, 2
    %s35 = scalar_select %p34, 0, %s33
    %s36 = ssub.s32 %s16, %s35
    %s37 = ssub.s32 %s18, %s27
    %s38 = sor.u32 %s36, %s37
    %p39 = scmp.eq.s32.totalorder %s38, 0
    %s41 = sadd.s32 %s40, 1
    %s42 = scalar_select %p39, %s40, %s41
    %p45 = pneg %p39
    %p46 = scmp.eq.s32.totalorder %s9, 1
    %p47 = por %p45, %p46
    %p48 = scmp.ne.s32.totalorder %s40, %s43
    %p49 = scmp.eq.s32.totalorder %s9, 0
    %p50 = por %p48, %p49
    %p51 = scmp.ne.s32.totalorder %s40, %s43
    %p52 = scmp.eq.s32.totalorder %s14, 1
    %p53 = por %p51, %p52
    %p54 = scmp.ne.s32.totalorder %s43, %s44
    %p55 = scmp.eq.s32.totalorder %s14, 0
    %p56 = por %p54, %p55
    %p57 = scmp.ne.s32.totalorder %s43, %s44
    %p58 = scmp.eq.s32.totalorder %s15, 1
    %p59 = por %p57, %p58
    %p61 = scmp.ne.s32.totalorder %s44, %s60
    %p62 = scmp.eq.s32.totalorder %s15, 0
    %p63 = por %p61, %p62
    %s64 = ssub.s32 %s16, %s35
    %s65 = ssub.s32 %s17, %s31
    %s66 = sor.u32 %s64, %s65
    %p67 = scmp.eq.s32.totalorder %s66, 0
    %s69 = sadd.s32 %s68, 1
    %s70 = scalar_select %p67, %s68, %s69
    %p73 = pneg %p67
    %p74 = scmp.eq.s32.totalorder %s9, 1
    %p75 = por %p73, %p74
    %p76 = scmp.ne.s32.totalorder %s68, %s71
    %p77 = scmp.eq.s32.totalorder %s9, 0
    %p78 = por %p76, %p77
    %p79 = scmp.ne.s32.totalorder %s68, %s71
    %p80 = scmp.eq.s32.totalorder %s14, 1
    %p81 = por %p79, %p80
    %p82 = scmp.ne.s32.totalorder %s71, %s72
    %p83 = scmp.eq.s32.totalorder %s14, 0
    %p84 = por %p82, %p83
    %p85 = scmp.ne.s32.totalorder %s71, %s72
    %p86 = scmp.eq.s32.totalorder %s15, 1
    %p87 = por %p85, %p86
    %p89 = scmp.ne.s32.totalorder %s72, %s88
    %p90 = scmp.eq.s32.totalorder %s15, 0
    %p91 = por %p89, %p90
    %s92 = ssub.s32 %s16, %s35
    %s93 = ssub.s32 %s18, %s27
    %s94 = sor.u32 %s92, %s93
    %p95 = scmp.eq.s32.totalorder %s94, 0
    %s97 = sadd.s32 %s96, 1
    %s98 = scalar_select %p95, %s96, %s97
    %p101 = pneg %p95
    %p102 = scmp.eq.s32.totalorder %s9, 1
    %p103 = por %p101, %p102
    %p104 = scmp.ne.s32.totalorder %s96, %s99
    %p105 = scmp.eq.s32.totalorder %s9, 0
    %p106 = por %p104, %p105
    %p107 = scmp.ne.s32.totalorder %s96, %s99
    %p108 = scmp.eq.s32.totalorder %s14, 1
    %p109 = por %p107, %p108
    %p110 = scmp.ne.s32.totalorder %s99, %s100
    %p111 = scmp.eq.s32.totalorder %s14, 0
    %p112 = por %p110, %p111
    %p113 = scmp.ne.s32.totalorder %s99, %s100
    %p114 = scmp.eq.s32.totalorder %s15, 1
    %p115 = por %p113, %p114
    %p117 = scmp.ne.s32.totalorder %s100, %s116
    %p118 = scmp.eq.s32.totalorder %s15, 0
    %p119 = por %p117, %p118
    %s120 = ssub.s32 %s16, %s35
    %s121 = ssub.s32 %s17, %s31
    %s122 = sor.u32 %s120, %s121
    %p123 = scmp.eq.s32.totalorder %s122, 0
    %s125 = sadd.s32 %s124, 1
    %s126 = scalar_select %p123, %s124, %s125
    %p129 = pneg %p123
    %p130 = scmp.eq.s32.totalorder %s9, 1
    %p131 = por %p129, %p130
    %p132 = scmp.ne.s32.totalorder %s124, %s127
    %p133 = scmp.eq.s32.totalorder %s9, 0
    %p134 = por %p132, %p133
    %p135 = scmp.ne.s32.totalorder %s124, %s127
    %p136 = scmp.eq.s32.totalorder %s14, 1
    %p137 = por %p135, %p136
    %p138 = scmp.ne.s32.totalorder %s127, %s128
    %p139 = scmp.eq.s32.totalorder %s14, 0
    %p140 = por %p138, %p139
    %p141 = scmp.ne.s32.totalorder %s127, %s128
    %p142 = scmp.eq.s32.totalorder %s15, 1
    %p143 = por %p141, %p142
    %p145 = scmp.ne.s32.totalorder %s128, %s144
    %p146 = scmp.eq.s32.totalorder %s15, 0
    %p147 = por %p145, %p146
    %p148 = scmp.le.s32.totalorder 1, %s9
    %p149 = scmp.lt.s32.totalorder %s9, 3
    %p150 = pnand %p148, %p149
    %p151 = pneg %p150
    // Predicated region
    $region9: #{forward.35} parent=5 // pred_check
      _
    $region10: #{forward.35} parent=5 // pred_check_branch
      %153 = sbr.rel (%p150) target = $region12
    $region11: #{forward.35} parent=5 // pred_region
      %s154 = ssub.s32 %s9, 1
    $region12: #{forward.35} parent=5 // pred_fallthru
      _
    %p155 = scmp.lt.s32.totalorder %s9, 2
    // Predicated region
    $region13: #{forward.35} parent=5 // pred_check
      %p156 = pneg %p155
    $region14: #{forward.35} parent=5 // pred_check_branch
      %158 = sbr.rel (%p156) target = $region16
    $region15: #{forward.35} parent=5 // pred_region
      // Predicated region
      $region17: #{forward.35} parent=15 // pred_check
        %p159 = pneg %p50
      $region18: #{forward.35} parent=15 // pred_check_branch
        %161 = sbr.rel (%p159) target = $region20
      $region19: #{forward.35} parent=15 // pred_region
        %p162 = scmp.lt.s32.totalorder %s16, 1
        %s163 = scalar_select %p162, %s16, 1
        %p164 = scmp.lt.s32.totalorder %s18, 0
        %s165 = scalar_select %p164, %s18, 0
        %s166 = sadd.s32 %s165, %s163
        %s167 = scalar_lea.vmem %s0, %s166
      $region20: #{forward.35} parent=15 // pred_fallthru
        _
      // Predicated region
      $region21: #{forward.35} parent=15 // pred_check
        %p168 = pneg %p78
      $region22: #{forward.35} parent=15 // pred_check_branch
        %170 = sbr.rel (%p168) target = $region24
      $region23: #{forward.35} parent=15 // pred_region
        %s171 = smul.u32 2, %s17
        %p172 = scmp.lt.s32.totalorder %s16, 1
        %s173 = scalar_select %p172, %s16, 1
        %p174 = scmp.lt.s32.totalorder %s171, 1
        %s175 = scalar_select %p174, %s171, 1
        %s176 = smul.addr %s173, 2
        %s177 = sadd.s32 %s175, %s176
        %s178 = smul.addr %s177, 4
        %s179 = scalar_lea.vmem %s1, %s178
        %s180 = smul.u32 2, %s17
      $region24: #{forward.35} parent=15 // pred_fallthru
        _
      // Predicated region
      $region25: #{forward.35} parent=15 // pred_check
        %p181 = pneg %p106
      $region26: #{forward.35} parent=15 // pred_check_branch
        %183 = sbr.rel (%p181) target = $region28
      $region27: #{forward.35} parent=15 // pred_region
        %s184 = smul.u32 16, %s18
        %p185 = scmp.lt.s32.totalorder %s16, 1
        %s186 = scalar_select %p185, %s16, 1
        %p187 = scmp.lt.s32.totalorder %s184, 15
        %s188 = scalar_select %p187, %s184, 15
        %s189 = smul.addr %s186, 16
        %s190 = sadd.s32 %s188, %s189
        %s191 = smul.addr %s190, 4
        %s192 = scalar_lea.vmem %s2, %s191
        %s193 = smul.u32 16, %s18
      $region28: #{forward.35} parent=15 // pred_fallthru
        _
    $region16: #{forward.35} parent=5 // pred_fallthru
      _
    %p194 = scmp.le.s32.totalorder 1, %s9
    %p195 = scmp.lt.s32.totalorder %s9, 3
    %p196 = pnand %p194, %p195
    %p197 = pneg %p196
    // Predicated region
    $region29: #{forward.35} parent=5 // pred_check
      _
    $region30: #{forward.35} parent=5 // pred_check_branch
      %199 = sbr.rel (%p196) target = $region32
    $region31: #{forward.35} parent=5 // pred_region
      %s200 = ssub.s32 %s9, 1
      %p201 = scmp.lt.s32.totalorder %s19, 1
      %s202 = scalar_select %p201, %s19, 1
      %p203 = scmp.lt.s32.totalorder %s21, 0
      %s204 = scalar_select %p203, %s21, 0
      %s205 = sadd.s32 %s204, %s202
      %s206 = scalar_lea.vmem %s0, %s205
      %p207 = pneg %p56
      %p208 = pneg %p53
      %s209 = smul.u32 2, %s20
      %p210 = scmp.lt.s32.totalorder %s19, 1
      %s211 = scalar_select %p210, %s19, 1
      %p212 = scmp.lt.s32.totalorder %s209, 1
      %s213 = scalar_select %p212, %s209, 1
      %s214 = smul.addr %s211, 2
      %s215 = sadd.s32 %s213, %s214
      %s216 = smul.addr %s215, 4
      %s217 = scalar_lea.vmem %s1, %s216
      %p218 = pneg %p84
      %p219 = pneg %p81
      %s220 = smul.u32 16, %s21
      %p221 = scmp.lt.s32.totalorder %s19, 1
      %s222 = scalar_select %p221, %s19, 1
      %p223 = scmp.lt.s32.totalorder %s220, 15
      %s224 = scalar_select %p223, %s220, 15
      %s225 = smul.addr %s222, 16
      %s226 = sadd.s32 %s224, %s225
      %s227 = smul.addr %s226, 4
      %s228 = scalar_lea.vmem %s2, %s227
      %p229 = pneg %p112
      %p230 = pneg %p109
      %p231 = pneg %p140
      %p232 = pneg %p137
      %s233 = smul.u32 2, %s20
      %p234 = scmp.lt.s32.totalorder %s19, 1
      %s235 = scalar_select %p234, %s19, 1
      %p236 = scmp.lt.s32.totalorder %s233, 1
      %s237 = scalar_select %p236, %s233, 1
      %s238 = smul.addr %s235, 2
      %s239 = sadd.s32 %s237, %s238
      %s240 = smul.addr %s239, 8
      %s241 = scalar_lea.vmem %s3, %s240
      %p242 = scmp.lt.s32.totalorder %s19, 1
      %s243 = scalar_select %p242, %s19, 1
      %p244 = scmp.lt.s32.totalorder %s21, 0
      %s245 = scalar_select %p244, %s21, 0
      %s246 = sadd.s32 %s245, %s243
      %s247 = scalar_lea.vmem %s0, %s246
      %s248 = smul.u32 2, %s20
      %p249 = scmp.lt.s32.totalorder %s19, 1
      %s250 = scalar_select %p249, %s19, 1
      %p251 = scmp.lt.s32.totalorder %s248, 1
      %s252 = scalar_select %p251, %s248, 1
      %s253 = smul.addr %s250, 2
      %s254 = sadd.s32 %s252, %s253
      %s255 = smul.addr %s254, 4
      %s256 = scalar_lea.vmem %s1, %s255
      %s257 = smul.u32 2, %s20
      %s258 = smul.u32 16, %s21
      %p259 = scmp.lt.s32.totalorder %s19, 1
      %s260 = scalar_select %p259, %s19, 1
      %p261 = scmp.lt.s32.totalorder %s258, 15
      %s262 = scalar_select %p261, %s258, 15
      %s263 = smul.addr %s260, 16
      %s264 = sadd.s32 %s262, %s263
      %s265 = smul.addr %s264, 4
      %s266 = scalar_lea.vmem %s2, %s265
      %s267 = smul.u32 16, %s21
      %s268 = smul.u32 2, %s20
      %p269 = scmp.lt.s32.totalorder %s19, 1
      %s270 = scalar_select %p269, %s19, 1
      %p271 = scmp.lt.s32.totalorder %s268, 1
      %s272 = scalar_select %p271, %s268, 1
      %s273 = smul.addr %s270, 2
      %s274 = sadd.s32 %s272, %s273
      %s275 = smul.addr %s274, 8
      %s276 = scalar_lea.vmem %s3, %s275
      %s277 = smul.u32 2, %s20
      %p279 = scmp.eq.s32.totalorder %s21, 0
      // Predicated region
      $region33: #{forward.35} parent=31 // pred_check
        %p280 = pneg %p279
      $region34: #{forward.35} parent=31 // pred_check_branch
        %282 = sbr.rel (%p280) target = $region36
      $region35: #{forward.35} parent=31 // pred_region
        %vm283 = vcmask 7168
        %284 = vst.msk [vmem:[#allocation2] sm:$0xff] %vm283, -1e+09
        %285 = vst.msk [vmem:[#allocation2 + $0x8] sm:$0xff] %vm283, -1e+09
        %286 = vst.msk [vmem:[#allocation3] sm:$0xff] %vm283, 0.0
        %287 = vst.msk [vmem:[#allocation3 + $0x8] sm:$0xff] %vm283, 0.0
        %288 = vst [vmem:[#allocation4] sm:$0xff] 0.0
        %289 = vst [vmem:[#allocation4 + $0x8] sm:$0xff] 0.0
      $region36: #{forward.35} parent=31 // pred_fallthru
        _
      %v290 = vld [vmem:[%s256] sm:$0xf]
      %v291 = vld [vmem:[%s256 + $0x4] sm:$0xf]
      %v292 = vld [vmem:[%s266] sm:$0xf]
      %v293 = vld [vmem:[%s266 + $0x4] sm:$0xf]
      %v294 = vld [vmem:[%s266 + $0x8] sm:$0xf]
      %v295 = vld [vmem:[%s266 + $0xc] sm:$0xf]
      %v296 = vld [vmem:[%s266 + $0x10] sm:$0xf]
      %v297 = vld [vmem:[%s266 + $0x14] sm:$0xf]
      %v298 = vld [vmem:[%s266 + $0x18] sm:$0xf]
      %v299 = vld [vmem:[%s266 + $0x1c] sm:$0xf]
      %v300 = vld [vmem:[%s266 + $0x20] sm:$0xf]
      %v301 = vld [vmem:[%s266 + $0x24] sm:$0xf]
      %v302 = vld [vmem:[%s266 + $0x28] sm:$0xf]
      %v303 = vld [vmem:[%s266 + $0x2c] sm:$0xf]
      %v304 = vld [vmem:[%s266 + $0x30] sm:$0xf]
      %v305 = vld [vmem:[%s266 + $0x34] sm:$0xf]
      %v306 = vld [vmem:[%s266 + $0x38] sm:$0xf]
      %v307 = vld [vmem:[%s266 + $0x3c] sm:$0xf]
      %v308 = vld [vmem:[%s247] sm:$0x1]
      %v310 = vlaneseq
      %v311 = vshrl.u32 %v310, 7
      %v312 = vsub.s32 0, %v311
      %v313 = vrot.slane %v308, %v312
      %v317 = vunpack.c.l.b16 %v290
      %v318 = vunpack.c.l.b16 %v291
      %v319 = vpack.c.b16 %v318, %v317
      %v337 = vunpack.c.l.b16 %v292
      %v338 = vunpack.c.l.b16 %v293
      %v339 = vunpack.c.l.b16 %v294
      %v340 = vunpack.c.l.b16 %v295
      %v341 = vunpack.c.l.b16 %v296
      %v342 = vunpack.c.l.b16 %v297
      %v343 = vunpack.c.l.b16 %v298
      %v344 = vunpack.c.l.b16 %v299
      %v345 = vunpack.c.l.b16 %v300
      %v346 = vunpack.c.l.b16 %v301
      %v347 = vunpack.c.l.b16 %v302
      %v348 = vunpack.c.l.b16 %v303
      %v349 = vunpack.c.l.b16 %v304
      %v350 = vunpack.c.l.b16 %v305
      %v351 = vunpack.c.l.b16 %v306
      %v352 = vunpack.c.l.b16 %v307
      %v353 = vpack.c.b16 %v338, %v337
      %v354 = vpack.c.b16 %v340, %v339
      %v355 = vpack.c.b16 %v342, %v341
      %v356 = vpack.c.b16 %v344, %v343
      %v357 = vpack.c.b16 %v346, %v345
      %v358 = vpack.c.b16 %v348, %v347
      %v359 = vpack.c.b16 %v350, %v349
      %v360 = vpack.c.b16 %v352, %v351
      %369 = vmatprep.subr.bf16.mxu0 0
      %370 = vmatpush1.bf16.xpose.msra.mxu0 %v353
      %371 = vmatprep.subr.bf16.mxu0 0
      %372 = vmatpush1.bf16.xpose.msra.mxu0 %v354
      %373 = vmatprep.subr.bf16.mxu0 0
      %374 = vmatpush1.bf16.xpose.msra.mxu0 %v355
      %375 = vmatprep.subr.bf16.mxu0 0
      %376 = vmatpush1.bf16.xpose.msra.mxu0 %v356
      %377 = vmatprep.subr.bf16.mxu0 0
      %378 = vmatpush1.bf16.xpose.msra.mxu0 %v357
      %379 = vmatprep.subr.bf16.mxu0 0
      %380 = vmatpush1.bf16.xpose.msra.mxu0 %v358
      %381 = vmatprep.subr.bf16.mxu0 0
      %382 = vmatpush1.bf16.xpose.msra.mxu0 %v359
      %383 = vmatprep.subr.bf16.mxu0 0
      %384 = vmatpush1.bf16.xpose.msra.mxu0 %v360
      %385 = vmatprep.subr.bf16.mxu0 0
      %386 = vmatpush1.bf16.xpose.msra.mxu0 0
      %387 = vmatprep.subr.bf16.mxu0 0
      %388 = vmatpush1.bf16.xpose.msra.mxu0 0
      %389 = vmatprep.subr.bf16.mxu0 0
      %390 = vmatpush1.bf16.xpose.msra.mxu0 0
      %391 = vmatprep.subr.bf16.mxu0 0
      %392 = vmatpush1.bf16.xpose.msra.mxu0 0
      %393 = vmatprep.subr.bf16.mxu0 0
      %394 = vmatpush1.bf16.xpose.msra.mxu0 0
      %395 = vmatprep.subr.bf16.mxu0 0
      %396 = vmatpush1.bf16.xpose.msra.mxu0 0
      %397 = vmatprep.subr.bf16.mxu0 0
      %398 = vmatpush1.bf16.xpose.msra.mxu0 0
      %399 = vmatprep.subr.bf16.mxu0 0
      %400 = vmatpush1.bf16.xpose.msra.mxu0 0
      %401 = vmatprep.mubr.bf16.mxu0 0
      %402 = vmatmul.mubr.bf16.gmra.mrb[0].mxu0 %v319
      %v403 = vpop.f32.mrb[0].mxu0
      %v404 = vadd.f32 %v313, %v403
      %v405 = vpop.f32.mrb[0].mxu0
      %v406 = vpop.f32.mrb[0].mxu0
      %v407 = vadd.f32 %v313, %v406
      %v408 = vpop.f32.mrb[0].mxu0
      %409 = vdwg.mxu0
      %v410 = vld [vmem:[#allocation2] sm:$0xff]
      %v411 = vld [vmem:[#allocation2 + $0x8] sm:$0xff]
      %412 = vmax.xlane.f32.xlu0 %v404
      %v413 = vpop.xlane.xlu0 %412
      %414 = vmax.xlane.f32.xlu0 %v407
      %v415 = vpop.xlane.xlu0 %414
      %v416 = vmax.f32 %v410, %v413
      %v417 = vmax.f32 %v411, %v415
      %v418 = vsub.f32 %v410, %v416
      %v419 = vsub.f32 %v411, %v417
      %v420 = vmul.f32 %v418, 1.442695
      %v421 = vpow.pop %v420
      %v422 = vmul.f32 %v419, 1.442695
      %v423 = vpow.pop %v422
      %425 = vset.pattern.permute.xlu0 0
      %426 = vperm.xlu0 %425, %v416
      %v427 = vpop.permute.xlu0 %426
      %430 = vset.pattern.permute.xlu0 0
      %431 = vperm.xlu0 %430, %v417
      %v432 = vpop.permute.xlu0 %431
      %v434 = vsub.f32 %v404, %v427
      %v435 = vsub.f32 %v407, %v432
      %v436 = vmul.f32 %v434, 1.442695
      %v437 = vpow.pop %v436
      %v438 = vmul.f32 %v435, 1.442695
      %v439 = vpow.pop %v438
      %v440 = vld [vmem:[#allocation3] sm:$0xff]
      %v441 = vld [vmem:[#allocation3 + $0x8] sm:$0xff]
      %v442 = vmul.f32 %v421, %v440
      %v443 = vmul.f32 %v423, %v441
      %444 = vadd.xlane.f32.xlu0 %v437
      %v445 = vpop.xlane.xlu0 %444
      %446 = vadd.xlane.f32.xlu0 %v439
      %v447 = vpop.xlane.xlu0 %446
      %v448 = vadd.f32 %v442, %v445
      %v449 = vadd.f32 %v443, %v447
      %vm450 = vcmask 7168
      %451 = vst.msk [vmem:[#allocation3] sm:$0xff] %vm450, %v448
      %452 = vst.msk [vmem:[#allocation3 + $0x8] sm:$0xff] %vm450, %v449
      %v453 = vld [vmem:[#allocation4] sm:$0xff]
      %v454 = vld [vmem:[#allocation4 + $0x8] sm:$0xff]
      %456 = vset.pattern.permute.xlu0 0
      %457 = vperm.xlu0 %456, %v421
      %v458 = vpop.permute.xlu0 %457
      %461 = vset.pattern.permute.xlu0 0
      %462 = vperm.xlu0 %461, %v423
      %v463 = vpop.permute.xlu0 %462
      %v465 = vmul.f32 %v458, %v453
      %v466 = vmul.f32 %v463, %v454
      %v467 = vpack.c.bf16 %v439, %v437
      %468 = vmatprep.subr.bf16.mxu0 0
      %469 = vmatpush1.bf16.msra.mxu0 %v353
      %470 = vmatprep.subr.bf16.mxu0 0
      %471 = vmatpush1.bf16.msra.mxu0 %v354
      %472 = vmatprep.subr.bf16.mxu0 0
      %473 = vmatpush1.bf16.msra.mxu0 %v355
      %474 = vmatprep.subr.bf16.mxu0 0
      %475 = vmatpush1.bf16.msra.mxu0 %v356
      %476 = vmatprep.subr.bf16.mxu0 0
      %477 = vmatpush1.bf16.msra.mxu0 %v357
      %478 = vmatprep.subr.bf16.mxu0 0
      %479 = vmatpush1.bf16.msra.mxu0 %v358
      %480 = vmatprep.subr.bf16.mxu0 0
      %481 = vmatpush1.bf16.msra.mxu0 %v359
      %482 = vmatprep.subr.bf16.mxu0 0
      %483 = vmatpush1.bf16.msra.mxu0 %v360
      %484 = vmatprep.subr.bf16.mxu0 0
      %485 = vmatpush1.bf16.msra.mxu0 0
      %486 = vmatprep.subr.bf16.mxu0 0
      %487 = vmatpush1.bf16.msra.mxu0 0
      %488 = vmatprep.subr.bf16.mxu0 0
      %489 = vmatpush1.bf16.msra.mxu0 0
      %490 = vmatprep.subr.bf16.mxu0 0
      %491 = vmatpush1.bf16.msra.mxu0 0
      %492 = vmatprep.subr.bf16.mxu0 0
      %493 = vmatpush1.bf16.msra.mxu0 0
      %494 = vmatprep.subr.bf16.mxu0 0
      %495 = vmatpush1.bf16.msra.mxu0 0
      %496 = vmatprep.subr.bf16.mxu0 0
      %497 = vmatpush1.bf16.msra.mxu0 0
      %498 = vmatprep.subr.bf16.mxu0 0
      %499 = vmatpush1.bf16.msra.mxu0 0
      %500 = vmatprep.mubr.bf16.mxu0 0
      %501 = vmatmul.mubr.bf16.gmra.mrb[0].mxu0 %v467
      %v502 = vpop.f32.mrb[0].mxu0
      %v503 = vadd.f32 0.0, %v502
      %v504 = vpop.f32.mrb[0].mxu0
      %v505 = vpop.f32.mrb[0].mxu0
      %v506 = vadd.f32 0.0, %v505
      %v507 = vpop.f32.mrb[0].mxu0
      %508 = vdwg.mxu0
      %v509 = vadd.f32 %v465, %v503
      %v510 = vadd.f32 %v466, %v506
      %511 = vst [vmem:[#allocation4] sm:$0xff] %v509
      %512 = vst [vmem:[#allocation4 + $0x8] sm:$0xff] %v510
      %513 = vst.msk [vmem:[#allocation2] sm:$0xff] %vm450, %v416
      %514 = vst.msk [vmem:[#allocation2 + $0x8] sm:$0xff] %vm450, %v417
      // Predicated region
      $region37: #{forward.35} parent=31 // pred_check
        %p515 = pneg %p279
      $region38: #{forward.35} parent=31 // pred_check_branch
        %517 = sbr.rel (%p515) target = $region40
      $region39: #{forward.35} parent=31 // pred_region
        %v518 = vld [vmem:[#allocation4] sm:$0xff]
        %v519 = vld [vmem:[#allocation4 + $0x8] sm:$0xff]
        %v520 = vld [vmem:[#allocation3] sm:$0xff]
        %v521 = vld [vmem:[#allocation3 + $0x8] sm:$0xff]
        %v522 = vrcp.pop %v520
        %v523 = vrcp.pop %v521
        %525 = vset.pattern.permute.xlu0 0
        %526 = vperm.xlu0 %525, %v522
        %v527 = vpop.permute.xlu0 %526
        %530 = vset.pattern.permute.xlu0 0
        %531 = vperm.xlu0 %530, %v523
        %v532 = vpop.permute.xlu0 %531
        %v534 = vmul.f32 %v518, %v527
        %v535 = vmul.f32 %v519, %v532
        %536 = vst [vmem:[%s276] sm:$0xff] %v534
        %537 = vst [vmem:[%s276 + $0x8] sm:$0xff] %v535
      $region40: #{forward.35} parent=31 // pred_fallthru
        _
      %s538 = smul.u32 2, %s20
      %p539 = scmp.lt.s32.totalorder %s19, 1
      %s540 = scalar_select %p539, %s19, 1
      %p541 = scmp.lt.s32.totalorder %s538, 1
      %s542 = scalar_select %p541, %s538, 1
      %s543 = smul.addr %s540, 2
      %s544 = sadd.s32 %s542, %s543
      %s545 = smul.addr %s544, 8
      %s546 = scalar_lea.vmem %s3, %s545
      // Predicated region
      $region41: #{forward.35} parent=31 // pred_check
        %p547 = pneg %p137
      $region42: #{forward.35} parent=31 // pred_check_branch
        %549 = sbr.rel (%p547) target = $region44
      $region43: #{forward.35} parent=31 // pred_region
        %s550 = smul.u32 2, %s20
      $region44: #{forward.35} parent=31 // pred_fallthru
        _
    $region32: #{forward.35} parent=5 // pred_fallthru
      _
    %p551 = scmp.le.s32.totalorder 2, %s9
    // Predicated region
    $region45: #{forward.35} parent=5 // pred_check
      %p552 = pneg %p551
    $region46: #{forward.35} parent=5 // pred_check_branch
      %554 = sbr.rel (%p552) target = $region48
    $region47: #{forward.35} parent=5 // pred_region
      %s555 = ssub.s32 %s9, 2
      // Predicated region
      $region49: #{forward.35} parent=47 // pred_check
        %p556 = pneg %p143
      $region50: #{forward.35} parent=47 // pred_check_branch
        %558 = sbr.rel (%p556) target = $region52
      $region51: #{forward.35} parent=47 // pred_region
        %s559 = smul.u32 2, %s23
        %p560 = scmp.lt.s32.totalorder %s22, 1
        %s561 = scalar_select %p560, %s22, 1
        %p562 = scmp.lt.s32.totalorder %s559, 1
        %s563 = scalar_select %p562, %s559, 1
        %s564 = smul.addr %s561, 2
        %s565 = sadd.s32 %s563, %s564
        %s566 = smul.addr %s565, 8
        %s567 = scalar_lea.vmem %s3, %s566
      $region52: #{forward.35} parent=47 // pred_fallthru
        _
    $region48: #{forward.35} parent=5 // pred_fallthru
      _
  $region6: #{forward.35} parent=0 // loop_footer
    %s13 = sadd.s32 1, %s9
  $region7: #{forward.35} parent=0 // loop_footer_branch
    %8 = sbr.rel target = $region3
  $region8: #{forward.35} parent=0 // loop_exit
    _

// kernel: forward.47
$region0: #{forward.47}
  #allocation0 [shape = 'u32[]', space=smem, size = 0x4, offset = 0x4, fixed_abs, tag = 'smem constant byte address 0x4 - core index']
  #allocation1 [shape = 'u32[144,128]{1,0:T(1,128)}', space=vmem, size = 0x12000, scoped, tag = 'internal scratch']
  #allocation2 [shape = 'f32[32,128]{1,0:T(8,128)}', space=vmem, size = 0x4000, scoped, tag = 'scratch operand']
  %s0 = inlined_call_operand.vmem [shape: bf16[32,128], index: 0, kind: input, shape index: {}]
  %s1 = inlined_call_operand.vmem [shape: bf16[128,128], index: 1, kind: input, shape index: {}]
  %s2 = inlined_call_operand.vmem [shape: f32[1,128], index: 2, kind: input, shape index: {}]
  %s3 = inlined_call_operand.hbm [shape: f32[32,128], index: 3, kind: output, shape index: {}]
  %s4 = sld [smem:[#allocation0]]
  $region30: #{forward.47} parent=0
    _
  %s6 = ssub.s32 1, %s4
  %s7 = scalar_select 0, %s6, %s4
  $region1: #{forward.47} parent=0
    #allocation3 [shape = 'u8[16384]{0}', space=vmem, size = 0x4000, scoped, tag = 'output window, operand 0, single buffered']
    #allocation4 [shape = 's32[1]{0}', space=sflag, size = 0x4, scoped, tag = 'scoped memory for forward.47']
    %8 = vsyncpa [#allocation4], 0
    // Predicated region
    $region2: #{forward.47} parent=1 // pred_check
      _
    $region3: #{forward.47} parent=1 // pred_check_branch
      %10 = sbr.rel (0) target = $region5
    $region4: #{forward.47} parent=1 // pred_region
      _
    $region5: #{forward.47} parent=1 // pred_fallthru
      _
    // Predicated region
    $region6: #{forward.47} parent=1 // pred_check
      _
    $region7: #{forward.47} parent=1 // pred_check_branch
      %12 = sbr.rel (0) target = $region9
    $region8: #{forward.47} parent=1 // pred_region
      _
    $region9: #{forward.47} parent=1 // pred_fallthru
      _
    // Predicated region
    $region10: #{forward.47} parent=1 // pred_check
      _
    $region11: #{forward.47} parent=1 // pred_check_branch
      %14 = sbr.rel (0) target = $region13
    $region12: #{forward.47} parent=1 // pred_region
      _
    $region13: #{forward.47} parent=1 // pred_fallthru
      _
    %p16 = scmp.eq.s32.totalorder 0, 0
    // Predicated region
    $region14: #{forward.47} parent=1 // pred_check
      %p17 = pneg %p16
    $region15: #{forward.47} parent=1 // pred_check_branch
      %19 = sbr.rel (%p17) target = $region17
    $region16: #{forward.47} parent=1 // pred_region
      %20 = vst [vmem:[#allocation2] sm:$0xff] 0.0
      %21 = vst [vmem:[#allocation2 + $0x8] sm:$0xff] 0.0
      %22 = vst [vmem:[#allocation2 + $0x10] sm:$0xff] 0.0
      %23 = vst [vmem:[#allocation2 + $0x18] sm:$0xff] 0.0
    $region17: #{forward.47} parent=1 // pred_fallthru
      _
    %v24 = vld [vmem:[#allocation2] sm:$0xff]
    %v25 = vld [vmem:[#allocation2 + $0x8] sm:$0xff]
    %v26 = vld [vmem:[#allocation2 + $0x10] sm:$0xff]
    %v27 = vld [vmem:[#allocation2 + $0x18] sm:$0xff]
    %v28 = vld [vmem:[%s0] sm:$0xf]
    %v29 = vld [vmem:[%s0 + $0x4] sm:$0xf]
    %v30 = vld [vmem:[%s0 + $0x8] sm:$0xf]
    %v31 = vld [vmem:[%s0 + $0xc] sm:$0xf]
    %v32 = vld [vmem:[%s1] sm:$0xf]
    %v33 = vld [vmem:[%s1 + $0x4] sm:$0xf]
    %v34 = vld [vmem:[%s1 + $0x8] sm:$0xf]
    %v35 = vld [vmem:[%s1 + $0xc] sm:$0xf]
    %v36 = vld [vmem:[%s1 + $0x10] sm:$0xf]
    %v37 = vld [vmem:[%s1 + $0x14] sm:$0xf]
    %v38 = vld [vmem:[%s1 + $0x18] sm:$0xf]
    %v39 = vld [vmem:[%s1 + $0x1c] sm:$0xf]
    %v40 = vld [vmem:[%s1 + $0x20] sm:$0xf]
    %v41 = vld [vmem:[%s1 + $0x24] sm:$0xf]
    %v42 = vld [vmem:[%s1 + $0x28] sm:$0xf]
    %v43 = vld [vmem:[%s1 + $0x2c] sm:$0xf]
    %v44 = vld [vmem:[%s1 + $0x30] sm:$0xf]
    %v45 = vld [vmem:[%s1 + $0x34] sm:$0xf]
    %v46 = vld [vmem:[%s1 + $0x38] sm:$0xf]
    %v47 = vld [vmem:[%s1 + $0x3c] sm:$0xf]
    %v52 = vunpack.c.l.b16 %v28
    %v53 = vunpack.c.l.b16 %v29
    %v54 = vunpack.c.l.b16 %v30
    %v55 = vunpack.c.l.b16 %v31
    %v56 = vpack.c.b16 %v53, %v52
    %v57 = vpack.c.b16 %v55, %v54
    %v76 = vunpack.c.l.b16 %v32
    %v77 = vunpack.c.l.b16 %v33
    %v78 = vunpack.c.l.b16 %v34
    %v79 = vunpack.c.l.b16 %v35
    %v80 = vunpack.c.l.b16 %v36
    %v81 = vunpack.c.l.b16 %v37
    %v82 = vunpack.c.l.b16 %v38
    %v83 = vunpack.c.l.b16 %v39
    %v84 = vunpack.c.l.b16 %v40
    %v85 = vunpack.c.l.b16 %v41
    %v86 = vunpack.c.l.b16 %v42
    %v87 = vunpack.c.l.b16 %v43
    %v88 = vunpack.c.l.b16 %v44
    %v89 = vunpack.c.l.b16 %v45
    %v90 = vunpack.c.l.b16 %v46
    %v91 = vunpack.c.l.b16 %v47
    %v92 = vpack.c.b16 %v77, %v76
    %v93 = vpack.c.b16 %v79, %v78
    %v94 = vpack.c.b16 %v81, %v80
    %v95 = vpack.c.b16 %v83, %v82
    %v96 = vpack.c.b16 %v85, %v84
    %v97 = vpack.c.b16 %v87, %v86
    %v98 = vpack.c.b16 %v89, %v88
    %v99 = vpack.c.b16 %v91, %v90
    %108 = vmatprep.subr.bf16.mxu0 0
    %109 = vmatpush1.bf16.msra.mxu0 %v92
    %110 = vmatprep.subr.bf16.mxu0 0
    %111 = vmatpush1.bf16.msra.mxu0 %v93
    %112 = vmatprep.subr.bf16.mxu0 0
    %113 = vmatpush1.bf16.msra.mxu0 %v94
    %114 = vmatprep.subr.bf16.mxu0 0
    %115 = vmatpush1.bf16.msra.mxu0 %v95
    %116 = vmatprep.subr.bf16.mxu0 0
    %117 = vmatpush1.bf16.msra.mxu0 %v96
    %118 = vmatprep.subr.bf16.mxu0 0
    %119 = vmatpush1.bf16.msra.mxu0 %v97
    %120 = vmatprep.subr.bf16.mxu0 0
    %121 = vmatpush1.bf16.msra.mxu0 %v98
    %122 = vmatprep.subr.bf16.mxu0 0
    %123 = vmatpush1.bf16.msra.mxu0 %v99
    %124 = vmatprep.subr.bf16.mxu0 0
    %125 = vmatpush1.bf16.msra.mxu0 0
    %126 = vmatprep.subr.bf16.mxu0 0
    %127 = vmatpush1.bf16.msra.mxu0 0
    %128 = vmatprep.subr.bf16.mxu0 0
    %129 = vmatpush1.bf16.msra.mxu0 0
    %130 = vmatprep.subr.bf16.mxu0 0
    %131 = vmatpush1.bf16.msra.mxu0 0
    %132 = vmatprep.subr.bf16.mxu0 0
    %133 = vmatpush1.bf16.msra.mxu0 0
    %134 = vmatprep.subr.bf16.mxu0 0
    %135 = vmatpush1.bf16.msra.mxu0 0
    %136 = vmatprep.subr.bf16.mxu0 0
    %137 = vmatpush1.bf16.msra.mxu0 0
    %138 = vmatprep.subr.bf16.mxu0 0
    %139 = vmatpush1.bf16.msra.mxu0 0
    %140 = vmatprep.mubr.bf16.mxu0 0
    %141 = vmatmul.mubr.bf16.gmra.mrb[0].mxu0 %v56
    %v142 = vpop.f32.mrb[0].mxu0
    %v143 = vadd.f32 0.0, %v142
    %v144 = vpop.f32.mrb[0].mxu0
    %v145 = vpop.f32.mrb[0].mxu0
    %v146 = vadd.f32 0.0, %v145
    %v147 = vpop.f32.mrb[0].mxu0
    %148 = vmatprep.mubr.bf16.mxu0 0
    %149 = vmatmul.mubr.bf16.gmra.mrb[0].mxu0 %v57
    %v150 = vpop.f32.mrb[0].mxu0
    %v151 = vadd.f32 0.0, %v150
    %v152 = vpop.f32.mrb[0].mxu0
    %v153 = vpop.f32.mrb[0].mxu0
    %v154 = vadd.f32 0.0, %v153
    %v155 = vpop.f32.mrb[0].mxu0
    %156 = vdwg.mxu0
    %v157 = vadd.f32 %v24, %v143
    %v158 = vadd.f32 %v25, %v146
    %v159 = vadd.f32 %v26, %v151
    %v160 = vadd.f32 %v27, %v154
    %161 = vst [vmem:[#allocation2] sm:$0xff] %v157
    %162 = vst [vmem:[#allocation2 + $0x8] sm:$0xff] %v158
    %163 = vst [vmem:[#allocation2 + $0x10] sm:$0xff] %v159
    %164 = vst [vmem:[#allocation2 + $0x18] sm:$0xff] %v160
    // Predicated region
    $region18: #{forward.47} parent=1 // pred_check
      %p165 = pneg %p16
    $region19: #{forward.47} parent=1 // pred_check_branch
      %167 = sbr.rel (%p165) target = $region21
    $region20: #{forward.47} parent=1 // pred_region
      %v168 = vld [vmem:[#allocation2] sm:$0xff]
      %v169 = vld [vmem:[#allocation2 + $0x8] sm:$0xff]
      %v170 = vld [vmem:[#allocation2 + $0x10] sm:$0xff]
      %v171 = vld [vmem:[#allocation2 + $0x18] sm:$0xff]
      %v172 = vld [vmem:[%s2] sm:$0x1]
      %v174 = vlaneseq
      %v175 = vshrl.u32 %v174, 7
      %v176 = vsub.s32 0, %v175
      %v177 = vrot.slane %v172, %v176
      %v179 = vadd.f32 %v168, %v177
      %v180 = vadd.f32 %v169, %v177
      %v181 = vadd.f32 %v170, %v177
      %v182 = vadd.f32 %v171, %v177
      %183 = vst [vmem:[#allocation3] sm:$0xff] %v179
      %184 = vst [vmem:[#allocation3 + $0x8] sm:$0xff] %v180
      %185 = vst [vmem:[#allocation3 + $0x10] sm:$0xff] %v181
      %186 = vst [vmem:[#allocation3 + $0x18] sm:$0xff] %v182
    $region21: #{forward.47} parent=1 // pred_fallthru
      _
    // Predicated region
    $region22: #{forward.47} parent=1 // pred_check
      _
    $region23: #{forward.47} parent=1 // pred_check_branch
      %188 = sbr.rel (0) target = $region25
    $region24: #{forward.47} parent=1 // pred_region
      %s190 = ssub.s32 512, 512
      %191 = vsyncadd [#allocation4], %s190
      %s192 = sshll.u32 [#allocation3], 4
      %s193 = int_to_ptr.vmem [resolvable:$true] %s192
      %198 = dma.vmem_to_hbm [thread:$0]  %s193, 512, %s3, [#allocation4], 128, 128, 8
    $region25: #{forward.47} parent=1 // pred_fallthru
      _
    // Predicated region
    $region26: #{forward.47} parent=1 // pred_check
      _
    $region27: #{forward.47} parent=1 // pred_check_branch
      %200 = sbr.rel (0) target = $region29
    $region28: #{forward.47} parent=1 // pred_region
      %201 = dma.done [#allocation4], 512
    $region29: #{forward.47} parent=1 // pred_fallthru
      _
    %202 = vsyncpa [#allocation4], 1

// kernel: forward.38
$region0: #{forward.38}
  #allocation0 [shape = 'u32[]', space=smem, size = 0x4, offset = 0x4, fixed_abs, tag = 'smem constant byte address 0x4 - core index']
  #allocation1 [shape = 'u32[144,128]{1,0:T(1,128)}', space=vmem, size = 0x12000, scoped, tag = 'internal scratch']
  #allocation2 [shape = 'f32[8,128]{1,0:T(8,128)}', space=vmem, size = 0x1000, scoped, tag = 'scratch operand']
  %s0 = inlined_call_operand.vmem [shape: f32[16,8,384], index: 0, kind: input, shape index: {}]
  %s1 = inlined_call_operand.vmem [shape: bf16[128,384], index: 1, kind: input, shape index: {}]
  %s2 = inlined_call_operand.vmem [shape: f32[1,384], index: 2, kind: input, shape index: {}]
  %s3 = inlined_call_operand.vmem [shape: f32[8,128], index: 3, kind: input, shape index: {}]
  %s4 = inlined_call_operand.vmem [shape: f32[16,8,128], index: 4, kind: output, shape index: {0}]
  %s5 = inlined_call_operand.vmem [shape: f32[8,128], index: 5, kind: output, shape index: {1}]
  %6 = xla_tuple %s4, %s5
  %s7 = sld [smem:[#allocation0]]
  $region65: #{forward.38} parent=0
    _
  %s9 = ssub.s32 1, %s7
  %s10 = scalar_select 0, %s9, %s7
  loop: start=0, step=1, limit=18
  $region2: #{forward.38} parent=0 // loop_pre_header
    _
  $region3: #{forward.38} parent=0 // loop_header
    %s12 = sphi 0, %s16
    %p13 = scmp.ge.s32.totalorder %s12, 18
    %s22 = sphi 0, %s24
    %s25 = sphi 0, %s22
    %s26 = sphi 0, %s25
    %s42 = sphi 0, %s26
    %s46 = sphi 0, %s46
    %s48 = sphi 0, %s46
    %s49 = sphi 0, %s48
    %s63 = sphi 0, %s49
    %s67 = sphi 0, %s67
    %s69 = sphi 0, %s67
    %s70 = sphi 0, %s69
    %s84 = sphi 0, %s70
    %s88 = sphi 0, %s88
    %s90 = sphi 0, %s88
    %s91 = sphi 0, %s90
    %s105 = sphi 0, %s91
    %s111 = sphi 0, %s113
    %s114 = sphi 0, %s111
    %s115 = sphi 0, %s114
    %s131 = sphi 0, %s115
    %s135 = sphi 0, %s135
    %s137 = sphi 0, %s135
    %s138 = sphi 0, %s137
    %s152 = sphi 0, %s138
  $region4: #{forward.38} parent=0 // loop_header_branch
    %15 = sbr.rel (%p13) target = $region8
  $region5: #{forward.38} parent=0 // loop_body
    %s17 = ssub.s32 %s12, 1
    %s18 = ssub.s32 %s12, 2
    %s19 = sadd.s32 %s12, 1
    %s20 = ssub.s32 %s12, %s19
    %p21 = scmp.eq.s32.totalorder %s20, 0
    %s23 = sadd.s32 %s22, 1
    %s24 = scalar_select %p21, %s22, %s23
    %p27 = pneg %p21
    %p28 = scmp.eq.s32.totalorder %s12, 15
    %p29 = por %p27, %p28
    %p30 = scmp.ne.s32.totalorder %s22, %s25
    %p31 = scmp.eq.s32.totalorder %s12, 0
    %p32 = por %p30, %p31
    %p33 = scmp.ne.s32.totalorder %s22, %s25
    %p34 = scmp.eq.s32.totalorder %s17, 15
    %p35 = por %p33, %p34
    %p36 = scmp.ne.s32.totalorder %s25, %s26
    %p37 = scmp.eq.s32.totalorder %s17, 0
    %p38 = por %p36, %p37
    %p39 = scmp.ne.s32.totalorder %s25, %s26
    %p40 = scmp.eq.s32.totalorder %s18, 15
    %p41 = por %p39, %p40
    %p43 = scmp.ne.s32.totalorder %s26, %s42
    %p44 = scmp.eq.s32.totalorder %s18, 0
    %p45 = por %p43, %p44
    %s47 = sadd.s32 %s46, 1
    %p50 = scmp.eq.s32.totalorder %s12, 15
    %p51 = scmp.ne.s32.totalorder %s46, %s48
    %p52 = scmp.eq.s32.totalorder %s12, 0
    %p53 = por %p51, %p52
    %p54 = scmp.ne.s32.totalorder %s46, %s48
    %p55 = scmp.eq.s32.totalorder %s17, 15
    %p56 = por %p54, %p55
    %p57 = scmp.ne.s32.totalorder %s48, %s49
    %p58 = scmp.eq.s32.totalorder %s17, 0
    %p59 = por %p57, %p58
    %p60 = scmp.ne.s32.totalorder %s48, %s49
    %p61 = scmp.eq.s32.totalorder %s18, 15
    %p62 = por %p60, %p61
    %p64 = scmp.ne.s32.totalorder %s49, %s63
    %p65 = scmp.eq.s32.totalorder %s18, 0
    %p66 = por %p64, %p65
    %s68 = sadd.s32 %s67, 1
    %p71 = scmp.eq.s32.totalorder %s12, 15
    %p72 = scmp.ne.s32.totalorder %s67, %s69
    %p73 = scmp.eq.s32.totalorder %s12, 0
    %p74 = por %p72, %p73
    %p75 = scmp.ne.s32.totalorder %s67, %s69
    %p76 = scmp.eq.s32.totalorder %s17, 15
    %p77 = por %p75, %p76
    %p78 = scmp.ne.s32.totalorder %s69, %s70
    %p79 = scmp.eq.s32.totalorder %s17, 0
    %p80 = por %p78, %p79
    %p81 = scmp.ne.s32.totalorder %s69, %s70
    %p82 = scmp.eq.s32.totalorder %s18, 15
    %p83 = por %p81, %p82
    %p85 = scmp.ne.s32.totalorder %s70, %s84
    %p86 = scmp.eq.s32.totalorder %s18, 0
    %p87 = por %p85, %p86
    %s89 = sadd.s32 %s88, 1
    %p92 = scmp.eq.s32.totalorder %s12, 15
    %p93 = scmp.ne.s32.totalorder %s88, %s90
    %p94 = scmp.eq.s32.totalorder %s12, 0
    %p95 = por %p93, %p94
    %p96 = scmp.ne.s32.totalorder %s88, %s90
    %p97 = scmp.eq.s32.totalorder %s17, 15
    %p98 = por %p96, %p97
    %p99 = scmp.ne.s32.totalorder %s90, %s91
    %p100 = scmp.eq.s32.totalorder %s17, 0
    %p101 = por %p99, %p100
    %p102 = scmp.ne.s32.totalorder %s90, %s91
    %p103 = scmp.eq.s32.totalorder %s18, 15
    %p104 = por %p102, %p103
    %p106 = scmp.ne.s32.totalorder %s91, %s105
    %p107 = scmp.eq.s32.totalorder %s18, 0
    %p108 = por %p106, %p107
    %s109 = ssub.s32 %s12, %s19
    %p110 = scmp.eq.s32.totalorder %s109, 0
    %s112 = sadd.s32 %s111, 1
    %s113 = scalar_select %p110, %s111, %s112
    %p116 = pneg %p110
    %p117 = scmp.eq.s32.totalorder %s12, 15
    %p118 = por %p116, %p117
    %p119 = scmp.ne.s32.totalorder %s111, %s114
    %p120 = scmp.eq.s32.totalorder %s12, 0
    %p121 = por %p119, %p120
    %p122 = scmp.ne.s32.totalorder %s111, %s114
    %p123 = scmp.eq.s32.totalorder %s17, 15
    %p124 = por %p122, %p123
    %p125 = scmp.ne.s32.totalorder %s114, %s115
    %p126 = scmp.eq.s32.totalorder %s17, 0
    %p127 = por %p125, %p126
    %p128 = scmp.ne.s32.totalorder %s114, %s115
    %p129 = scmp.eq.s32.totalorder %s18, 15
    %p130 = por %p128, %p129
    %p132 = scmp.ne.s32.totalorder %s115, %s131
    %p133 = scmp.eq.s32.totalorder %s18, 0
    %p134 = por %p132, %p133
    %s136 = sadd.s32 %s135, 1
    %p139 = scmp.eq.s32.totalorder %s12, 15
    %p140 = scmp.ne.s32.totalorder %s135, %s137
    %p141 = scmp.eq.s32.totalorder %s12, 0
    %p142 = por %p140, %p141
    %p143 = scmp.ne.s32.totalorder %s135, %s137
    %p144 = scmp.eq.s32.totalorder %s17, 15
    %p145 = por %p143, %p144
    %p146 = scmp.ne.s32.totalorder %s137, %s138
    %p147 = scmp.eq.s32.totalorder %s17, 0
    %p148 = por %p146, %p147
    %p149 = scmp.ne.s32.totalorder %s137, %s138
    %p150 = scmp.eq.s32.totalorder %s18, 15
    %p151 = por %p149, %p150
    %p153 = scmp.ne.s32.totalorder %s138, %s152
    %p154 = scmp.eq.s32.totalorder %s18, 0
    %p155 = por %p153, %p154
    %p156 = scmp.le.s32.totalorder 1, %s12
    %p157 = scmp.lt.s32.totalorder %s12, 17
    %p158 = pnand %p156, %p157
    %p159 = pneg %p158
    // Predicated region
    $region9: #{forward.38} parent=5 // pred_check
      _
    $region10: #{forward.38} parent=5 // pred_check_branch
      %161 = sbr.rel (%p158) target = $region12
    $region11: #{forward.38} parent=5 // pred_region
      %s162 = ssub.s32 %s12, 1
      // Predicated region
      $region13: #{forward.38} parent=11 // pred_check
        %p163 = pneg %p59
      $region14: #{forward.38} parent=11 // pred_check_branch
        %165 = sbr.rel (%p163) target = $region16
      $region15: #{forward.38} parent=11 // pred_region
        _
      $region16: #{forward.38} parent=11 // pred_fallthru
        _
      // Predicated region
      $region17: #{forward.38} parent=11 // pred_check
        %p166 = pneg %p80
      $region18: #{forward.38} parent=11 // pred_check_branch
        %168 = sbr.rel (%p166) target = $region20
      $region19: #{forward.38} parent=11 // pred_region
        _
      $region20: #{forward.38} parent=11 // pred_fallthru
        _
      // Predicated region
      $region21: #{forward.38} parent=11 // pred_check
        %p169 = pneg %p101
      $region22: #{forward.38} parent=11 // pred_check_branch
        %171 = sbr.rel (%p169) target = $region24
      $region23: #{forward.38} parent=11 // pred_region
        _
      $region24: #{forward.38} parent=11 // pred_fallthru
        _
    $region12: #{forward.38} parent=5 // pred_fallthru
      _
    %p172 = scmp.lt.s32.totalorder %s12, 16
    // Predicated region
    $region25: #{forward.38} parent=5 // pred_check
      %p173 = pneg %p172
    $region26: #{forward.38} parent=5 // pred_check_branch
      %175 = sbr.rel (%p173) target = $region28
    $region27: #{forward.38} parent=5 // pred_region
      // Predicated region
      $region29: #{forward.38} parent=27 // pred_check
        %p176 = pneg %p32
      $region30: #{forward.38} parent=27 // pred_check_branch
        %178 = sbr.rel (%p176) target = $region32
      $region31: #{forward.38} parent=27 // pred_region
        %p179 = scmp.lt.s32.totalorder %s12, 15
        %s180 = scalar_select %p179, %s12, 15
        %s181 = smul.addr %s180, 3
        %s182 = smul.addr %s181, 8
        %s183 = scalar_lea.vmem %s0, %s182
      $region32: #{forward.38} parent=27 // pred_fallthru
        _
    $region28: #{forward.38} parent=5 // pred_fallthru
      _
    %p184 = scmp.le.s32.totalorder 1, %s12
    %p185 = scmp.lt.s32.totalorder %s12, 17
    %p186 = pnand %p184, %p185
    %p187 = pneg %p186
    // Predicated region
    $region33: #{forward.38} parent=5 // pred_check
      _
    $region34: #{forward.38} parent=5 // pred_check_branch
      %189 = sbr.rel (%p186) target = $region36
    $region35: #{forward.38} parent=5 // pred_region
      %s190 = ssub.s32 %s12, 1
      %p191 = scmp.lt.s32.totalorder %s17, 15
      %s192 = scalar_select %p191, %s17, 15
      %s193 = smul.addr %s192, 3
      %s194 = smul.addr %s193, 8
      %s195 = scalar_lea.vmem %s0, %s194
      %p196 = pneg %p38
      %p197 = pneg %p35
      %p198 = pneg %p59
      %p199 = pneg %p56
      %p200 = pneg %p80
      %p201 = pneg %p77
      %p202 = pneg %p101
      %p203 = pneg %p98
      %p204 = pneg %p127
      %p205 = pneg %p124
      %p206 = scmp.lt.s32.totalorder %s17, 15
      %s207 = scalar_select %p206, %s17, 15
      %s208 = smul.addr %s207, 8
      %s209 = scalar_lea.vmem %s4, %s208
      %p210 = pneg %p148
      %p211 = pneg %p145
      %p212 = scmp.lt.s32.totalorder %s17, 15
      %s213 = scalar_select %p212, %s17, 15
      %s214 = smul.addr %s213, 3
      %s215 = smul.addr %s214, 8
      %s216 = scalar_lea.vmem %s0, %s215
      %p217 = scmp.lt.s32.totalorder %s17, 15
      %s218 = scalar_select %p217, %s17, 15
      %s219 = smul.addr %s218, 8
      %s220 = scalar_lea.vmem %s4, %s219
      %p222 = scmp.eq.s32.totalorder %s17, 0
      // Predicated region
      $region37: #{forward.38} parent=35 // pred_check
        %p223 = pneg %p222
      $region38: #{forward.38} parent=35 // pred_check_branch
        %225 = sbr.rel (%p223) target = $region40
      $region39: #{forward.38} parent=35 // pred_region
        %v226 = vld [vmem:[%s3] sm:$0xff]
        %227 = vst [vmem:[#allocation2] sm:$0xff] %v226
      $region40: #{forward.38} parent=35 // pred_fallthru
        _
      %v228 = vld [vmem:[#allocation2] sm:$0xff]
      %v229 = vpack.c.bf16 %v228, %v228
      %v230 = vld [vmem:[%s1] sm:$0xff]
      %v231 = vld [vmem:[%s1 + $0x8] sm:$0xf]
      %v232 = vld [vmem:[%s1 + $0xc] sm:$0xff]
      %v233 = vld [vmem:[%s1 + $0x14] sm:$0xf]
      %v234 = vld [vmem:[%s1 + $0x18] sm:$0xff]
      %v235 = vld [vmem:[%s1 + $0x20] sm:$0xf]
      %v236 = vld [vmem:[%s1 + $0x24] sm:$0xff]
      %v237 = vld [vmem:[%s1 + $0x2c] sm:$0xf]
      %v238 = vld [vmem:[%s1 + $0x30] sm:$0xff]
      %v239 = vld [vmem:[%s1 + $0x38] sm:$0xf]
      %v240 = vld [vmem:[%s1 + $0x3c] sm:$0xff]
      %v241 = vld [vmem:[%s1 + $0x44] sm:$0xf]
      %v242 = vld [vmem:[%s1 + $0x48] sm:$0xff]
      %v243 = vld [vmem:[%s1 + $0x50] sm:$0xf]
      %v244 = vld [vmem:[%s1 + $0x54] sm:$0xff]
      %v245 = vld [vmem:[%s1 + $0x5c] sm:$0xf]
      %v246 = vld [vmem:[%s1 + $0x60] sm:$0xff]
      %v247 = vld [vmem:[%s1 + $0x68] sm:$0xf]
      %v248 = vld [vmem:[%s1 + $0x6c] sm:$0xff]
      %v249 = vld [vmem:[%s1 + $0x74] sm:$0xf]
      %v250 = vld [vmem:[%s1 + $0x78] sm:$0xff]
      %v251 = vld [vmem:[%s1 + $0x80] sm:$0xf]
      %v252 = vld [vmem:[%s1 + $0x84] sm:$0xff]
      %v253 = vld [vmem:[%s1 + $0x8c] sm:$0xf]
      %v254 = vld [vmem:[%s1 + $0x90] sm:$0xff]
      %v255 = vld [vmem:[%s1 + $0x98] sm:$0xf]
      %v256 = vld [vmem:[%s1 + $0x9c] sm:$0xff]
      %v257 = vld [vmem:[%s1 + $0xa4] sm:$0xf]
      %v258 = vld [vmem:[%s1 + $0xa8] sm:$0xff]
      %v259 = vld [vmem:[%s1 + $0xb0] sm:$0xf]
      %v260 = vld [vmem:[%s1 + $0xb4] sm:$0xff]
      %v261 = vld [vmem:[%s1 + $0xbc] sm:$0xf]
      %v262 = vld [vmem:[%s2] sm:$0x7]
      %v264 = vlaneseq
      %v265 = vshrl.u32 %v264, 7
      %v266 = vsub.s32 0, %v265
      %v267 = vrot.slane %v262, %v266
      %v268 = vlaneseq
      %v269 = vshrl.u32 %v268, 7
      %v270 = vsub.s32 1, %v269
      %v271 = vrot.slane %v262, %v270
      %v272 = vlaneseq
      %v273 = vshrl.u32 %v272, 7
      %v274 = vsub.s32 2, %v273
      %v275 = vrot.slane %v262, %v274
      %v311 = vunpack.c.l.b16 %v230
      %v312 = vunpack.c.h.b16 %v230
      %v313 = vunpack.c.l.b16 %v231
      %v314 = vunpack.c.l.b16 %v232
      %v315 = vunpack.c.h.b16 %v232
      %v316 = vunpack.c.l.b16 %v233
      %v317 = vunpack.c.l.b16 %v234
      %v318 = vunpack.c.h.b16 %v234
      %v319 = vunpack.c.l.b16 %v235
      %v320 = vunpack.c.l.b16 %v236
      %v321 = vunpack.c.h.b16 %v236
      %v322 = vunpack.c.l.b16 %v237
      %v323 = vunpack.c.l.b16 %v238
      %v324 = vunpack.c.h.b16 %v238
      %v325 = vunpack.c.l.b16 %v239
      %v326 = vunpack.c.l.b16 %v240
      %v327 = vunpack.c.h.b16 %v240
      %v328 = vunpack.c.l.b16 %v241
      %v329 = vunpack.c.l.b16 %v242
      %v330 = vunpack.c.h.b16 %v242
      %v331 = vunpack.c.l.b16 %v243
      %v332 = vunpack.c.l.b16 %v244
      %v333 = vunpack.c.h.b16 %v244
      %v334 = vunpack.c.l.b16 %v245
      %v335 = vunpack.c.l.b16 %v246
      %v336 = vunpack.c.h.b16 %v246
      %v337 = vunpack.c.l.b16 %v247
      %v338 = vunpack.c.l.b16 %v248
      %v339 = vunpack.c.h.b16 %v248
      %v340 = vunpack.c.l.b16 %v249
      %v341 = vunpack.c.l.b16 %v250
      %v342 = vunpack.c.h.b16 %v250
      %v343 = vunpack.c.l.b16 %v251
      %v344 = vunpack.c.l.b16 %v252
      %v345 = vunpack.c.h.b16 %v252
      %v346 = vunpack.c.l.b16 %v253
      %v347 = vunpack.c.l.b16 %v254
      %v348 = vunpack.c.h.b16 %v254
      %v349 = vunpack.c.l.b16 %v255
      %v350 = vunpack.c.l.b16 %v256
      %v351 = vunpack.c.h.b16 %v256
      %v352 = vunpack.c.l.b16 %v257
      %v353 = vunpack.c.l.b16 %v258
      %v354 = vunpack.c.h.b16 %v258
      %v355 = vunpack.c.l.b16 %v259
      %v356 = vunpack.c.l.b16 %v260
      %v357 = vunpack.c.h.b16 %v260
      %v358 = vunpack.c.l.b16 %v261
      %v359 = vpack.c.b16 %v314, %v311
      %v360 = vpack.c.b16 %v315, %v312
      %v361 = vpack.c.b16 %v316, %v313
      %v362 = vpack.c.b16 %v320, %v317
      %v363 = vpack.c.b16 %v321, %v318
      %v364 = vpack.c.b16 %v322, %v319
      %v365 = vpack.c.b16 %v326, %v323
      %v366 = vpack.c.b16 %v327, %v324
      %v367 = vpack.c.b16 %v328, %v325
      %v368 = vpack.c.b16 %v332, %v329
      %v369 = vpack.c.b16 %v333, %v330
      %v370 = vpack.c.b16 %v334, %v331
      %v371 = vpack.c.b16 %v338, %v335
      %v372 = vpack.c.b16 %v339, %v336
      %v373 = vpack.c.b16 %v340, %v337
      %v374 = vpack.c.b16 %v344, %v341
      %v375 = vpack.c.b16 %v345, %v342
      %v376 = vpack.c.b16 %v346, %v343
      %v377 = vpack.c.b16 %v350, %v347
      %v378 = vpack.c.b16 %v351, %v348
      %v379 = vpack.c.b16 %v352, %v349
      %v380 = vpack.c.b16 %v356, %v353
      %v381 = vpack.c.b16 %v357, %v354
      %v382 = vpack.c.b16 %v358, %v355
      %407 = vmatprep.subr.bf16.mxu0 %v360
      %408 = vmatpush1.bf16.msra.mxu0 %v359
      %409 = vmatprep.subr.bf16.mxu0 %v363
      %410 = vmatpush1.bf16.msra.mxu0 %v362
      %411 = vmatprep.subr.bf16.mxu0 %v366
      %412 = vmatpush1.bf16.msra.mxu0 %v365
      %413 = vmatprep.subr.bf16.mxu0 %v369
      %414 = vmatpush1.bf16.msra.mxu0 %v368
      %415 = vmatprep.subr.bf16.mxu0 %v372
      %416 = vmatpush1.bf16.msra.mxu0 %v371
      %417 = vmatprep.subr.bf16.mxu0 %v375
      %418 = vmatpush1.bf16.msra.mxu0 %v374
      %419 = vmatprep.subr.bf16.mxu0 %v378
      %420 = vmatpush1.bf16.msra.mxu0 %v377
      %421 = vmatprep.subr.bf16.mxu0 %v381
      %422 = vmatpush1.bf16.msra.mxu0 %v380
      %423 = vmatprep.subr.bf16.mxu0 0
      %424 = vmatpush1.bf16.msra.mxu0 0
      %425 = vmatprep.subr.bf16.mxu0 0
      %426 = vmatpush1.bf16.msra.mxu0 0
      %427 = vmatprep.subr.bf16.mxu0 0
      %428 = vmatpush1.bf16.msra.mxu0 0
      %429 = vmatprep.subr.bf16.mxu0 0
      %430 = vmatpush1.bf16.msra.mxu0 0
      %431 = vmatprep.subr.bf16.mxu0 0
      %432 = vmatpush1.bf16.msra.mxu0 0
      %433 = vmatprep.subr.bf16.mxu0 0
      %434 = vmatpush1.bf16.msra.mxu0 0
      %435 = vmatprep.subr.bf16.mxu0 0
      %436 = vmatpush1.bf16.msra.mxu0 0
      %437 = vmatprep.subr.bf16.mxu0 0
      %438 = vmatpush1.bf16.msra.mxu0 0
      %439 = vmatprep.mubr.bf16.mxu0 0
      %440 = vmatmul.mubr.bf16.gmra.mrb[0].mxu0 %v229
      %v441 = vpop.f32.mrb[0].mxu0
      %v442 = vadd.f32 %v267, %v441
      %v443 = vpop.f32.mrb[0].mxu0
      %v444 = vadd.f32 %v271, %v443
      %v445 = vpop.f32.mrb[0].mxu0
      %v446 = vpop.f32.mrb[0].mxu0
      %447 = vdwg.mxu0
      %448 = vmatprep.subr.bf16.mxu0 0
      %449 = vmatpush1.bf16.msra.mxu0 %v361
      %450 = vmatprep.subr.bf16.mxu0 0
      %451 = vmatpush1.bf16.msra.mxu0 %v364
      %452 = vmatprep.subr.bf16.mxu0 0
      %453 = vmatpush1.bf16.msra.mxu0 %v367
      %454 = vmatprep.subr.bf16.mxu0 0
      %455 = vmatpush1.bf16.msra.mxu0 %v370
      %456 = vmatprep.subr.bf16.mxu0 0
      %457 = vmatpush1.bf16.msra.mxu0 %v373
      %458 = vmatprep.subr.bf16.mxu0 0
      %459 = vmatpush1.bf16.msra.mxu0 %v376
      %460 = vmatprep.subr.bf16.mxu0 0
      %461 = vmatpush1.bf16.msra.mxu0 %v379
      %462 = vmatprep.subr.bf16.mxu0 0
      %463 = vmatpush1.bf16.msra.mxu0 %v382
      %464 = vmatprep.subr.bf16.mxu0 0
      %465 = vmatpush1.bf16.msra.mxu0 0
      %466 = vmatprep.subr.bf16.mxu0 0
      %467 = vmatpush1.bf16.msra.mxu0 0
      %468 = vmatprep.subr.bf16.mxu0 0
      %469 = vmatpush1.bf16.msra.mxu0 0
      %470 = vmatprep.subr.bf16.mxu0 0
      %471 = vmatpush1.bf16.msra.mxu0 0
      %472 = vmatprep.subr.bf16.mxu0 0
      %473 = vmatpush1.bf16.msra.mxu0 0
      %474 = vmatprep.subr.bf16.mxu0 0
      %475 = vmatpush1.bf16.msra.mxu0 0
      %476 = vmatprep.subr.bf16.mxu0 0
      %477 = vmatpush1.bf16.msra.mxu0 0
      %478 = vmatprep.subr.bf16.mxu0 0
      %479 = vmatpush1.bf16.msra.mxu0 0
      %480 = vmatprep.mubr.bf16.mxu0 0
      %481 = vmatmul.mubr.bf16.gmra.mrb[0].mxu0 %v229
      %v482 = vpop.f32.mrb[0].mxu0
      %v483 = vadd.f32 %v275, %v482
      %v484 = vpop.f32.mrb[0].mxu0
      %v485 = vpop.f32.mrb[0].mxu0
      %v486 = vpop.f32.mrb[0].mxu0
      %487 = vdwg.mxu0
      %v488 = vld [vmem:[%s216] sm:$0xff]
      %v489 = vld [vmem:[%s216 + $0x8] sm:$0xff]
      %v490 = vld [vmem:[%s216 + $0x10] sm:$0xff]
      %v491 = vadd.f32 %v488, %v442
      %v492 = vxor.u32 %v491, 2147483648
      %v493 = vmul.f32 %v492, 1.442695
      %v494 = vpow.pop %v493
      %v495 = vadd.f32 %v494, 1.0
      %v496 = vrcp.pop %v495
      %v497 = vmul.f32 1.0, %v496
      %v498 = vadd.f32 %v489, %v444
      %v499 = vxor.u32 %v498, 2147483648
      %v500 = vmul.f32 %v499, 1.442695
      %v501 = vpow.pop %v500
      %v502 = vadd.f32 %v501, 1.0
      %v503 = vrcp.pop %v502
      %v504 = vmul.f32 1.0, %v503
      %v505 = vmul.f32 %v497, %v483
      %v506 = vadd.f32 %v490, %v505
      %v507 = vtanh.pop %v506
      %v508 = vsub.f32 1.0, %v504
      %v509 = vmul.f32 %v508, %v507
      %v510 = vmul.f32 %v504, %v228
      %v511 = vadd.f32 %v509, %v510
      %512 = vst [vmem:[#allocation2] sm:$0xff] %v511
      %513 = vst [vmem:[%s220] sm:$0xff] %v511
      %p514 = scmp.eq.s32.totalorder %s17, 15
      // Predicated region
      $region41: #{forward.38} parent=35 // pred_check
        %p515 = pneg %p514
      $region42: #{forward.38} parent=35 // pred_check_branch
        %517 = sbr.rel (%p515) target = $region44
      $region43: #{forward.38} parent=35 // pred_region
        %518 = vst [vmem:[%s5] sm:$0xff] %v511
      $region44: #{forward.38} parent=35 // pred_fallthru
        _
      %p519 = scmp.lt.s32.totalorder %s17, 15
      %s520 = scalar_select %p519, %s17, 15
      %s521 = smul.addr %s520, 8
      %s522 = scalar_lea.vmem %s4, %s521
      // Predicated region
      $region45: #{forward.38} parent=35 // pred_check
        %p523 = pneg %p124
      $region46: #{forward.38} parent=35 // pred_check_branch
        %525 = sbr.rel (%p523) target = $region48
      $region47: #{forward.38} parent=35 // pred_region
        _
      $region48: #{forward.38} parent=35 // pred_fallthru
        _
      // Predicated region
      $region49: #{forward.38} parent=35 // pred_check
        %p526 = pneg %p145
      $region50: #{forward.38} parent=35 // pred_check_branch
        %528 = sbr.rel (%p526) target = $region52
      $region51: #{forward.38} parent=35 // pred_region
        _
      $region52: #{forward.38} parent=35 // pred_fallthru
        _
      // Predicated region
      $region53: #{forward.38} parent=35 // pred_check
        %p529 = pneg %p145
      $region54: #{forward.38} parent=35 // pred_check_branch
        %531 = sbr.rel (%p529) target = $region56
      $region55: #{forward.38} parent=35 // pred_region
        _
      $region56: #{forward.38} parent=35 // pred_fallthru
        _
    $region36: #{forward.38} parent=5 // pred_fallthru
      _
    %p532 = scmp.le.s32.totalorder 2, %s12
    // Predicated region
    $region57: #{forward.38} parent=5 // pred_check
      %p533 = pneg %p532
    $region58: #{forward.38} parent=5 // pred_check_branch
      %535 = sbr.rel (%p533) target = $region60
    $region59: #{forward.38} parent=5 // pred_region
      %s536 = ssub.s32 %s12, 2
      // Predicated region
      $region61: #{forward.38} parent=59 // pred_check
        %p537 = pneg %p130
      $region62: #{forward.38} parent=59 // pred_check_branch
        %539 = sbr.rel (%p537) target = $region64
      $region63: #{forward.38} parent=59 // pred_region
        %p540 = scmp.lt.s32.totalorder %s18, 15
        %s541 = scalar_select %p540, %s18, 15
        %s542 = smul.addr %s541, 8
        %s543 = scalar_lea.vmem %s4, %s542
      $region64: #{forward.38} parent=59 // pred_fallthru
        _
    $region60: #{forward.38} parent=5 // pred_fallthru
      _
  $region6: #{forward.38} parent=0 // loop_footer
    %s16 = sadd.s32 1, %s12
  $region7: #{forward.38} parent=0 // loop_footer_branch
    %11 = sbr.rel target = $region3
  $region8: #{forward.38} parent=0 // loop_exit
    _

</llo_original>
